<compile_context>
chip_gen: v6e
topology: v6e:2x2x1
jax: 0.10.0
libtpu: 0.0.40
codegen_flags: <defaults>
</compile_context>

<pallas_src>
import functools

import jax
import jax.numpy as jnp
import numpy as np
from jax import lax
from jax.experimental import pallas as pl
from jax.experimental.pallas import tpu as pltpu

KH = KW = 3      # kernel_size=3, stride=1, padding=1 (the module defaults)
LANE = 128       # TPU lane width


def _rup(x, m):
    return (x + m - 1) // m * m


def _conv3x3_kernel(x_ref, w_ref, b_ref, o_ref):
    # x_ref: (1, 1, TH+2, W+2, Cin)   row tile + 2-row halo, zero-padded width
    # w_ref: (KH, KW, Cin, TCOUT)
    # b_ref: (1, TCOUT) f32
    # o_ref: (1, TH, W, TCOUT)
    _, th, wdim, tc = o_ref.shape
    mxu_dtype = w_ref.dtype
    # Bias-initialized f32 accumulator, kept as a live value (v7x MRB chains the dots).
    acc = jnp.broadcast_to(b_ref[...].astype(jnp.float32), (th, wdim, tc))
    for kh in range(KH):
        # kh slice: major (untiled) block axis -> pure addressing, no relayout.
        # Widen to f32 so the kw value-slices below are plain 32-bit sublane shifts
        # (exact round trip for bf16 inputs).
        xh = x_ref[0, 0, kh:kh + th, :, :].astype(jnp.float32)      # (TH, W+2, Cin)
        for kw in range(KW):
            lhs = xh[:, kw:kw + wdim, :].astype(mxu_dtype)          # (TH, W, Cin)
            acc = acc + lax.dot_general(
                lhs, w_ref[kh, kw],
                dimension_numbers=(((2,), (0,)), ((), ())),
                preferred_element_type=jnp.float32,
            )
    o_ref[0, :, :, :] = acc.astype(o_ref.dtype)


@functools.partial(jax.jit, static_argnames=("row_tile", "compute_dtype", "nchw_output"))
def conv_forward(x_nchw, weight_oihw, bias, *, row_tile=None,
                 compute_dtype=jnp.bfloat16, nchw_output=True):
    """Equivalent of Conv(in_ch, out_ch, 3, 1, 1).forward(x) for NCHW input."""
    N, Cin, H, W = x_nchw.shape
    Cout = weight_oihw.shape[0]
    out_dtype = x_nchw.dtype
    if compute_dtype is None:
        compute_dtype = out_dtype
    x_item = np.dtype(compute_dtype).itemsize
    out_item = np.dtype(out_dtype).itemsize

    # ---- static tiling decisions (shapes are static under jit) --------------------------
    Cout_pad = _rup(Cout, LANE)
    if Cout_pad <= 256:
        TCOUT = Cout_pad                      # single co step: resident weights, one wide store
    elif Cout_pad % 256 == 0:
        TCOUT = 256                           # matches the 256-wide MXU N dim on v6e/v7x
    else:
        TCOUT = LANE
    nc = Cout_pad // TCOUT

    # Accounted per-step working set (double-buffered in/out, f32 widened slab + acc, weights).
    VMEM_BUDGET = 14 * 1024 * 1024            # well under the 32 MiB scoped VMEM limit

    def _step_bytes(th):
        x_blk = 2 * (th + 2) * _rup(W + 2, 8) * _rup(Cin, LANE) * x_item
        x_f32 = th * _rup(W + 2, 8) * _rup(Cin, LANE) * 4
        o_blk = 2 * th * _rup(W, 8) * TCOUT * out_item
        a_val = th * _rup(W, 8) * TCOUT * 4
        w_blk = 2 * KH * KW * _rup(Cin, 8) * TCOUT * x_item
        return x_blk + x_f32 + o_blk + a_val + w_blk

    TH = min(H, max(1, (1024 + W - 1) // W))  # target MXU M dim TH*W ~ 1024
    if row_tile is not None:
        TH = max(1, min(TH, int(row_tile)))
    while TH > 1 and _step_bytes(TH) > VMEM_BUDGET:
        TH = (TH + 1) // 2
    H_pad = _rup(H, TH)                       # pad H instead of degrading to TH=1 for prime H
    nt = H_pad // TH

    # ---- wrapper prep (fused by XLA under this jit) --------------------------------------
    x_nhwc = jnp.transpose(x_nchw, (0, 2, 3, 1)).astype(compute_dtype)        # (N, H, W, Cin)
    x_pad = jnp.pad(x_nhwc, ((0, 0), (1, 1 + H_pad - H), (1, 1), (0, 0)))     # (N, H_pad+2, W+2, Cin)
    # Row tiles carrying their own 2-row halo -> non-overlapping Blocked blocks.
    x_tiles = jnp.stack([x_pad[:, t * TH:t * TH + TH + 2] for t in range(nt)],
                        axis=1)                                               # (N, nt, TH+2, W+2, Cin)

    # weight OIHW -> (kh, kw, ci, co), Cout zero-padded to a lane multiple.
    w = jnp.transpose(weight_oihw, (2, 3, 1, 0))                              # (KH, KW, Cin, Cout)
    w = jnp.pad(w, ((0, 0), (0, 0), (0, 0), (0, Cout_pad - Cout))).astype(compute_dtype)
    b = jnp.pad(bias, (0, Cout_pad - Cout)).reshape(1, Cout_pad).astype(jnp.float32)

    # ---- grid: largest of (N, nt) outermost (v7x megacore), Cout tiles innermost ---------
    # (x's index_map ignores the co axis, so the activation block is NOT re-DMA'd per co tile)
    if N >= nt:
        grid = (N, nt, nc)
        x_map = lambda n, r, c: (n, r, 0, 0, 0)
        w_map = lambda n, r, c: (0, 0, 0, c)
        b_map = lambda n, r, c: (0, c)
        o_map = lambda n, r, c: (n, r, 0, c)
    else:
        grid = (nt, N, nc)
        x_map = lambda r, n, c: (n, r, 0, 0, 0)
        w_map = lambda r, n, c: (0, 0, 0, c)
        b_map = lambda r, n, c: (0, c)
        o_map = lambda r, n, c: (n, r, 0, c)

    w_fetch_bytes = KH * KW * Cin * TCOUT * x_item * (1 if nc == 1 else N * nt * nc)
    cost = pl.CostEstimate(
        flops=2 * N * H_pad * W * Cin * Cout_pad * KH * KW,
        transcendentals=0,
        bytes_accessed=int(x_tiles.size * x_item + w_fetch_bytes + b.size * 4
                           + N * H_pad * W * Cout_pad * out_item),
    )

    out_padded = pl.pallas_call(
        _conv3x3_kernel,
        out_shape=jax.ShapeDtypeStruct((N, H_pad, W, Cout_pad), out_dtype),
        grid_spec=pltpu.PrefetchScalarGridSpec(
            num_scalar_prefetch=0,
            grid=grid,
            in_specs=[
                pl.BlockSpec((1, 1, TH + 2, W + 2, Cin), x_map),
                pl.BlockSpec((KH, KW, Cin, TCOUT), w_map),
                pl.BlockSpec((1, TCOUT), b_map),
            ],
            out_specs=pl.BlockSpec((1, TH, W, TCOUT), o_map),
        ),
        compiler_params=pltpu.CompilerParams(
            dimension_semantics=("parallel", "parallel", "parallel"),
            vmem_limit_bytes=32 * 1024 * 1024,   # safe on v7x (64 MiB phys), raises v5e's 16 MiB default
        ),
        cost_estimate=cost,
    )(x_tiles, w, b)

    out = out_padded[:, :H, :, :Cout]                 # drop padded rows / Cout lanes
    if nchw_output:
        out = jnp.transpose(out, (0, 3, 1, 2))        # back to NCHW (PyTorch layout)
    return out


if __name__ == "__main__":
    key = jax.random.PRNGKey(0)
    k_x, k_w, k_b = jax.random.split(key, 3)

    def torch_ref(x, weight, bias):
        return lax.conv_general_dilated(
            x, weight, window_strides=(1, 1), padding=((1, 1), (1, 1)),
            dimension_numbers=("NCHW", "OIHW", "NCHW"),
        ) + bias[None, :, None, None]

    # Shapes consistent with the module: batch=2, channels 4->8, spatial 16x16.
    N, Cin, Cout, H, W = 2, 4, 8, 16, 16
    x = jax.random.normal(k_x, (N, Cin, H, W), dtype=jnp.float32)
    weight = jax.random.normal(k_w, (Cout, Cin, KH, KW), dtype=jnp.float32) * 0.1
    bias = jax.random.normal(k_b, (Cout,), dtype=jnp.float32) * 0.1
    ref = jax.block_until_ready(torch_ref(x, weight, bias))

    # 1) f32 compute path: tight parity with a PyTorch f32 Conv2d.
    out_f32 = jax.block_until_ready(conv_forward(x, weight, bias, compute_dtype=jnp.float32))
    assert out_f32.shape == (N, Cout, H, W)
    np.testing.assert_allclose(np.asarray(out_f32), np.asarray(ref), rtol=1e-5, atol=1e-5)

    # 2) default bf16-compute path (f32 accumulation): looser tolerance by design.
    out_bf16 = jax.block_until_ready(conv_forward(x, weight, bias))
    assert out_bf16.shape == (N, Cout, H, W)
    np.testing.assert_allclose(np.asarray(out_bf16), np.asarray(ref), rtol=3e-2, atol=3e-2)

    # 3) odd H (exercises H padding + multi-row-tile grid ordering) and Cout not a lane multiple.
    N2, Cin2, Cout2, H2, W2 = 1, 4, 6, 13, 16
    x2 = jax.random.normal(k_x, (N2, Cin2, H2, W2), dtype=jnp.float32)
    w2 = jax.random.normal(k_w, (Cout2, Cin2, KH, KW), dtype=jnp.float32) * 0.1
    b2 = jax.random.normal(k_b, (Cout2,), dtype=jnp.float32) * 0.1
    out2 = jax.block_until_ready(conv_forward(x2, w2, b2, row_tile=4))
    ref2 = jax.block_until_ready(torch_ref(x2, w2, b2))
    assert out2.shape == (N2, Cout2, H2, W2)
    np.testing.assert_allclose(np.asarray(out2), np.asarray(ref2), rtol=3e-2, atol=3e-2)

    print("KERNEL_OK")
</pallas_src>

<mosaic_0001>
module attributes {stable_mosaic.version = 11 : i64} {
  func.func @_conv3x3_kernel(%arg0: i32, %arg1: i32, %arg2: i32, %arg3: memref<1x1x18x18x4xf32, #tpu.memory_space<vmem>>, %arg4: memref<3x3x4x128xf32, #tpu.memory_space<vmem>>, %arg5: memref<1x128xf32, #tpu.memory_space<vmem>>, %arg6: memref<1x16x16x128xf32, #tpu.memory_space<vmem>>) attributes {dimension_semantics = [#tpu.dimension_semantics<parallel>, #tpu.dimension_semantics<parallel>, #tpu.dimension_semantics<parallel>], iteration_bounds = array<i64: 2, 1, 1>, scalar_prefetch = 0 : i64, scratch_operands = 0 : i64, tpu.core_type = #tpu.core_type<tc>, window_params = [{transform_indices = @transform_0, window_bounds = array<i64: 1, 1, 18, 18, 4>}, {transform_indices = @transform_1, window_bounds = array<i64: 3, 3, 4, 128>}, {transform_indices = @transform_2, window_bounds = array<i64: 1, 128>}, {transform_indices = @transform_3, window_bounds = array<i64: 1, 16, 16, 128>}]} {
    %c0 = arith.constant 0 : index
    %c0_0 = arith.constant 0 : index
    %0 = vector.load %arg5[%c0, %c0_0] : memref<1x128xf32, #tpu.memory_space<vmem>>, vector<1x128xf32>
    %1 = vector.shape_cast %0 : vector<1x128xf32> to vector<1x1x128xf32>
    %2 = vector.broadcast %1 : vector<1x1x128xf32> to vector<16x16x128xf32>
    %c0_1 = arith.constant 0 : index
    %c0_2 = arith.constant 0 : index
    %c0_3 = arith.constant 0 : index
    %c0_4 = arith.constant 0 : index
    %c0_5 = arith.constant 0 : index
    %3 = vector.load %arg3[%c0_1, %c0_2, %c0_3, %c0_4, %c0_5] : memref<1x1x18x18x4xf32, #tpu.memory_space<vmem>>, vector<1x1x16x18x4xf32>
    %4 = vector.shape_cast %3 : vector<1x1x16x18x4xf32> to vector<16x18x4xf32>
    %5 = vector.extract_strided_slice %4 {offsets = [0, 0, 0], sizes = [16, 16, 4], strides = [1, 1, 1]} : vector<16x18x4xf32> to vector<16x16x4xf32>
    %c0_6 = arith.constant 0 : index
    %c0_7 = arith.constant 0 : index
    %c0_8 = arith.constant 0 : index
    %c0_9 = arith.constant 0 : index
    %6 = vector.load %arg4[%c0_6, %c0_7, %c0_8, %c0_9] : memref<3x3x4x128xf32, #tpu.memory_space<vmem>>, vector<1x1x4x128xf32>
    %7 = vector.shape_cast %6 : vector<1x1x4x128xf32> to vector<4x128xf32>
    %cst = arith.constant dense<0.000000e+00> : vector<16x16x128xf32>
    %8 = tpu.matmul %5, %7, %cst {dimension_numbers = #tpu.dot_dimension_numbers<[2], [0], [0, 1], [1], [0, 0, 0, 1, 1, 1], [], []>} : vector<16x16x4xf32>, vector<4x128xf32>, vector<16x16x128xf32> -> vector<16x16x128xf32>
    %9 = arith.addf %2, %8 : vector<16x16x128xf32>
    %10 = vector.extract_strided_slice %4 {offsets = [0, 1, 0], sizes = [16, 16, 4], strides = [1, 1, 1]} : vector<16x18x4xf32> to vector<16x16x4xf32>
    %c0_10 = arith.constant 0 : index
    %c1 = arith.constant 1 : index
    %c0_11 = arith.constant 0 : index
    %c0_12 = arith.constant 0 : index
    %11 = vector.load %arg4[%c0_10, %c1, %c0_11, %c0_12] : memref<3x3x4x128xf32, #tpu.memory_space<vmem>>, vector<1x1x4x128xf32>
    %12 = vector.shape_cast %11 : vector<1x1x4x128xf32> to vector<4x128xf32>
    %cst_13 = arith.constant dense<0.000000e+00> : vector<16x16x128xf32>
    %13 = tpu.matmul %10, %12, %cst_13 {dimension_numbers = #tpu.dot_dimension_numbers<[2], [0], [0, 1], [1], [0, 0, 0, 1, 1, 1], [], []>} : vector<16x16x4xf32>, vector<4x128xf32>, vector<16x16x128xf32> -> vector<16x16x128xf32>
    %14 = arith.addf %9, %13 : vector<16x16x128xf32>
    %15 = vector.extract_strided_slice %4 {offsets = [0, 2, 0], sizes = [16, 16, 4], strides = [1, 1, 1]} : vector<16x18x4xf32> to vector<16x16x4xf32>
    %c0_14 = arith.constant 0 : index
    %c2 = arith.constant 2 : index
    %c0_15 = arith.constant 0 : index
    %c0_16 = arith.constant 0 : index
    %16 = vector.load %arg4[%c0_14, %c2, %c0_15, %c0_16] : memref<3x3x4x128xf32, #tpu.memory_space<vmem>>, vector<1x1x4x128xf32>
    %17 = vector.shape_cast %16 : vector<1x1x4x128xf32> to vector<4x128xf32>
    %cst_17 = arith.constant dense<0.000000e+00> : vector<16x16x128xf32>
    %18 = tpu.matmul %15, %17, %cst_17 {dimension_numbers = #tpu.dot_dimension_numbers<[2], [0], [0, 1], [1], [0, 0, 0, 1, 1, 1], [], []>} : vector<16x16x4xf32>, vector<4x128xf32>, vector<16x16x128xf32> -> vector<16x16x128xf32>
    %19 = arith.addf %14, %18 : vector<16x16x128xf32>
    %c0_18 = arith.constant 0 : index
    %c0_19 = arith.constant 0 : index
    %c1_20 = arith.constant 1 : index
    %c0_21 = arith.constant 0 : index
    %c0_22 = arith.constant 0 : index
    %20 = vector.load %arg3[%c0_18, %c0_19, %c1_20, %c0_21, %c0_22] : memref<1x1x18x18x4xf32, #tpu.memory_space<vmem>>, vector<1x1x16x18x4xf32>
    %21 = vector.shape_cast %20 : vector<1x1x16x18x4xf32> to vector<16x18x4xf32>
    %22 = vector.extract_strided_slice %21 {offsets = [0, 0, 0], sizes = [16, 16, 4], strides = [1, 1, 1]} : vector<16x18x4xf32> to vector<16x16x4xf32>
    %c1_23 = arith.constant 1 : index
    %c0_24 = arith.constant 0 : index
    %c0_25 = arith.constant 0 : index
    %c0_26 = arith.constant 0 : index
    %23 = vector.load %arg4[%c1_23, %c0_24, %c0_25, %c0_26] : memref<3x3x4x128xf32, #tpu.memory_space<vmem>>, vector<1x1x4x128xf32>
    %24 = vector.shape_cast %23 : vector<1x1x4x128xf32> to vector<4x128xf32>
    %cst_27 = arith.constant dense<0.000000e+00> : vector<16x16x128xf32>
    %25 = tpu.matmul %22, %24, %cst_27 {dimension_numbers = #tpu.dot_dimension_numbers<[2], [0], [0, 1], [1], [0, 0, 0, 1, 1, 1], [], []>} : vector<16x16x4xf32>, vector<4x128xf32>, vector<16x16x128xf32> -> vector<16x16x128xf32>
    %26 = arith.addf %19, %25 : vector<16x16x128xf32>
    %27 = vector.extract_strided_slice %21 {offsets = [0, 1, 0], sizes = [16, 16, 4], strides = [1, 1, 1]} : vector<16x18x4xf32> to vector<16x16x4xf32>
    %c1_28 = arith.constant 1 : index
    %c1_29 = arith.constant 1 : index
    %c0_30 = arith.constant 0 : index
    %c0_31 = arith.constant 0 : index
    %28 = vector.load %arg4[%c1_28, %c1_29, %c0_30, %c0_31] : memref<3x3x4x128xf32, #tpu.memory_space<vmem>>, vector<1x1x4x128xf32>
    %29 = vector.shape_cast %28 : vector<1x1x4x128xf32> to vector<4x128xf32>
    %cst_32 = arith.constant dense<0.000000e+00> : vector<16x16x128xf32>
    %30 = tpu.matmul %27, %29, %cst_32 {dimension_numbers = #tpu.dot_dimension_numbers<[2], [0], [0, 1], [1], [0, 0, 0, 1, 1, 1], [], []>} : vector<16x16x4xf32>, vector<4x128xf32>, vector<16x16x128xf32> -> vector<16x16x128xf32>
    %31 = arith.addf %26, %30 : vector<16x16x128xf32>
    %32 = vector.extract_strided_slice %21 {offsets = [0, 2, 0], sizes = [16, 16, 4], strides = [1, 1, 1]} : vector<16x18x4xf32> to vector<16x16x4xf32>
    %c1_33 = arith.constant 1 : index
    %c2_34 = arith.constant 2 : index
    %c0_35 = arith.constant 0 : index
    %c0_36 = arith.constant 0 : index
    %33 = vector.load %arg4[%c1_33, %c2_34, %c0_35, %c0_36] : memref<3x3x4x128xf32, #tpu.memory_space<vmem>>, vector<1x1x4x128xf32>
    %34 = vector.shape_cast %33 : vector<1x1x4x128xf32> to vector<4x128xf32>
    %cst_37 = arith.constant dense<0.000000e+00> : vector<16x16x128xf32>
    %35 = tpu.matmul %32, %34, %cst_37 {dimension_numbers = #tpu.dot_dimension_numbers<[2], [0], [0, 1], [1], [0, 0, 0, 1, 1, 1], [], []>} : vector<16x16x4xf32>, vector<4x128xf32>, vector<16x16x128xf32> -> vector<16x16x128xf32>
    %36 = arith.addf %31, %35 : vector<16x16x128xf32>
    %c0_38 = arith.constant 0 : index
    %c0_39 = arith.constant 0 : index
    %c2_40 = arith.constant 2 : index
    %c0_41 = arith.constant 0 : index
    %c0_42 = arith.constant 0 : index
    %37 = vector.load %arg3[%c0_38, %c0_39, %c2_40, %c0_41, %c0_42] : memref<1x1x18x18x4xf32, #tpu.memory_space<vmem>>, vector<1x1x16x18x4xf32>
    %38 = vector.shape_cast %37 : vector<1x1x16x18x4xf32> to vector<16x18x4xf32>
    %39 = vector.extract_strided_slice %38 {offsets = [0, 0, 0], sizes = [16, 16, 4], strides = [1, 1, 1]} : vector<16x18x4xf32> to vector<16x16x4xf32>
    %c2_43 = arith.constant 2 : index
    %c0_44 = arith.constant 0 : index
    %c0_45 = arith.constant 0 : index
    %c0_46 = arith.constant 0 : index
    %40 = vector.load %arg4[%c2_43, %c0_44, %c0_45, %c0_46] : memref<3x3x4x128xf32, #tpu.memory_space<vmem>>, vector<1x1x4x128xf32>
    %41 = vector.shape_cast %40 : vector<1x1x4x128xf32> to vector<4x128xf32>
    %cst_47 = arith.constant dense<0.000000e+00> : vector<16x16x128xf32>
    %42 = tpu.matmul %39, %41, %cst_47 {dimension_numbers = #tpu.dot_dimension_numbers<[2], [0], [0, 1], [1], [0, 0, 0, 1, 1, 1], [], []>} : vector<16x16x4xf32>, vector<4x128xf32>, vector<16x16x128xf32> -> vector<16x16x128xf32>
    %43 = arith.addf %36, %42 : vector<16x16x128xf32>
    %44 = vector.extract_strided_slice %38 {offsets = [0, 1, 0], sizes = [16, 16, 4], strides = [1, 1, 1]} : vector<16x18x4xf32> to vector<16x16x4xf32>
    %c2_48 = arith.constant 2 : index
    %c1_49 = arith.constant 1 : index
    %c0_50 = arith.constant 0 : index
    %c0_51 = arith.constant 0 : index
    %45 = vector.load %arg4[%c2_48, %c1_49, %c0_50, %c0_51] : memref<3x3x4x128xf32, #tpu.memory_space<vmem>>, vector<1x1x4x128xf32>
    %46 = vector.shape_cast %45 : vector<1x1x4x128xf32> to vector<4x128xf32>
    %cst_52 = arith.constant dense<0.000000e+00> : vector<16x16x128xf32>
    %47 = tpu.matmul %44, %46, %cst_52 {dimension_numbers = #tpu.dot_dimension_numbers<[2], [0], [0, 1], [1], [0, 0, 0, 1, 1, 1], [], []>} : vector<16x16x4xf32>, vector<4x128xf32>, vector<16x16x128xf32> -> vector<16x16x128xf32>
    %48 = arith.addf %43, %47 : vector<16x16x128xf32>
    %49 = vector.extract_strided_slice %38 {offsets = [0, 2, 0], sizes = [16, 16, 4], strides = [1, 1, 1]} : vector<16x18x4xf32> to vector<16x16x4xf32>
    %c2_53 = arith.constant 2 : index
    %c2_54 = arith.constant 2 : index
    %c0_55 = arith.constant 0 : index
    %c0_56 = arith.constant 0 : index
    %50 = vector.load %arg4[%c2_53, %c2_54, %c0_55, %c0_56] : memref<3x3x4x128xf32, #tpu.memory_space<vmem>>, vector<1x1x4x128xf32>
    %51 = vector.shape_cast %50 : vector<1x1x4x128xf32> to vector<4x128xf32>
    %cst_57 = arith.constant dense<0.000000e+00> : vector<16x16x128xf32>
    %52 = tpu.matmul %49, %51, %cst_57 {dimension_numbers = #tpu.dot_dimension_numbers<[2], [0], [0, 1], [1], [0, 0, 0, 1, 1, 1], [], []>} : vector<16x16x4xf32>, vector<4x128xf32>, vector<16x16x128xf32> -> vector<16x16x128xf32>
    %53 = arith.addf %48, %52 : vector<16x16x128xf32>
    %c0_58 = arith.constant 0 : index
    %c0_59 = arith.constant 0 : index
    %c0_60 = arith.constant 0 : index
    %c0_61 = arith.constant 0 : index
    %54 = vector.load %arg6[%c0_58, %c0_59, %c0_60, %c0_61] : memref<1x16x16x128xf32, #tpu.memory_space<vmem>>, vector<1x16x16x128xf32>
    %55 = vector.shape_cast %54 : vector<1x16x16x128xf32> to vector<16x16x128xf32>
    %56 = vector.shape_cast %53 : vector<16x16x128xf32> to vector<1x16x16x128xf32>
    tpu.vector_store %arg6[%c0_58, %c0_59, %c0_60, %c0_61], %56 {strides = array<i32>} : memref<1x16x16x128xf32, #tpu.memory_space<vmem>>, vector<1x16x16x128xf32>,
    return
  }
  func.func @transform_0(%arg0: i32, %arg1: i32, %arg2: i32) -> (i32, i32, i32, i32, i32) {
    %c0_i32 = arith.constant 0 : i32
    %c0_i32_0 = arith.constant 0 : i32
    %c0_i32_1 = arith.constant 0 : i32
    %c0_i32_2 = arith.constant 0 : i32
    return %arg0, %arg1, %c0_i32, %c0_i32_0, %c0_i32_1 : i32, i32, i32, i32, i32
  }
  func.func @transform_1(%arg0: i32, %arg1: i32, %arg2: i32) -> (i32, i32, i32, i32) {
    %c0_i32 = arith.constant 0 : i32
    %c0_i32_0 = arith.constant 0 : i32
    %c0_i32_1 = arith.constant 0 : i32
    %c0_i32_2 = arith.constant 0 : i32
    return %c0_i32, %c0_i32_0, %c0_i32_1, %arg2 : i32, i32, i32, i32
  }
  func.func @transform_2(%arg0: i32, %arg1: i32, %arg2: i32) -> (i32, i32) {
    %c0_i32 = arith.constant 0 : i32
    %c0_i32_0 = arith.constant 0 : i32
    return %c0_i32, %arg2 : i32, i32
  }
  func.func @transform_3(%arg0: i32, %arg1: i32, %arg2: i32) -> (i32, i32, i32, i32) {
    %c0_i32 = arith.constant 0 : i32
    %c0_i32_0 = arith.constant 0 : i32
    return %arg0, %arg1, %c0_i32, %arg2 : i32, i32, i32, i32
  }
}

</mosaic_0001>

<llo_original>
// kernel: conv_forward.1
$region0: #{conv_forward.1}
  #allocation0 [shape = 'u32[]', space=smem, size = 0x4, offset = 0x4, fixed_abs, tag = 'smem constant byte address 0x4 - core index']
  #allocation1 [shape = 'u32[144,128]{1,0:T(1,128)}', space=vmem, size = 0x12000, scoped, tag = 'internal scratch']
  %s0 = inlined_call_operand.vmem [shape: f32[2,1,18,18,4], index: 0, kind: input, shape index: {}]
  %s1 = inlined_call_operand.vmem [shape: f32[3,3,4,128], index: 1, kind: input, shape index: {}]
  %s2 = inlined_call_operand.vmem [shape: f32[1,128], index: 2, kind: input, shape index: {}]
  %s3 = inlined_call_operand.vmem [shape: f32[2,16,16,128], index: 3, kind: output, shape index: {}]
  %s4 = sld [smem:[#allocation0]]
  $region45: #{conv_forward.1} parent=0
    _
  %s6 = ssub.s32 1, %s4
  %s7 = scalar_select 0, %s6, %s4
  loop: start=0, step=1, limit=4
  $region2: #{conv_forward.1} parent=0 // loop_pre_header
    _
  $region3: #{conv_forward.1} parent=0 // loop_header
    %s9 = sphi 0, %s13
    %p10 = scmp.ge.s32.totalorder %s9, 4
    %s16 = sphi 0, %s35
    %s17 = sphi 0, %s31
    %s18 = sphi 0, %s27
    %s19 = sphi 0, %s16
    %s20 = sphi 0, %s17
    %s21 = sphi 0, %s18
    %s22 = sphi 0, %s19
    %s23 = sphi 0, %s20
    %s24 = sphi 0, %s21
    %s40 = sphi 0, %s42
    %s43 = sphi 0, %s40
    %s44 = sphi 0, %s43
    %s60 = sphi 0, %s44
    %s66 = sphi 0, %s68
    %s69 = sphi 0, %s66
    %s70 = sphi 0, %s69
    %s86 = sphi 0, %s70
    %s92 = sphi 0, %s94
    %s95 = sphi 0, %s92
    %s96 = sphi 0, %s95
    %s112 = sphi 0, %s96
    %s122 = sphi 0, %s124
    %s125 = sphi 0, %s122
    %s126 = sphi 0, %s125
    %s142 = sphi 0, %s126
  $region4: #{conv_forward.1} parent=0 // loop_header_branch
    %12 = sbr.rel (%p10) target = $region8
  $region5: #{conv_forward.1} parent=0 // loop_body
    %s14 = ssub.s32 %s9, 1
    %s15 = ssub.s32 %s9, 2
    %s25 = sadd.s32 1, %s18
    %p26 = scmp.ge.s32.totalorder %s25, 1
    %s27 = scalar_select %p26, 0, %s25
    %s28 = sadd.s32 1, %s17
    %s29 = scalar_select %p26, %s28, %s17
    %p30 = scmp.ge.s32.totalorder %s29, 1
    %s31 = scalar_select %p30, 0, %s29
    %s32 = sadd.s32 1, %s16
    %s33 = scalar_select %p30, %s32, %s16
    %p34 = scmp.ge.s32.totalorder %s33, 2
    %s35 = scalar_select %p34, 0, %s33
    %s36 = ssub.s32 %s16, %s35
    %s37 = ssub.s32 %s17, %s31
    %s38 = sor.u32 %s36, %s37
    %p39 = scmp.eq.s32.totalorder %s38, 0
    %s41 = sadd.s32 %s40, 1
    %s42 = scalar_select %p39, %s40, %s41
    %p45 = pneg %p39
    %p46 = scmp.eq.s32.totalorder %s9, 1
    %p47 = por %p45, %p46
    %p48 = scmp.ne.s32.totalorder %s40, %s43
    %p49 = scmp.eq.s32.totalorder %s9, 0
    %p50 = por %p48, %p49
    %p51 = scmp.ne.s32.totalorder %s40, %s43
    %p52 = scmp.eq.s32.totalorder %s14, 1
    %p53 = por %p51, %p52
    %p54 = scmp.ne.s32.totalorder %s43, %s44
    %p55 = scmp.eq.s32.totalorder %s14, 0
    %p56 = por %p54, %p55
    %p57 = scmp.ne.s32.totalorder %s43, %s44
    %p58 = scmp.eq.s32.totalorder %s15, 1
    %p59 = por %p57, %p58
    %p61 = scmp.ne.s32.totalorder %s44, %s60
    %p62 = scmp.eq.s32.totalorder %s15, 0
    %p63 = por %p61, %p62
    %s64 = ssub.s32 %s18, %s27
    %p65 = scmp.eq.s32.totalorder %s64, 0
    %s67 = sadd.s32 %s66, 1
    %s68 = scalar_select %p65, %s66, %s67
    %p71 = pneg %p65
    %p72 = scmp.eq.s32.totalorder %s9, 1
    %p73 = por %p71, %p72
    %p74 = scmp.ne.s32.totalorder %s66, %s69
    %p75 = scmp.eq.s32.totalorder %s9, 0
    %p76 = por %p74, %p75
    %p77 = scmp.ne.s32.totalorder %s66, %s69
    %p78 = scmp.eq.s32.totalorder %s14, 1
    %p79 = por %p77, %p78
    %p80 = scmp.ne.s32.totalorder %s69, %s70
    %p81 = scmp.eq.s32.totalorder %s14, 0
    %p82 = por %p80, %p81
    %p83 = scmp.ne.s32.totalorder %s69, %s70
    %p84 = scmp.eq.s32.totalorder %s15, 1
    %p85 = por %p83, %p84
    %p87 = scmp.ne.s32.totalorder %s70, %s86
    %p88 = scmp.eq.s32.totalorder %s15, 0
    %p89 = por %p87, %p88
    %s90 = ssub.s32 %s18, %s27
    %p91 = scmp.eq.s32.totalorder %s90, 0
    %s93 = sadd.s32 %s92, 1
    %s94 = scalar_select %p91, %s92, %s93
    %p97 = pneg %p91
    %p98 = scmp.eq.s32.totalorder %s9, 1
    %p99 = por %p97, %p98
    %p100 = scmp.ne.s32.totalorder %s92, %s95
    %p101 = scmp.eq.s32.totalorder %s9, 0
    %p102 = por %p100, %p101
    %p103 = scmp.ne.s32.totalorder %s92, %s95
    %p104 = scmp.eq.s32.totalorder %s14, 1
    %p105 = por %p103, %p104
    %p106 = scmp.ne.s32.totalorder %s95, %s96
    %p107 = scmp.eq.s32.totalorder %s14, 0
    %p108 = por %p106, %p107
    %p109 = scmp.ne.s32.totalorder %s95, %s96
    %p110 = scmp.eq.s32.totalorder %s15, 1
    %p111 = por %p109, %p110
    %p113 = scmp.ne.s32.totalorder %s96, %s112
    %p114 = scmp.eq.s32.totalorder %s15, 0
    %p115 = por %p113, %p114
    %s116 = ssub.s32 %s16, %s35
    %s117 = ssub.s32 %s17, %s31
    %s118 = sor.u32 %s116, %s117
    %s119 = ssub.s32 %s18, %s27
    %s120 = sor.u32 %s118, %s119
    %p121 = scmp.eq.s32.totalorder %s120, 0
    %s123 = sadd.s32 %s122, 1
    %s124 = scalar_select %p121, %s122, %s123
    %p127 = pneg %p121
    %p128 = scmp.eq.s32.totalorder %s9, 1
    %p129 = por %p127, %p128
    %p130 = scmp.ne.s32.totalorder %s122, %s125
    %p131 = scmp.eq.s32.totalorder %s9, 0
    %p132 = por %p130, %p131
    %p133 = scmp.ne.s32.totalorder %s122, %s125
    %p134 = scmp.eq.s32.totalorder %s14, 1
    %p135 = por %p133, %p134
    %p136 = scmp.ne.s32.totalorder %s125, %s126
    %p137 = scmp.eq.s32.totalorder %s14, 0
    %p138 = por %p136, %p137
    %p139 = scmp.ne.s32.totalorder %s125, %s126
    %p140 = scmp.eq.s32.totalorder %s15, 1
    %p141 = por %p139, %p140
    %p143 = scmp.ne.s32.totalorder %s126, %s142
    %p144 = scmp.eq.s32.totalorder %s15, 0
    %p145 = por %p143, %p144
    %p146 = scmp.le.s32.totalorder 1, %s9
    %p147 = scmp.lt.s32.totalorder %s9, 3
    %p148 = pnand %p146, %p147
    %p149 = pneg %p148
    // Predicated region
    $region9: #{conv_forward.1} parent=5 // pred_check
      _
    $region10: #{conv_forward.1} parent=5 // pred_check_branch
      %151 = sbr.rel (%p148) target = $region12
    $region11: #{conv_forward.1} parent=5 // pred_region
      %s152 = ssub.s32 %s9, 1
      // Predicated region
      $region13: #{conv_forward.1} parent=11 // pred_check
        %p153 = pneg %p82
      $region14: #{conv_forward.1} parent=11 // pred_check_branch
        %155 = sbr.rel (%p153) target = $region16
      $region15: #{conv_forward.1} parent=11 // pred_region
        %p156 = scmp.lt.s32.totalorder %s21, 0
        %s157 = scalar_select %p156, %s21, 0
        %s158 = smul.addr %s157, 4
        %s159 = scalar_lea.vmem %s1, %s158
      $region16: #{conv_forward.1} parent=11 // pred_fallthru
        _
      // Predicated region
      $region17: #{conv_forward.1} parent=11 // pred_check
        %p160 = pneg %p108
      $region18: #{conv_forward.1} parent=11 // pred_check_branch
        %162 = sbr.rel (%p160) target = $region20
      $region19: #{conv_forward.1} parent=11 // pred_region
        %p163 = scmp.lt.s32.totalorder %s21, 0
        %s164 = scalar_select %p163, %s21, 0
        %s165 = scalar_lea.vmem %s2, %s164
      $region20: #{conv_forward.1} parent=11 // pred_fallthru
        _
    $region12: #{conv_forward.1} parent=5 // pred_fallthru
      _
    %p166 = scmp.lt.s32.totalorder %s9, 2
    // Predicated region
    $region21: #{conv_forward.1} parent=5 // pred_check
      %p167 = pneg %p166
    $region22: #{conv_forward.1} parent=5 // pred_check_branch
      %169 = sbr.rel (%p167) target = $region24
    $region23: #{conv_forward.1} parent=5 // pred_region
      // Predicated region
      $region25: #{conv_forward.1} parent=23 // pred_check
        %p170 = pneg %p50
      $region26: #{conv_forward.1} parent=23 // pred_check_branch
        %172 = sbr.rel (%p170) target = $region28
      $region27: #{conv_forward.1} parent=23 // pred_region
        %p173 = scmp.lt.s32.totalorder %s16, 1
        %s174 = scalar_select %p173, %s16, 1
        %p175 = scmp.lt.s32.totalorder %s17, 0
        %s176 = scalar_select %p175, %s17, 0
        %s177 = smul.addr %s176, 54
        %s178 = smul.addr %s174, 54
        %s179 = sadd.s32 %s177, %s178
        %s180 = smul.addr %s179, 8
        %s181 = scalar_lea.vmem %s0, %s180
      $region28: #{conv_forward.1} parent=23 // pred_fallthru
        _
    $region24: #{conv_forward.1} parent=5 // pred_fallthru
      _
    %p182 = scmp.le.s32.totalorder 1, %s9
    %p183 = scmp.lt.s32.totalorder %s9, 3
    %p184 = pnand %p182, %p183
    %p185 = pneg %p184
    // Predicated region
    $region29: #{conv_forward.1} parent=5 // pred_check
      _
    $region30: #{conv_forward.1} parent=5 // pred_check_branch
      %187 = sbr.rel (%p184) target = $region32
    $region31: #{conv_forward.1} parent=5 // pred_region
      %s188 = ssub.s32 %s9, 1
      %p189 = scmp.lt.s32.totalorder %s19, 1
      %s190 = scalar_select %p189, %s19, 1
      %p191 = scmp.lt.s32.totalorder %s20, 0
      %s192 = scalar_select %p191, %s20, 0
      %s193 = smul.addr %s192, 54
      %s194 = smul.addr %s190, 54
      %s195 = sadd.s32 %s193, %s194
      %s196 = smul.addr %s195, 8
      %s197 = scalar_lea.vmem %s0, %s196
      %p198 = pneg %p56
      %p199 = pneg %p53
      %p200 = scmp.lt.s32.totalorder %s21, 0
      %s201 = scalar_select %p200, %s21, 0
      %s202 = smul.addr %s201, 4
      %s203 = scalar_lea.vmem %s1, %s202
      %p204 = pneg %p82
      %p205 = pneg %p79
      %p206 = scmp.lt.s32.totalorder %s21, 0
      %s207 = scalar_select %p206, %s21, 0
      %s208 = scalar_lea.vmem %s2, %s207
      %p209 = pneg %p108
      %p210 = pneg %p105
      %p211 = pneg %p138
      %p212 = pneg %p135
      %s213 = smul.u32 16, %s20
      %p214 = scmp.lt.s32.totalorder %s19, 1
      %s215 = scalar_select %p214, %s19, 1
      %p216 = scmp.lt.s32.totalorder %s213, 15
      %s217 = scalar_select %p216, %s213, 15
      %p218 = scmp.lt.s32.totalorder %s21, 0
      %s219 = scalar_select %p218, %s21, 0
      %s220 = smul.addr %s217, 2
      %s221 = sadd.s32 %s219, %s220
      %s222 = smul.addr %s215, 32
      %s223 = sadd.s32 %s221, %s222
      %s224 = smul.addr %s223, 8
      %s225 = scalar_lea.vmem %s3, %s224
      %p226 = scmp.lt.s32.totalorder %s19, 1
      %s227 = scalar_select %p226, %s19, 1
      %p228 = scmp.lt.s32.totalorder %s20, 0
      %s229 = scalar_select %p228, %s20, 0
      %s230 = smul.addr %s229, 54
      %s231 = smul.addr %s227, 54
      %s232 = sadd.s32 %s230, %s231
      %s233 = smul.addr %s232, 8
      %s234 = scalar_lea.vmem %s0, %s233
      %p235 = scmp.lt.s32.totalorder %s21, 0
      %s236 = scalar_select %p235, %s21, 0
      %s237 = smul.addr %s236, 4
      %s238 = scalar_lea.vmem %s1, %s237
      %p239 = scmp.lt.s32.totalorder %s21, 0
      %s240 = scalar_select %p239, %s21, 0
      %s241 = scalar_lea.vmem %s2, %s240
      %s242 = smul.u32 16, %s20
      %p243 = scmp.lt.s32.totalorder %s19, 1
      %s244 = scalar_select %p243, %s19, 1
      %p245 = scmp.lt.s32.totalorder %s242, 15
      %s246 = scalar_select %p245, %s242, 15
      %p247 = scmp.lt.s32.totalorder %s21, 0
      %s248 = scalar_select %p247, %s21, 0
      %s249 = smul.addr %s246, 2
      %s250 = sadd.s32 %s248, %s249
      %s251 = smul.addr %s244, 32
      %s252 = sadd.s32 %s250, %s251
      %s253 = smul.addr %s252, 8
      %s254 = scalar_lea.vmem %s3, %s253
      %s255 = smul.u32 16, %s20
      %v256 = vld [vmem:[%s241] sm:$0x1]
      %v258 = vlaneseq
      %v259 = vshrl.u32 %v258, 7
      %v260 = vsub.s32 0, %v259
      %v261 = vrot.slane %v256, %v260
      %v263 = vld [vmem:[%s234] sm:$0xff]
      %v264 = vld [vmem:[%s234 + $0x8] sm:$0xff]
      %v265 = vld [vmem:[%s234 + $0x10] sm:$0x3]
      %v266 = vld [vmem:[%s234 + $0x18] sm:$0xff]
      %v267 = vld [vmem:[%s234 + $0x20] sm:$0xff]
      %v268 = vld [vmem:[%s234 + $0x28] sm:$0x3]
      %v269 = vld [vmem:[%s234 + $0x30] sm:$0xff]
      %v270 = vld [vmem:[%s234 + $0x38] sm:$0xff]
      %v271 = vld [vmem:[%s234 + $0x40] sm:$0x3]
      %v272 = vld [vmem:[%s234 + $0x48] sm:$0xff]
      %v273 = vld [vmem:[%s234 + $0x50] sm:$0xff]
      %v274 = vld [vmem:[%s234 + $0x58] sm:$0x3]
      %v275 = vld [vmem:[%s234 + $0x60] sm:$0xff]
      %v276 = vld [vmem:[%s234 + $0x68] sm:$0xff]
      %v277 = vld [vmem:[%s234 + $0x70] sm:$0x3]
      %v278 = vld [vmem:[%s234 + $0x78] sm:$0xff]
      %v279 = vld [vmem:[%s234 + $0x80] sm:$0xff]
      %v280 = vld [vmem:[%s234 + $0x88] sm:$0x3]
      %v281 = vld [vmem:[%s234 + $0x90] sm:$0xff]
      %v282 = vld [vmem:[%s234 + $0x98] sm:$0xff]
      %v283 = vld [vmem:[%s234 + $0xa0] sm:$0x3]
      %v284 = vld [vmem:[%s234 + $0xa8] sm:$0xff]
      %v285 = vld [vmem:[%s234 + $0xb0] sm:$0xff]
      %v286 = vld [vmem:[%s234 + $0xb8] sm:$0x3]
      %v287 = vld [vmem:[%s234 + $0xc0] sm:$0xff]
      %v288 = vld [vmem:[%s234 + $0xc8] sm:$0xff]
      %v289 = vld [vmem:[%s234 + $0xd0] sm:$0x3]
      %v290 = vld [vmem:[%s234 + $0xd8] sm:$0xff]
      %v291 = vld [vmem:[%s234 + $0xe0] sm:$0xff]
      %v292 = vld [vmem:[%s234 + $0xe8] sm:$0x3]
      %v293 = vld [vmem:[%s234 + $0xf0] sm:$0xff]
      %v294 = vld [vmem:[%s234 + $0xf8] sm:$0xff]
      %v295 = vld [vmem:[%s234 + $0x100] sm:$0x3]
      %v296 = vld [vmem:[%s234 + $0x108] sm:$0xff]
      %v297 = vld [vmem:[%s234 + $0x110] sm:$0xff]
      %v298 = vld [vmem:[%s234 + $0x118] sm:$0x3]
      %v299 = vld [vmem:[%s234 + $0x120] sm:$0xff]
      %v300 = vld [vmem:[%s234 + $0x128] sm:$0xff]
      %v301 = vld [vmem:[%s234 + $0x130] sm:$0x3]
      %v302 = vld [vmem:[%s234 + $0x138] sm:$0xff]
      %v303 = vld [vmem:[%s234 + $0x140] sm:$0xff]
      %v304 = vld [vmem:[%s234 + $0x148] sm:$0x3]
      %v305 = vld [vmem:[%s234 + $0x150] sm:$0xff]
      %v306 = vld [vmem:[%s234 + $0x158] sm:$0xff]
      %v307 = vld [vmem:[%s234 + $0x160] sm:$0x3]
      %v308 = vld [vmem:[%s234 + $0x168] sm:$0xff]
      %v309 = vld [vmem:[%s234 + $0x170] sm:$0xff]
      %v310 = vld [vmem:[%s234 + $0x178] sm:$0x3]
      %v311 = vld [vmem:[%s238] sm:$0xf]
      %vm312 = vcmask 31744
      %v314 = vsel %vm312, %v263, 0
      %v317 = vsel %vm312, %v264, 0
      %v320 = vsel %vm312, %v266, 0
      %v323 = vsel %vm312, %v267, 0
      %v326 = vsel %vm312, %v269, 0
      %v329 = vsel %vm312, %v270, 0
      %v332 = vsel %vm312, %v272, 0
      %v335 = vsel %vm312, %v273, 0
      %v338 = vsel %vm312, %v275, 0
      %v341 = vsel %vm312, %v276, 0
      %v344 = vsel %vm312, %v278, 0
      %v347 = vsel %vm312, %v279, 0
      %v350 = vsel %vm312, %v281, 0
      %v353 = vsel %vm312, %v282, 0
      %v356 = vsel %vm312, %v284, 0
      %v359 = vsel %vm312, %v285, 0
      %v362 = vsel %vm312, %v287, 0
      %v365 = vsel %vm312, %v288, 0
      %v368 = vsel %vm312, %v290, 0
      %v371 = vsel %vm312, %v291, 0
      %v374 = vsel %vm312, %v293, 0
      %v377 = vsel %vm312, %v294, 0
      %v380 = vsel %vm312, %v296, 0
      %v383 = vsel %vm312, %v297, 0
      %v386 = vsel %vm312, %v299, 0
      %v389 = vsel %vm312, %v300, 0
      %v392 = vsel %vm312, %v302, 0
      %v395 = vsel %vm312, %v303, 0
      %v398 = vsel %vm312, %v305, 0
      %v401 = vsel %vm312, %v306, 0
      %v404 = vsel %vm312, %v308, 0
      %v407 = vsel %vm312, %v309, 0
      %vm409 = vcmask 1043456
      %v411 = vsel %vm409, %v311, 0
      %413 = vmatprep.subr.mxu0 0.0
      %414 = vmatpush1.msra.mxu0 0.0
      %415 = vmatprep.subr.mxu0 0.0
      %416 = vmatpush1.msra.mxu0 0.0
      %417 = vmatprep.subr.mxu0 0.0
      %418 = vmatpush1.msra.mxu0 0.0
      %419 = vmatprep.subr.mxu0 0.0
      %420 = vmatpush1.msra.mxu0 0.0
      %421 = vmatprep.subr.mxu0 0.0
      %422 = vmatpush1.msra.mxu0 0.0
      %423 = vmatprep.subr.mxu0 0.0
      %424 = vmatpush1.msra.mxu0 0.0
      %425 = vmatprep.subr.mxu0 0.0
      %426 = vmatpush1.msra.mxu0 0.0
      %427 = vmatprep.subr.mxu0 0.0
      %428 = vmatpush1.msra.mxu0 0.0
      %429 = vmatprep.subr.mxu0 0.0
      %430 = vmatpush1.msra.mxu0 0.0
      %431 = vmatprep.subr.mxu0 0.0
      %432 = vmatpush1.msra.mxu0 0.0
      %433 = vmatprep.subr.mxu0 0.0
      %434 = vmatpush1.msra.mxu0 0.0
      %435 = vmatprep.subr.mxu0 0.0
      %436 = vmatpush1.msra.mxu0 0.0
      %437 = vmatprep.subr.mxu0 0.0
      %438 = vmatpush1.msra.mxu0 0.0
      %439 = vmatprep.subr.mxu0 0.0
      %440 = vmatpush1.msra.mxu0 0.0
      %441 = vmatprep.subr.mxu0 0.0
      %442 = vmatpush1.msra.mxu0 0.0
      %443 = vmatprep.subr.mxu0 0.0
      %444 = vmatpush1.msra.mxu0 %v411
      %445 = vmatprep.subr.mxu0 0.0
      %446 = vmatpush2.msra.mxu0 0.0
      %447 = vmatprep.subr.mxu0 0.0
      %448 = vmatpush2.msra.mxu0 0.0
      %449 = vmatprep.subr.mxu0 0.0
      %450 = vmatpush2.msra.mxu0 0.0
      %451 = vmatprep.subr.mxu0 0.0
      %452 = vmatpush2.msra.mxu0 0.0
      %453 = vmatprep.subr.mxu0 0.0
      %454 = vmatpush2.msra.mxu0 0.0
      %455 = vmatprep.subr.mxu0 0.0
      %456 = vmatpush2.msra.mxu0 0.0
      %457 = vmatprep.subr.mxu0 0.0
      %458 = vmatpush2.msra.mxu0 0.0
      %459 = vmatprep.subr.mxu0 0.0
      %460 = vmatpush2.msra.mxu0 0.0
      %461 = vmatprep.subr.mxu0 0.0
      %462 = vmatpush2.msra.mxu0 0.0
      %463 = vmatprep.subr.mxu0 0.0
      %464 = vmatpush2.msra.mxu0 0.0
      %465 = vmatprep.subr.mxu0 0.0
      %466 = vmatpush2.msra.mxu0 0.0
      %467 = vmatprep.subr.mxu0 0.0
      %468 = vmatpush2.msra.mxu0 0.0
      %469 = vmatprep.subr.mxu0 0.0
      %470 = vmatpush2.msra.mxu0 0.0
      %471 = vmatprep.subr.mxu0 0.0
      %472 = vmatpush2.msra.mxu0 0.0
      %473 = vmatprep.subr.mxu0 0.0
      %474 = vmatpush2.msra.mxu0 0.0
      %475 = vmatprep.subr.mxu0 0.0
      %476 = vmatpush2.msra.mxu0 0.0
      %477 = vmatprep.mubr.f32.mxu0 0.0
      %478 = vmatmul.mubr.f32.gmra.mxu0 %v314
      %v479 = vpop.f32.mrf.mxu0
      %v480 = vadd.f32 0.0, %v479
      %v481 = vpop.f32.mrf.mxu0
      %482 = vmatprep.mubr.f32.mxu0 0.0
      %483 = vmatmul.mubr.f32.gmra.mxu0 %v317
      %v484 = vpop.f32.mrf.mxu0
      %v485 = vadd.f32 0.0, %v484
      %v486 = vpop.f32.mrf.mxu0
      %487 = vmatprep.mubr.f32.mxu0 0.0
      %488 = vmatmul.mubr.f32.gmra.mxu0 %v320
      %v489 = vpop.f32.mrf.mxu0
      %v490 = vadd.f32 0.0, %v489
      %v491 = vpop.f32.mrf.mxu0
      %492 = vmatprep.mubr.f32.mxu0 0.0
      %493 = vmatmul.mubr.f32.gmra.mxu0 %v323
      %v494 = vpop.f32.mrf.mxu0
      %v495 = vadd.f32 0.0, %v494
      %v496 = vpop.f32.mrf.mxu0
      %497 = vmatprep.mubr.f32.mxu0 0.0
      %498 = vmatmul.mubr.f32.gmra.mxu0 %v326
      %v499 = vpop.f32.mrf.mxu0
      %v500 = vadd.f32 0.0, %v499
      %v501 = vpop.f32.mrf.mxu0
      %502 = vmatprep.mubr.f32.mxu0 0.0
      %503 = vmatmul.mubr.f32.gmra.mxu0 %v329
      %v504 = vpop.f32.mrf.mxu0
      %v505 = vadd.f32 0.0, %v504
      %v506 = vpop.f32.mrf.mxu0
      %507 = vmatprep.mubr.f32.mxu0 0.0
      %508 = vmatmul.mubr.f32.gmra.mxu0 %v332
      %v509 = vpop.f32.mrf.mxu0
      %v510 = vadd.f32 0.0, %v509
      %v511 = vpop.f32.mrf.mxu0
      %512 = vmatprep.mubr.f32.mxu0 0.0
      %513 = vmatmul.mubr.f32.gmra.mxu0 %v335
      %v514 = vpop.f32.mrf.mxu0
      %v515 = vadd.f32 0.0, %v514
      %v516 = vpop.f32.mrf.mxu0
      %517 = vmatprep.mubr.f32.mxu0 0.0
      %518 = vmatmul.mubr.f32.gmra.mxu0 %v338
      %v519 = vpop.f32.mrf.mxu0
      %v520 = vadd.f32 0.0, %v519
      %v521 = vpop.f32.mrf.mxu0
      %522 = vmatprep.mubr.f32.mxu0 0.0
      %523 = vmatmul.mubr.f32.gmra.mxu0 %v341
      %v524 = vpop.f32.mrf.mxu0
      %v525 = vadd.f32 0.0, %v524
      %v526 = vpop.f32.mrf.mxu0
      %527 = vmatprep.mubr.f32.mxu0 0.0
      %528 = vmatmul.mubr.f32.gmra.mxu0 %v344
      %v529 = vpop.f32.mrf.mxu0
      %v530 = vadd.f32 0.0, %v529
      %v531 = vpop.f32.mrf.mxu0
      %532 = vmatprep.mubr.f32.mxu0 0.0
      %533 = vmatmul.mubr.f32.gmra.mxu0 %v347
      %v534 = vpop.f32.mrf.mxu0
      %v535 = vadd.f32 0.0, %v534
      %v536 = vpop.f32.mrf.mxu0
      %537 = vmatprep.mubr.f32.mxu0 0.0
      %538 = vmatmul.mubr.f32.gmra.mxu0 %v350
      %v539 = vpop.f32.mrf.mxu0
      %v540 = vadd.f32 0.0, %v539
      %v541 = vpop.f32.mrf.mxu0
      %542 = vmatprep.mubr.f32.mxu0 0.0
      %543 = vmatmul.mubr.f32.gmra.mxu0 %v353
      %v544 = vpop.f32.mrf.mxu0
      %v545 = vadd.f32 0.0, %v544
      %v546 = vpop.f32.mrf.mxu0
      %547 = vmatprep.mubr.f32.mxu0 0.0
      %548 = vmatmul.mubr.f32.gmra.mxu0 %v356
      %v549 = vpop.f32.mrf.mxu0
      %v550 = vadd.f32 0.0, %v549
      %v551 = vpop.f32.mrf.mxu0
      %552 = vmatprep.mubr.f32.mxu0 0.0
      %553 = vmatmul.mubr.f32.gmra.mxu0 %v359
      %v554 = vpop.f32.mrf.mxu0
      %v555 = vadd.f32 0.0, %v554
      %v556 = vpop.f32.mrf.mxu0
      %557 = vmatprep.mubr.f32.mxu0 0.0
      %558 = vmatmul.mubr.f32.gmra.mxu0 %v362
      %v559 = vpop.f32.mrf.mxu0
      %v560 = vadd.f32 0.0, %v559
      %v561 = vpop.f32.mrf.mxu0
      %562 = vmatprep.mubr.f32.mxu0 0.0
      %563 = vmatmul.mubr.f32.gmra.mxu0 %v365
      %v564 = vpop.f32.mrf.mxu0
      %v565 = vadd.f32 0.0, %v564
      %v566 = vpop.f32.mrf.mxu0
      %567 = vmatprep.mubr.f32.mxu0 0.0
      %568 = vmatmul.mubr.f32.gmra.mxu0 %v368
      %v569 = vpop.f32.mrf.mxu0
      %v570 = vadd.f32 0.0, %v569
      %v571 = vpop.f32.mrf.mxu0
      %572 = vmatprep.mubr.f32.mxu0 0.0
      %573 = vmatmul.mubr.f32.gmra.mxu0 %v371
      %v574 = vpop.f32.mrf.mxu0
      %v575 = vadd.f32 0.0, %v574
      %v576 = vpop.f32.mrf.mxu0
      %577 = vmatprep.mubr.f32.mxu0 0.0
      %578 = vmatmul.mubr.f32.gmra.mxu0 %v374
      %v579 = vpop.f32.mrf.mxu0
      %v580 = vadd.f32 0.0, %v579
      %v581 = vpop.f32.mrf.mxu0
      %582 = vmatprep.mubr.f32.mxu0 0.0
      %583 = vmatmul.mubr.f32.gmra.mxu0 %v377
      %v584 = vpop.f32.mrf.mxu0
      %v585 = vadd.f32 0.0, %v584
      %v586 = vpop.f32.mrf.mxu0
      %587 = vmatprep.mubr.f32.mxu0 0.0
      %588 = vmatmul.mubr.f32.gmra.mxu0 %v380
      %v589 = vpop.f32.mrf.mxu0
      %v590 = vadd.f32 0.0, %v589
      %v591 = vpop.f32.mrf.mxu0
      %592 = vmatprep.mubr.f32.mxu0 0.0
      %593 = vmatmul.mubr.f32.gmra.mxu0 %v383
      %v594 = vpop.f32.mrf.mxu0
      %v595 = vadd.f32 0.0, %v594
      %v596 = vpop.f32.mrf.mxu0
      %597 = vmatprep.mubr.f32.mxu0 0.0
      %598 = vmatmul.mubr.f32.gmra.mxu0 %v386
      %v599 = vpop.f32.mrf.mxu0
      %v600 = vadd.f32 0.0, %v599
      %v601 = vpop.f32.mrf.mxu0
      %602 = vmatprep.mubr.f32.mxu0 0.0
      %603 = vmatmul.mubr.f32.gmra.mxu0 %v389
      %v604 = vpop.f32.mrf.mxu0
      %v605 = vadd.f32 0.0, %v604
      %v606 = vpop.f32.mrf.mxu0
      %607 = vmatprep.mubr.f32.mxu0 0.0
      %608 = vmatmul.mubr.f32.gmra.mxu0 %v392
      %v609 = vpop.f32.mrf.mxu0
      %v610 = vadd.f32 0.0, %v609
      %v611 = vpop.f32.mrf.mxu0
      %612 = vmatprep.mubr.f32.mxu0 0.0
      %613 = vmatmul.mubr.f32.gmra.mxu0 %v395
      %v614 = vpop.f32.mrf.mxu0
      %v615 = vadd.f32 0.0, %v614
      %v616 = vpop.f32.mrf.mxu0
      %617 = vmatprep.mubr.f32.mxu0 0.0
      %618 = vmatmul.mubr.f32.gmra.mxu0 %v398
      %v619 = vpop.f32.mrf.mxu0
      %v620 = vadd.f32 0.0, %v619
      %v621 = vpop.f32.mrf.mxu0
      %622 = vmatprep.mubr.f32.mxu0 0.0
      %623 = vmatmul.mubr.f32.gmra.mxu0 %v401
      %v624 = vpop.f32.mrf.mxu0
      %v625 = vadd.f32 0.0, %v624
      %v626 = vpop.f32.mrf.mxu0
      %627 = vmatprep.mubr.f32.mxu0 0.0
      %628 = vmatmul.mubr.f32.gmra.mxu0 %v404
      %v629 = vpop.f32.mrf.mxu0
      %v630 = vadd.f32 0.0, %v629
      %v631 = vpop.f32.mrf.mxu0
      %632 = vmatprep.mubr.f32.mxu0 0.0
      %633 = vmatmul.mubr.f32.gmra.mxu0 %v407
      %v634 = vpop.f32.mrf.mxu0
      %v635 = vadd.f32 0.0, %v634
      %v636 = vpop.f32.mrf.mxu0
      %637 = vdwg.mxu0
      %v638 = vadd.f32 %v261, %v480
      %v639 = vadd.f32 %v261, %v485
      %v640 = vadd.f32 %v261, %v490
      %v641 = vadd.f32 %v261, %v495
      %v642 = vadd.f32 %v261, %v500
      %v643 = vadd.f32 %v261, %v505
      %v644 = vadd.f32 %v261, %v510
      %v645 = vadd.f32 %v261, %v515
      %v646 = vadd.f32 %v261, %v520
      %v647 = vadd.f32 %v261, %v525
      %v648 = vadd.f32 %v261, %v530
      %v649 = vadd.f32 %v261, %v535
      %v650 = vadd.f32 %v261, %v540
      %v651 = vadd.f32 %v261, %v545
      %v652 = vadd.f32 %v261, %v550
      %v653 = vadd.f32 %v261, %v555
      %v654 = vadd.f32 %v261, %v560
      %v655 = vadd.f32 %v261, %v565
      %v656 = vadd.f32 %v261, %v570
      %v657 = vadd.f32 %v261, %v575
      %v658 = vadd.f32 %v261, %v580
      %v659 = vadd.f32 %v261, %v585
      %v660 = vadd.f32 %v261, %v590
      %v661 = vadd.f32 %v261, %v595
      %v662 = vadd.f32 %v261, %v600
      %v663 = vadd.f32 %v261, %v605
      %v664 = vadd.f32 %v261, %v610
      %v665 = vadd.f32 %v261, %v615
      %v666 = vadd.f32 %v261, %v620
      %v667 = vadd.f32 %v261, %v625
      %v668 = vadd.f32 %v261, %v630
      %v669 = vadd.f32 %v261, %v635
      %s670 = scalar_lea.vmem %s238, 4
      %v671 = vld [vmem:[%s670] sm:$0xf]
      %vm688 = vcmask 1046528
      %v689 = vrot.slane %v263, 1
      %v690 = vrot.slane %v264, 1
      %v691 = vsel %vm688, %v689, %v690
      %v692 = vrot.slane %v265, 1
      %v693 = vsel %vm688, %v690, %v692
      %v694 = vrot.slane %v266, 1
      %v695 = vrot.slane %v267, 1
      %v696 = vsel %vm688, %v694, %v695
      %v697 = vrot.slane %v268, 1
      %v698 = vsel %vm688, %v695, %v697
      %v699 = vrot.slane %v269, 1
      %v700 = vrot.slane %v270, 1
      %v701 = vsel %vm688, %v699, %v700
      %v702 = vrot.slane %v271, 1
      %v703 = vsel %vm688, %v700, %v702
      %v704 = vrot.slane %v272, 1
      %v705 = vrot.slane %v273, 1
      %v706 = vsel %vm688, %v704, %v705
      %v707 = vrot.slane %v274, 1
      %v708 = vsel %vm688, %v705, %v707
      %v709 = vrot.slane %v275, 1
      %v710 = vrot.slane %v276, 1
      %v711 = vsel %vm688, %v709, %v710
      %v712 = vrot.slane %v277, 1
      %v713 = vsel %vm688, %v710, %v712
      %v714 = vrot.slane %v278, 1
      %v715 = vrot.slane %v279, 1
      %v716 = vsel %vm688, %v714, %v715
      %v717 = vrot.slane %v280, 1
      %v718 = vsel %vm688, %v715, %v717
      %v719 = vrot.slane %v281, 1
      %v720 = vrot.slane %v282, 1
      %v721 = vsel %vm688, %v719, %v720
      %v722 = vrot.slane %v283, 1
      %v723 = vsel %vm688, %v720, %v722
      %v724 = vrot.slane %v284, 1
      %v725 = vrot.slane %v285, 1
      %v726 = vsel %vm688, %v724, %v725
      %v727 = vrot.slane %v286, 1
      %v728 = vsel %vm688, %v725, %v727
      %v729 = vrot.slane %v287, 1
      %v730 = vrot.slane %v288, 1
      %v731 = vsel %vm688, %v729, %v730
      %v732 = vrot.slane %v289, 1
      %v733 = vsel %vm688, %v730, %v732
      %v734 = vrot.slane %v290, 1
      %v735 = vrot.slane %v291, 1
      %v736 = vsel %vm688, %v734, %v735
      %v737 = vrot.slane %v292, 1
      %v738 = vsel %vm688, %v735, %v737
      %v739 = vrot.slane %v293, 1
      %v740 = vrot.slane %v294, 1
      %v741 = vsel %vm688, %v739, %v740
      %v742 = vrot.slane %v295, 1
      %v743 = vsel %vm688, %v740, %v742
      %v744 = vrot.slane %v296, 1
      %v745 = vrot.slane %v297, 1
      %v746 = vsel %vm688, %v744, %v745
      %v747 = vrot.slane %v298, 1
      %v748 = vsel %vm688, %v745, %v747
      %v749 = vrot.slane %v299, 1
      %v750 = vrot.slane %v300, 1
      %v751 = vsel %vm688, %v749, %v750
      %v752 = vrot.slane %v301, 1
      %v753 = vsel %vm688, %v750, %v752
      %v754 = vrot.slane %v302, 1
      %v755 = vrot.slane %v303, 1
      %v756 = vsel %vm688, %v754, %v755
      %v757 = vrot.slane %v304, 1
      %v758 = vsel %vm688, %v755, %v757
      %v759 = vrot.slane %v305, 1
      %v760 = vrot.slane %v306, 1
      %v761 = vsel %vm688, %v759, %v760
      %v762 = vrot.slane %v307, 1
      %v763 = vsel %vm688, %v760, %v762
      %v764 = vrot.slane %v308, 1
      %v765 = vrot.slane %v309, 1
      %v766 = vsel %vm688, %v764, %v765
      %v767 = vrot.slane %v310, 1
      %v768 = vsel %vm688, %v765, %v767
      %v769 = vsel %vm312, %v691, 0
      %v771 = vsel %vm312, %v693, 0
      %v773 = vsel %vm312, %v696, 0
      %v775 = vsel %vm312, %v698, 0
      %v777 = vsel %vm312, %v701, 0
      %v779 = vsel %vm312, %v703, 0
      %v781 = vsel %vm312, %v706, 0
      %v783 = vsel %vm312, %v708, 0
      %v785 = vsel %vm312, %v711, 0
      %v787 = vsel %vm312, %v713, 0
      %v789 = vsel %vm312, %v716, 0
      %v791 = vsel %vm312, %v718, 0
      %v793 = vsel %vm312, %v721, 0
      %v795 = vsel %vm312, %v723, 0
      %v797 = vsel %vm312, %v726, 0
      %v799 = vsel %vm312, %v728, 0
      %v801 = vsel %vm312, %v731, 0
      %v803 = vsel %vm312, %v733, 0
      %v805 = vsel %vm312, %v736, 0
      %v807 = vsel %vm312, %v738, 0
      %v809 = vsel %vm312, %v741, 0
      %v811 = vsel %vm312, %v743, 0
      %v813 = vsel %vm312, %v746, 0
      %v815 = vsel %vm312, %v748, 0
      %v817 = vsel %vm312, %v751, 0
      %v819 = vsel %vm312, %v753, 0
      %v821 = vsel %vm312, %v756, 0
      %v823 = vsel %vm312, %v758, 0
      %v825 = vsel %vm312, %v761, 0
      %v827 = vsel %vm312, %v763, 0
      %v829 = vsel %vm312, %v766, 0
      %v831 = vsel %vm312, %v768, 0
      %v834 = vsel %vm409, %v671, 0
      %836 = vmatprep.subr.mxu0 0.0
      %837 = vmatpush1.msra.mxu0 0.0
      %838 = vmatprep.subr.mxu0 0.0
      %839 = vmatpush1.msra.mxu0 0.0
      %840 = vmatprep.subr.mxu0 0.0
      %841 = vmatpush1.msra.mxu0 0.0
      %842 = vmatprep.subr.mxu0 0.0
      %843 = vmatpush1.msra.mxu0 0.0
      %844 = vmatprep.subr.mxu0 0.0
      %845 = vmatpush1.msra.mxu0 0.0
      %846 = vmatprep.subr.mxu0 0.0
      %847 = vmatpush1.msra.mxu0 0.0
      %848 = vmatprep.subr.mxu0 0.0
      %849 = vmatpush1.msra.mxu0 0.0
      %850 = vmatprep.subr.mxu0 0.0
      %851 = vmatpush1.msra.mxu0 0.0
      %852 = vmatprep.subr.mxu0 0.0
      %853 = vmatpush1.msra.mxu0 0.0
      %854 = vmatprep.subr.mxu0 0.0
      %855 = vmatpush1.msra.mxu0 0.0
      %856 = vmatprep.subr.mxu0 0.0
      %857 = vmatpush1.msra.mxu0 0.0
      %858 = vmatprep.subr.mxu0 0.0
      %859 = vmatpush1.msra.mxu0 0.0
      %860 = vmatprep.subr.mxu0 0.0
      %861 = vmatpush1.msra.mxu0 0.0
      %862 = vmatprep.subr.mxu0 0.0
      %863 = vmatpush1.msra.mxu0 0.0
      %864 = vmatprep.subr.mxu0 0.0
      %865 = vmatpush1.msra.mxu0 0.0
      %866 = vmatprep.subr.mxu0 0.0
      %867 = vmatpush1.msra.mxu0 %v834
      %868 = vmatprep.subr.mxu0 0.0
      %869 = vmatpush2.msra.mxu0 0.0
      %870 = vmatprep.subr.mxu0 0.0
      %871 = vmatpush2.msra.mxu0 0.0
      %872 = vmatprep.subr.mxu0 0.0
      %873 = vmatpush2.msra.mxu0 0.0
      %874 = vmatprep.subr.mxu0 0.0
      %875 = vmatpush2.msra.mxu0 0.0
      %876 = vmatprep.subr.mxu0 0.0
      %877 = vmatpush2.msra.mxu0 0.0
      %878 = vmatprep.subr.mxu0 0.0
      %879 = vmatpush2.msra.mxu0 0.0
      %880 = vmatprep.subr.mxu0 0.0
      %881 = vmatpush2.msra.mxu0 0.0
      %882 = vmatprep.subr.mxu0 0.0
      %883 = vmatpush2.msra.mxu0 0.0
      %884 = vmatprep.subr.mxu0 0.0
      %885 = vmatpush2.msra.mxu0 0.0
      %886 = vmatprep.subr.mxu0 0.0
      %887 = vmatpush2.msra.mxu0 0.0
      %888 = vmatprep.subr.mxu0 0.0
      %889 = vmatpush2.msra.mxu0 0.0
      %890 = vmatprep.subr.mxu0 0.0
      %891 = vmatpush2.msra.mxu0 0.0
      %892 = vmatprep.subr.mxu0 0.0
      %893 = vmatpush2.msra.mxu0 0.0
      %894 = vmatprep.subr.mxu0 0.0
      %895 = vmatpush2.msra.mxu0 0.0
      %896 = vmatprep.subr.mxu0 0.0
      %897 = vmatpush2.msra.mxu0 0.0
      %898 = vmatprep.subr.mxu0 0.0
      %899 = vmatpush2.msra.mxu0 0.0
      %900 = vmatprep.mubr.f32.mxu0 0.0
      %901 = vmatmul.mubr.f32.gmra.mxu0 %v769
      %v902 = vpop.f32.mrf.mxu0
      %v903 = vadd.f32 0.0, %v902
      %v904 = vpop.f32.mrf.mxu0
      %905 = vmatprep.mubr.f32.mxu0 0.0
      %906 = vmatmul.mubr.f32.gmra.mxu0 %v771
      %v907 = vpop.f32.mrf.mxu0
      %v908 = vadd.f32 0.0, %v907
      %v909 = vpop.f32.mrf.mxu0
      %910 = vmatprep.mubr.f32.mxu0 0.0
      %911 = vmatmul.mubr.f32.gmra.mxu0 %v773
      %v912 = vpop.f32.mrf.mxu0
      %v913 = vadd.f32 0.0, %v912
      %v914 = vpop.f32.mrf.mxu0
      %915 = vmatprep.mubr.f32.mxu0 0.0
      %916 = vmatmul.mubr.f32.gmra.mxu0 %v775
      %v917 = vpop.f32.mrf.mxu0
      %v918 = vadd.f32 0.0, %v917
      %v919 = vpop.f32.mrf.mxu0
      %920 = vmatprep.mubr.f32.mxu0 0.0
      %921 = vmatmul.mubr.f32.gmra.mxu0 %v777
      %v922 = vpop.f32.mrf.mxu0
      %v923 = vadd.f32 0.0, %v922
      %v924 = vpop.f32.mrf.mxu0
      %925 = vmatprep.mubr.f32.mxu0 0.0
      %926 = vmatmul.mubr.f32.gmra.mxu0 %v779
      %v927 = vpop.f32.mrf.mxu0
      %v928 = vadd.f32 0.0, %v927
      %v929 = vpop.f32.mrf.mxu0
      %930 = vmatprep.mubr.f32.mxu0 0.0
      %931 = vmatmul.mubr.f32.gmra.mxu0 %v781
      %v932 = vpop.f32.mrf.mxu0
      %v933 = vadd.f32 0.0, %v932
      %v934 = vpop.f32.mrf.mxu0
      %935 = vmatprep.mubr.f32.mxu0 0.0
      %936 = vmatmul.mubr.f32.gmra.mxu0 %v783
      %v937 = vpop.f32.mrf.mxu0
      %v938 = vadd.f32 0.0, %v937
      %v939 = vpop.f32.mrf.mxu0
      %940 = vmatprep.mubr.f32.mxu0 0.0
      %941 = vmatmul.mubr.f32.gmra.mxu0 %v785
      %v942 = vpop.f32.mrf.mxu0
      %v943 = vadd.f32 0.0, %v942
      %v944 = vpop.f32.mrf.mxu0
      %945 = vmatprep.mubr.f32.mxu0 0.0
      %946 = vmatmul.mubr.f32.gmra.mxu0 %v787
      %v947 = vpop.f32.mrf.mxu0
      %v948 = vadd.f32 0.0, %v947
      %v949 = vpop.f32.mrf.mxu0
      %950 = vmatprep.mubr.f32.mxu0 0.0
      %951 = vmatmul.mubr.f32.gmra.mxu0 %v789
      %v952 = vpop.f32.mrf.mxu0
      %v953 = vadd.f32 0.0, %v952
      %v954 = vpop.f32.mrf.mxu0
      %955 = vmatprep.mubr.f32.mxu0 0.0
      %956 = vmatmul.mubr.f32.gmra.mxu0 %v791
      %v957 = vpop.f32.mrf.mxu0
      %v958 = vadd.f32 0.0, %v957
      %v959 = vpop.f32.mrf.mxu0
      %960 = vmatprep.mubr.f32.mxu0 0.0
      %961 = vmatmul.mubr.f32.gmra.mxu0 %v793
      %v962 = vpop.f32.mrf.mxu0
      %v963 = vadd.f32 0.0, %v962
      %v964 = vpop.f32.mrf.mxu0
      %965 = vmatprep.mubr.f32.mxu0 0.0
      %966 = vmatmul.mubr.f32.gmra.mxu0 %v795
      %v967 = vpop.f32.mrf.mxu0
      %v968 = vadd.f32 0.0, %v967
      %v969 = vpop.f32.mrf.mxu0
      %970 = vmatprep.mubr.f32.mxu0 0.0
      %971 = vmatmul.mubr.f32.gmra.mxu0 %v797
      %v972 = vpop.f32.mrf.mxu0
      %v973 = vadd.f32 0.0, %v972
      %v974 = vpop.f32.mrf.mxu0
      %975 = vmatprep.mubr.f32.mxu0 0.0
      %976 = vmatmul.mubr.f32.gmra.mxu0 %v799
      %v977 = vpop.f32.mrf.mxu0
      %v978 = vadd.f32 0.0, %v977
      %v979 = vpop.f32.mrf.mxu0
      %980 = vmatprep.mubr.f32.mxu0 0.0
      %981 = vmatmul.mubr.f32.gmra.mxu0 %v801
      %v982 = vpop.f32.mrf.mxu0
      %v983 = vadd.f32 0.0, %v982
      %v984 = vpop.f32.mrf.mxu0
      %985 = vmatprep.mubr.f32.mxu0 0.0
      %986 = vmatmul.mubr.f32.gmra.mxu0 %v803
      %v987 = vpop.f32.mrf.mxu0
      %v988 = vadd.f32 0.0, %v987
      %v989 = vpop.f32.mrf.mxu0
      %990 = vmatprep.mubr.f32.mxu0 0.0
      %991 = vmatmul.mubr.f32.gmra.mxu0 %v805
      %v992 = vpop.f32.mrf.mxu0
      %v993 = vadd.f32 0.0, %v992
      %v994 = vpop.f32.mrf.mxu0
      %995 = vmatprep.mubr.f32.mxu0 0.0
      %996 = vmatmul.mubr.f32.gmra.mxu0 %v807
      %v997 = vpop.f32.mrf.mxu0
      %v998 = vadd.f32 0.0, %v997
      %v999 = vpop.f32.mrf.mxu0
      %1000 = vmatprep.mubr.f32.mxu0 0.0
      %1001 = vmatmul.mubr.f32.gmra.mxu0 %v809
      %v1002 = vpop.f32.mrf.mxu0
      %v1003 = vadd.f32 0.0, %v1002
      %v1004 = vpop.f32.mrf.mxu0
      %1005 = vmatprep.mubr.f32.mxu0 0.0
      %1006 = vmatmul.mubr.f32.gmra.mxu0 %v811
      %v1007 = vpop.f32.mrf.mxu0
      %v1008 = vadd.f32 0.0, %v1007
      %v1009 = vpop.f32.mrf.mxu0
      %1010 = vmatprep.mubr.f32.mxu0 0.0
      %1011 = vmatmul.mubr.f32.gmra.mxu0 %v813
      %v1012 = vpop.f32.mrf.mxu0
      %v1013 = vadd.f32 0.0, %v1012
      %v1014 = vpop.f32.mrf.mxu0
      %1015 = vmatprep.mubr.f32.mxu0 0.0
      %1016 = vmatmul.mubr.f32.gmra.mxu0 %v815
      %v1017 = vpop.f32.mrf.mxu0
      %v1018 = vadd.f32 0.0, %v1017
      %v1019 = vpop.f32.mrf.mxu0
      %1020 = vmatprep.mubr.f32.mxu0 0.0
      %1021 = vmatmul.mubr.f32.gmra.mxu0 %v817
      %v1022 = vpop.f32.mrf.mxu0
      %v1023 = vadd.f32 0.0, %v1022
      %v1024 = vpop.f32.mrf.mxu0
      %1025 = vmatprep.mubr.f32.mxu0 0.0
      %1026 = vmatmul.mubr.f32.gmra.mxu0 %v819
      %v1027 = vpop.f32.mrf.mxu0
      %v1028 = vadd.f32 0.0, %v1027
      %v1029 = vpop.f32.mrf.mxu0
      %1030 = vmatprep.mubr.f32.mxu0 0.0
      %1031 = vmatmul.mubr.f32.gmra.mxu0 %v821
      %v1032 = vpop.f32.mrf.mxu0
      %v1033 = vadd.f32 0.0, %v1032
      %v1034 = vpop.f32.mrf.mxu0
      %1035 = vmatprep.mubr.f32.mxu0 0.0
      %1036 = vmatmul.mubr.f32.gmra.mxu0 %v823
      %v1037 = vpop.f32.mrf.mxu0
      %v1038 = vadd.f32 0.0, %v1037
      %v1039 = vpop.f32.mrf.mxu0
      %1040 = vmatprep.mubr.f32.mxu0 0.0
      %1041 = vmatmul.mubr.f32.gmra.mxu0 %v825
      %v1042 = vpop.f32.mrf.mxu0
      %v1043 = vadd.f32 0.0, %v1042
      %v1044 = vpop.f32.mrf.mxu0
      %1045 = vmatprep.mubr.f32.mxu0 0.0
      %1046 = vmatmul.mubr.f32.gmra.mxu0 %v827
      %v1047 = vpop.f32.mrf.mxu0
      %v1048 = vadd.f32 0.0, %v1047
      %v1049 = vpop.f32.mrf.mxu0
      %1050 = vmatprep.mubr.f32.mxu0 0.0
      %1051 = vmatmul.mubr.f32.gmra.mxu0 %v829
      %v1052 = vpop.f32.mrf.mxu0
      %v1053 = vadd.f32 0.0, %v1052
      %v1054 = vpop.f32.mrf.mxu0
      %1055 = vmatprep.mubr.f32.mxu0 0.0
      %1056 = vmatmul.mubr.f32.gmra.mxu0 %v831
      %v1057 = vpop.f32.mrf.mxu0
      %v1058 = vadd.f32 0.0, %v1057
      %v1059 = vpop.f32.mrf.mxu0
      %1060 = vdwg.mxu0
      %v1061 = vadd.f32 %v638, %v903
      %v1062 = vadd.f32 %v639, %v908
      %v1063 = vadd.f32 %v640, %v913
      %v1064 = vadd.f32 %v641, %v918
      %v1065 = vadd.f32 %v642, %v923
      %v1066 = vadd.f32 %v643, %v928
      %v1067 = vadd.f32 %v644, %v933
      %v1068 = vadd.f32 %v645, %v938
      %v1069 = vadd.f32 %v646, %v943
      %v1070 = vadd.f32 %v647, %v948
      %v1071 = vadd.f32 %v648, %v953
      %v1072 = vadd.f32 %v649, %v958
      %v1073 = vadd.f32 %v650, %v963
      %v1074 = vadd.f32 %v651, %v968
      %v1075 = vadd.f32 %v652, %v973
      %v1076 = vadd.f32 %v653, %v978
      %v1077 = vadd.f32 %v654, %v983
      %v1078 = vadd.f32 %v655, %v988
      %v1079 = vadd.f32 %v656, %v993
      %v1080 = vadd.f32 %v657, %v998
      %v1081 = vadd.f32 %v658, %v1003
      %v1082 = vadd.f32 %v659, %v1008
      %v1083 = vadd.f32 %v660, %v1013
      %v1084 = vadd.f32 %v661, %v1018
      %v1085 = vadd.f32 %v662, %v1023
      %v1086 = vadd.f32 %v663, %v1028
      %v1087 = vadd.f32 %v664, %v1033
      %v1088 = vadd.f32 %v665, %v1038
      %v1089 = vadd.f32 %v666, %v1043
      %v1090 = vadd.f32 %v667, %v1048
      %v1091 = vadd.f32 %v668, %v1053
      %v1092 = vadd.f32 %v669, %v1058
      %s1093 = scalar_lea.vmem %s238, 8
      %v1094 = vld [vmem:[%s1093] sm:$0xf]
      %vm1095 = vcmask 1045504
      %v1096 = vrot.slane %v263, 2
      %v1097 = vrot.slane %v264, 2
      %v1098 = vsel %vm1095, %v1096, %v1097
      %v1099 = vrot.slane %v265, 2
      %v1100 = vsel %vm1095, %v1097, %v1099
      %v1101 = vrot.slane %v266, 2
      %v1102 = vrot.slane %v267, 2
      %v1103 = vsel %vm1095, %v1101, %v1102
      %v1104 = vrot.slane %v268, 2
      %v1105 = vsel %vm1095, %v1102, %v1104
      %v1106 = vrot.slane %v269, 2
      %v1107 = vrot.slane %v270, 2
      %v1108 = vsel %vm1095, %v1106, %v1107
      %v1109 = vrot.slane %v271, 2
      %v1110 = vsel %vm1095, %v1107, %v1109
      %v1111 = vrot.slane %v272, 2
      %v1112 = vrot.slane %v273, 2
      %v1113 = vsel %vm1095, %v1111, %v1112
      %v1114 = vrot.slane %v274, 2
      %v1115 = vsel %vm1095, %v1112, %v1114
      %v1116 = vrot.slane %v275, 2
      %v1117 = vrot.slane %v276, 2
      %v1118 = vsel %vm1095, %v1116, %v1117
      %v1119 = vrot.slane %v277, 2
      %v1120 = vsel %vm1095, %v1117, %v1119
      %v1121 = vrot.slane %v278, 2
      %v1122 = vrot.slane %v279, 2
      %v1123 = vsel %vm1095, %v1121, %v1122
      %v1124 = vrot.slane %v280, 2
      %v1125 = vsel %vm1095, %v1122, %v1124
      %v1126 = vrot.slane %v281, 2
      %v1127 = vrot.slane %v282, 2
      %v1128 = vsel %vm1095, %v1126, %v1127
      %v1129 = vrot.slane %v283, 2
      %v1130 = vsel %vm1095, %v1127, %v1129
      %v1131 = vrot.slane %v284, 2
      %v1132 = vrot.slane %v285, 2
      %v1133 = vsel %vm1095, %v1131, %v1132
      %v1134 = vrot.slane %v286, 2
      %v1135 = vsel %vm1095, %v1132, %v1134
      %v1136 = vrot.slane %v287, 2
      %v1137 = vrot.slane %v288, 2
      %v1138 = vsel %vm1095, %v1136, %v1137
      %v1139 = vrot.slane %v289, 2
      %v1140 = vsel %vm1095, %v1137, %v1139
      %v1141 = vrot.slane %v290, 2
      %v1142 = vrot.slane %v291, 2
      %v1143 = vsel %vm1095, %v1141, %v1142
      %v1144 = vrot.slane %v292, 2
      %v1145 = vsel %vm1095, %v1142, %v1144
      %v1146 = vrot.slane %v293, 2
      %v1147 = vrot.slane %v294, 2
      %v1148 = vsel %vm1095, %v1146, %v1147
      %v1149 = vrot.slane %v295, 2
      %v1150 = vsel %vm1095, %v1147, %v1149
      %v1151 = vrot.slane %v296, 2
      %v1152 = vrot.slane %v297, 2
      %v1153 = vsel %vm1095, %v1151, %v1152
      %v1154 = vrot.slane %v298, 2
      %v1155 = vsel %vm1095, %v1152, %v1154
      %v1156 = vrot.slane %v299, 2
      %v1157 = vrot.slane %v300, 2
      %v1158 = vsel %vm1095, %v1156, %v1157
      %v1159 = vrot.slane %v301, 2
      %v1160 = vsel %vm1095, %v1157, %v1159
      %v1161 = vrot.slane %v302, 2
      %v1162 = vrot.slane %v303, 2
      %v1163 = vsel %vm1095, %v1161, %v1162
      %v1164 = vrot.slane %v304, 2
      %v1165 = vsel %vm1095, %v1162, %v1164
      %v1166 = vrot.slane %v305, 2
      %v1167 = vrot.slane %v306, 2
      %v1168 = vsel %vm1095, %v1166, %v1167
      %v1169 = vrot.slane %v307, 2
      %v1170 = vsel %vm1095, %v1167, %v1169
      %v1171 = vrot.slane %v308, 2
      %v1172 = vrot.slane %v309, 2
      %v1173 = vsel %vm1095, %v1171, %v1172
      %v1174 = vrot.slane %v310, 2
      %v1175 = vsel %vm1095, %v1172, %v1174
      %v1176 = vsel %vm312, %v1098, 0
      %v1178 = vsel %vm312, %v1100, 0
      %v1180 = vsel %vm312, %v1103, 0
      %v1182 = vsel %vm312, %v1105, 0
      %v1184 = vsel %vm312, %v1108, 0
      %v1186 = vsel %vm312, %v1110, 0
      %v1188 = vsel %vm312, %v1113, 0
      %v1190 = vsel %vm312, %v1115, 0
      %v1192 = vsel %vm312, %v1118, 0
      %v1194 = vsel %vm312, %v1120, 0
      %v1196 = vsel %vm312, %v1123, 0
      %v1198 = vsel %vm312, %v1125, 0
      %v1200 = vsel %vm312, %v1128, 0
      %v1202 = vsel %vm312, %v1130, 0
      %v1204 = vsel %vm312, %v1133, 0
      %v1206 = vsel %vm312, %v1135, 0
      %v1208 = vsel %vm312, %v1138, 0
      %v1210 = vsel %vm312, %v1140, 0
      %v1212 = vsel %vm312, %v1143, 0
      %v1214 = vsel %vm312, %v1145, 0
      %v1216 = vsel %vm312, %v1148, 0
      %v1218 = vsel %vm312, %v1150, 0
      %v1220 = vsel %vm312, %v1153, 0
      %v1222 = vsel %vm312, %v1155, 0
      %v1224 = vsel %vm312, %v1158, 0
      %v1226 = vsel %vm312, %v1160, 0
      %v1228 = vsel %vm312, %v1163, 0
      %v1230 = vsel %vm312, %v1165, 0
      %v1232 = vsel %vm312, %v1168, 0
      %v1234 = vsel %vm312, %v1170, 0
      %v1236 = vsel %vm312, %v1173, 0
      %v1238 = vsel %vm312, %v1175, 0
      %v1241 = vsel %vm409, %v1094, 0
      %1243 = vmatprep.subr.mxu0 0.0
      %1244 = vmatpush1.msra.mxu0 0.0
      %1245 = vmatprep.subr.mxu0 0.0
      %1246 = vmatpush1.msra.mxu0 0.0
      %1247 = vmatprep.subr.mxu0 0.0
      %1248 = vmatpush1.msra.mxu0 0.0
      %1249 = vmatprep.subr.mxu0 0.0
      %1250 = vmatpush1.msra.mxu0 0.0
      %1251 = vmatprep.subr.mxu0 0.0
      %1252 = vmatpush1.msra.mxu0 0.0
      %1253 = vmatprep.subr.mxu0 0.0
      %1254 = vmatpush1.msra.mxu0 0.0
      %1255 = vmatprep.subr.mxu0 0.0
      %1256 = vmatpush1.msra.mxu0 0.0
      %1257 = vmatprep.subr.mxu0 0.0
      %1258 = vmatpush1.msra.mxu0 0.0
      %1259 = vmatprep.subr.mxu0 0.0
      %1260 = vmatpush1.msra.mxu0 0.0
      %1261 = vmatprep.subr.mxu0 0.0
      %1262 = vmatpush1.msra.mxu0 0.0
      %1263 = vmatprep.subr.mxu0 0.0
      %1264 = vmatpush1.msra.mxu0 0.0
      %1265 = vmatprep.subr.mxu0 0.0
      %1266 = vmatpush1.msra.mxu0 0.0
      %1267 = vmatprep.subr.mxu0 0.0
      %1268 = vmatpush1.msra.mxu0 0.0
      %1269 = vmatprep.subr.mxu0 0.0
      %1270 = vmatpush1.msra.mxu0 0.0
      %1271 = vmatprep.subr.mxu0 0.0
      %1272 = vmatpush1.msra.mxu0 0.0
      %1273 = vmatprep.subr.mxu0 0.0
      %1274 = vmatpush1.msra.mxu0 %v1241
      %1275 = vmatprep.subr.mxu0 0.0
      %1276 = vmatpush2.msra.mxu0 0.0
      %1277 = vmatprep.subr.mxu0 0.0
      %1278 = vmatpush2.msra.mxu0 0.0
      %1279 = vmatprep.subr.mxu0 0.0
      %1280 = vmatpush2.msra.mxu0 0.0
      %1281 = vmatprep.subr.mxu0 0.0
      %1282 = vmatpush2.msra.mxu0 0.0
      %1283 = vmatprep.subr.mxu0 0.0
      %1284 = vmatpush2.msra.mxu0 0.0
      %1285 = vmatprep.subr.mxu0 0.0
      %1286 = vmatpush2.msra.mxu0 0.0
      %1287 = vmatprep.subr.mxu0 0.0
      %1288 = vmatpush2.msra.mxu0 0.0
      %1289 = vmatprep.subr.mxu0 0.0
      %1290 = vmatpush2.msra.mxu0 0.0
      %1291 = vmatprep.subr.mxu0 0.0
      %1292 = vmatpush2.msra.mxu0 0.0
      %1293 = vmatprep.subr.mxu0 0.0
      %1294 = vmatpush2.msra.mxu0 0.0
      %1295 = vmatprep.subr.mxu0 0.0
      %1296 = vmatpush2.msra.mxu0 0.0
      %1297 = vmatprep.subr.mxu0 0.0
      %1298 = vmatpush2.msra.mxu0 0.0
      %1299 = vmatprep.subr.mxu0 0.0
      %1300 = vmatpush2.msra.mxu0 0.0
      %1301 = vmatprep.subr.mxu0 0.0
      %1302 = vmatpush2.msra.mxu0 0.0
      %1303 = vmatprep.subr.mxu0 0.0
      %1304 = vmatpush2.msra.mxu0 0.0
      %1305 = vmatprep.subr.mxu0 0.0
      %1306 = vmatpush2.msra.mxu0 0.0
      %1307 = vmatprep.mubr.f32.mxu0 0.0
      %1308 = vmatmul.mubr.f32.gmra.mxu0 %v1176
      %v1309 = vpop.f32.mrf.mxu0
      %v1310 = vadd.f32 0.0, %v1309
      %v1311 = vpop.f32.mrf.mxu0
      %1312 = vmatprep.mubr.f32.mxu0 0.0
      %1313 = vmatmul.mubr.f32.gmra.mxu0 %v1178
      %v1314 = vpop.f32.mrf.mxu0
      %v1315 = vadd.f32 0.0, %v1314
      %v1316 = vpop.f32.mrf.mxu0
      %1317 = vmatprep.mubr.f32.mxu0 0.0
      %1318 = vmatmul.mubr.f32.gmra.mxu0 %v1180
      %v1319 = vpop.f32.mrf.mxu0
      %v1320 = vadd.f32 0.0, %v1319
      %v1321 = vpop.f32.mrf.mxu0
      %1322 = vmatprep.mubr.f32.mxu0 0.0
      %1323 = vmatmul.mubr.f32.gmra.mxu0 %v1182
      %v1324 = vpop.f32.mrf.mxu0
      %v1325 = vadd.f32 0.0, %v1324
      %v1326 = vpop.f32.mrf.mxu0
      %1327 = vmatprep.mubr.f32.mxu0 0.0
      %1328 = vmatmul.mubr.f32.gmra.mxu0 %v1184
      %v1329 = vpop.f32.mrf.mxu0
      %v1330 = vadd.f32 0.0, %v1329
      %v1331 = vpop.f32.mrf.mxu0
      %1332 = vmatprep.mubr.f32.mxu0 0.0
      %1333 = vmatmul.mubr.f32.gmra.mxu0 %v1186
      %v1334 = vpop.f32.mrf.mxu0
      %v1335 = vadd.f32 0.0, %v1334
      %v1336 = vpop.f32.mrf.mxu0
      %1337 = vmatprep.mubr.f32.mxu0 0.0
      %1338 = vmatmul.mubr.f32.gmra.mxu0 %v1188
      %v1339 = vpop.f32.mrf.mxu0
      %v1340 = vadd.f32 0.0, %v1339
      %v1341 = vpop.f32.mrf.mxu0
      %1342 = vmatprep.mubr.f32.mxu0 0.0
      %1343 = vmatmul.mubr.f32.gmra.mxu0 %v1190
      %v1344 = vpop.f32.mrf.mxu0
      %v1345 = vadd.f32 0.0, %v1344
      %v1346 = vpop.f32.mrf.mxu0
      %1347 = vmatprep.mubr.f32.mxu0 0.0
      %1348 = vmatmul.mubr.f32.gmra.mxu0 %v1192
      %v1349 = vpop.f32.mrf.mxu0
      %v1350 = vadd.f32 0.0, %v1349
      %v1351 = vpop.f32.mrf.mxu0
      %1352 = vmatprep.mubr.f32.mxu0 0.0
      %1353 = vmatmul.mubr.f32.gmra.mxu0 %v1194
      %v1354 = vpop.f32.mrf.mxu0
      %v1355 = vadd.f32 0.0, %v1354
      %v1356 = vpop.f32.mrf.mxu0
      %1357 = vmatprep.mubr.f32.mxu0 0.0
      %1358 = vmatmul.mubr.f32.gmra.mxu0 %v1196
      %v1359 = vpop.f32.mrf.mxu0
      %v1360 = vadd.f32 0.0, %v1359
      %v1361 = vpop.f32.mrf.mxu0
      %1362 = vmatprep.mubr.f32.mxu0 0.0
      %1363 = vmatmul.mubr.f32.gmra.mxu0 %v1198
      %v1364 = vpop.f32.mrf.mxu0
      %v1365 = vadd.f32 0.0, %v1364
      %v1366 = vpop.f32.mrf.mxu0
      %1367 = vmatprep.mubr.f32.mxu0 0.0
      %1368 = vmatmul.mubr.f32.gmra.mxu0 %v1200
      %v1369 = vpop.f32.mrf.mxu0
      %v1370 = vadd.f32 0.0, %v1369
      %v1371 = vpop.f32.mrf.mxu0
      %1372 = vmatprep.mubr.f32.mxu0 0.0
      %1373 = vmatmul.mubr.f32.gmra.mxu0 %v1202
      %v1374 = vpop.f32.mrf.mxu0
      %v1375 = vadd.f32 0.0, %v1374
      %v1376 = vpop.f32.mrf.mxu0
      %1377 = vmatprep.mubr.f32.mxu0 0.0
      %1378 = vmatmul.mubr.f32.gmra.mxu0 %v1204
      %v1379 = vpop.f32.mrf.mxu0
      %v1380 = vadd.f32 0.0, %v1379
      %v1381 = vpop.f32.mrf.mxu0
      %1382 = vmatprep.mubr.f32.mxu0 0.0
      %1383 = vmatmul.mubr.f32.gmra.mxu0 %v1206
      %v1384 = vpop.f32.mrf.mxu0
      %v1385 = vadd.f32 0.0, %v1384
      %v1386 = vpop.f32.mrf.mxu0
      %1387 = vmatprep.mubr.f32.mxu0 0.0
      %1388 = vmatmul.mubr.f32.gmra.mxu0 %v1208
      %v1389 = vpop.f32.mrf.mxu0
      %v1390 = vadd.f32 0.0, %v1389
      %v1391 = vpop.f32.mrf.mxu0
      %1392 = vmatprep.mubr.f32.mxu0 0.0
      %1393 = vmatmul.mubr.f32.gmra.mxu0 %v1210
      %v1394 = vpop.f32.mrf.mxu0
      %v1395 = vadd.f32 0.0, %v1394
      %v1396 = vpop.f32.mrf.mxu0
      %1397 = vmatprep.mubr.f32.mxu0 0.0
      %1398 = vmatmul.mubr.f32.gmra.mxu0 %v1212
      %v1399 = vpop.f32.mrf.mxu0
      %v1400 = vadd.f32 0.0, %v1399
      %v1401 = vpop.f32.mrf.mxu0
      %1402 = vmatprep.mubr.f32.mxu0 0.0
      %1403 = vmatmul.mubr.f32.gmra.mxu0 %v1214
      %v1404 = vpop.f32.mrf.mxu0
      %v1405 = vadd.f32 0.0, %v1404
      %v1406 = vpop.f32.mrf.mxu0
      %1407 = vmatprep.mubr.f32.mxu0 0.0
      %1408 = vmatmul.mubr.f32.gmra.mxu0 %v1216
      %v1409 = vpop.f32.mrf.mxu0
      %v1410 = vadd.f32 0.0, %v1409
      %v1411 = vpop.f32.mrf.mxu0
      %1412 = vmatprep.mubr.f32.mxu0 0.0
      %1413 = vmatmul.mubr.f32.gmra.mxu0 %v1218
      %v1414 = vpop.f32.mrf.mxu0
      %v1415 = vadd.f32 0.0, %v1414
      %v1416 = vpop.f32.mrf.mxu0
      %1417 = vmatprep.mubr.f32.mxu0 0.0
      %1418 = vmatmul.mubr.f32.gmra.mxu0 %v1220
      %v1419 = vpop.f32.mrf.mxu0
      %v1420 = vadd.f32 0.0, %v1419
      %v1421 = vpop.f32.mrf.mxu0
      %1422 = vmatprep.mubr.f32.mxu0 0.0
      %1423 = vmatmul.mubr.f32.gmra.mxu0 %v1222
      %v1424 = vpop.f32.mrf.mxu0
      %v1425 = vadd.f32 0.0, %v1424
      %v1426 = vpop.f32.mrf.mxu0
      %1427 = vmatprep.mubr.f32.mxu0 0.0
      %1428 = vmatmul.mubr.f32.gmra.mxu0 %v1224
      %v1429 = vpop.f32.mrf.mxu0
      %v1430 = vadd.f32 0.0, %v1429
      %v1431 = vpop.f32.mrf.mxu0
      %1432 = vmatprep.mubr.f32.mxu0 0.0
      %1433 = vmatmul.mubr.f32.gmra.mxu0 %v1226
      %v1434 = vpop.f32.mrf.mxu0
      %v1435 = vadd.f32 0.0, %v1434
      %v1436 = vpop.f32.mrf.mxu0
      %1437 = vmatprep.mubr.f32.mxu0 0.0
      %1438 = vmatmul.mubr.f32.gmra.mxu0 %v1228
      %v1439 = vpop.f32.mrf.mxu0
      %v1440 = vadd.f32 0.0, %v1439
      %v1441 = vpop.f32.mrf.mxu0
      %1442 = vmatprep.mubr.f32.mxu0 0.0
      %1443 = vmatmul.mubr.f32.gmra.mxu0 %v1230
      %v1444 = vpop.f32.mrf.mxu0
      %v1445 = vadd.f32 0.0, %v1444
      %v1446 = vpop.f32.mrf.mxu0
      %1447 = vmatprep.mubr.f32.mxu0 0.0
      %1448 = vmatmul.mubr.f32.gmra.mxu0 %v1232
      %v1449 = vpop.f32.mrf.mxu0
      %v1450 = vadd.f32 0.0, %v1449
      %v1451 = vpop.f32.mrf.mxu0
      %1452 = vmatprep.mubr.f32.mxu0 0.0
      %1453 = vmatmul.mubr.f32.gmra.mxu0 %v1234
      %v1454 = vpop.f32.mrf.mxu0
      %v1455 = vadd.f32 0.0, %v1454
      %v1456 = vpop.f32.mrf.mxu0
      %1457 = vmatprep.mubr.f32.mxu0 0.0
      %1458 = vmatmul.mubr.f32.gmra.mxu0 %v1236
      %v1459 = vpop.f32.mrf.mxu0
      %v1460 = vadd.f32 0.0, %v1459
      %v1461 = vpop.f32.mrf.mxu0
      %1462 = vmatprep.mubr.f32.mxu0 0.0
      %1463 = vmatmul.mubr.f32.gmra.mxu0 %v1238
      %v1464 = vpop.f32.mrf.mxu0
      %v1465 = vadd.f32 0.0, %v1464
      %v1466 = vpop.f32.mrf.mxu0
      %1467 = vdwg.mxu0
      %v1468 = vadd.f32 %v1061, %v1310
      %v1469 = vadd.f32 %v1062, %v1315
      %v1470 = vadd.f32 %v1063, %v1320
      %v1471 = vadd.f32 %v1064, %v1325
      %v1472 = vadd.f32 %v1065, %v1330
      %v1473 = vadd.f32 %v1066, %v1335
      %v1474 = vadd.f32 %v1067, %v1340
      %v1475 = vadd.f32 %v1068, %v1345
      %v1476 = vadd.f32 %v1069, %v1350
      %v1477 = vadd.f32 %v1070, %v1355
      %v1478 = vadd.f32 %v1071, %v1360
      %v1479 = vadd.f32 %v1072, %v1365
      %v1480 = vadd.f32 %v1073, %v1370
      %v1481 = vadd.f32 %v1074, %v1375
      %v1482 = vadd.f32 %v1075, %v1380
      %v1483 = vadd.f32 %v1076, %v1385
      %v1484 = vadd.f32 %v1077, %v1390
      %v1485 = vadd.f32 %v1078, %v1395
      %v1486 = vadd.f32 %v1079, %v1400
      %v1487 = vadd.f32 %v1080, %v1405
      %v1488 = vadd.f32 %v1081, %v1410
      %v1489 = vadd.f32 %v1082, %v1415
      %v1490 = vadd.f32 %v1083, %v1420
      %v1491 = vadd.f32 %v1084, %v1425
      %v1492 = vadd.f32 %v1085, %v1430
      %v1493 = vadd.f32 %v1086, %v1435
      %v1494 = vadd.f32 %v1087, %v1440
      %v1495 = vadd.f32 %v1088, %v1445
      %v1496 = vadd.f32 %v1089, %v1450
      %v1497 = vadd.f32 %v1090, %v1455
      %v1498 = vadd.f32 %v1091, %v1460
      %v1499 = vadd.f32 %v1092, %v1465
      %s1500 = scalar_lea.vmem %s234, 24
      %v1501 = vld [vmem:[%s1500] sm:$0xff]
      %v1502 = vld [vmem:[%s1500 + $0x8] sm:$0xff]
      %v1503 = vld [vmem:[%s1500 + $0x10] sm:$0x3]
      %v1504 = vld [vmem:[%s1500 + $0x18] sm:$0xff]
      %v1505 = vld [vmem:[%s1500 + $0x20] sm:$0xff]
      %v1506 = vld [vmem:[%s1500 + $0x28] sm:$0x3]
      %v1507 = vld [vmem:[%s1500 + $0x30] sm:$0xff]
      %v1508 = vld [vmem:[%s1500 + $0x38] sm:$0xff]
      %v1509 = vld [vmem:[%s1500 + $0x40] sm:$0x3]
      %v1510 = vld [vmem:[%s1500 + $0x48] sm:$0xff]
      %v1511 = vld [vmem:[%s1500 + $0x50] sm:$0xff]
      %v1512 = vld [vmem:[%s1500 + $0x58] sm:$0x3]
      %v1513 = vld [vmem:[%s1500 + $0x60] sm:$0xff]
      %v1514 = vld [vmem:[%s1500 + $0x68] sm:$0xff]
      %v1515 = vld [vmem:[%s1500 + $0x70] sm:$0x3]
      %v1516 = vld [vmem:[%s1500 + $0x78] sm:$0xff]
      %v1517 = vld [vmem:[%s1500 + $0x80] sm:$0xff]
      %v1518 = vld [vmem:[%s1500 + $0x88] sm:$0x3]
      %v1519 = vld [vmem:[%s1500 + $0x90] sm:$0xff]
      %v1520 = vld [vmem:[%s1500 + $0x98] sm:$0xff]
      %v1521 = vld [vmem:[%s1500 + $0xa0] sm:$0x3]
      %v1522 = vld [vmem:[%s1500 + $0xa8] sm:$0xff]
      %v1523 = vld [vmem:[%s1500 + $0xb0] sm:$0xff]
      %v1524 = vld [vmem:[%s1500 + $0xb8] sm:$0x3]
      %v1525 = vld [vmem:[%s1500 + $0xc0] sm:$0xff]
      %v1526 = vld [vmem:[%s1500 + $0xc8] sm:$0xff]
      %v1527 = vld [vmem:[%s1500 + $0xd0] sm:$0x3]
      %v1528 = vld [vmem:[%s1500 + $0xd8] sm:$0xff]
      %v1529 = vld [vmem:[%s1500 + $0xe0] sm:$0xff]
      %v1530 = vld [vmem:[%s1500 + $0xe8] sm:$0x3]
      %v1531 = vld [vmem:[%s1500 + $0xf0] sm:$0xff]
      %v1532 = vld [vmem:[%s1500 + $0xf8] sm:$0xff]
      %v1533 = vld [vmem:[%s1500 + $0x100] sm:$0x3]
      %v1534 = vld [vmem:[%s1500 + $0x108] sm:$0xff]
      %v1535 = vld [vmem:[%s1500 + $0x110] sm:$0xff]
      %v1536 = vld [vmem:[%s1500 + $0x118] sm:$0x3]
      %v1537 = vld [vmem:[%s1500 + $0x120] sm:$0xff]
      %v1538 = vld [vmem:[%s1500 + $0x128] sm:$0xff]
      %v1539 = vld [vmem:[%s1500 + $0x130] sm:$0x3]
      %v1540 = vld [vmem:[%s1500 + $0x138] sm:$0xff]
      %v1541 = vld [vmem:[%s1500 + $0x140] sm:$0xff]
      %v1542 = vld [vmem:[%s1500 + $0x148] sm:$0x3]
      %v1543 = vld [vmem:[%s1500 + $0x150] sm:$0xff]
      %v1544 = vld [vmem:[%s1500 + $0x158] sm:$0xff]
      %v1545 = vld [vmem:[%s1500 + $0x160] sm:$0x3]
      %v1546 = vld [vmem:[%s1500 + $0x168] sm:$0xff]
      %v1547 = vld [vmem:[%s1500 + $0x170] sm:$0xff]
      %v1548 = vld [vmem:[%s1500 + $0x178] sm:$0x3]
      %s1549 = scalar_lea.vmem %s238, 12
      %v1550 = vld [vmem:[%s1549] sm:$0xf]
      %v1552 = vsel %vm312, %v1501, 0
      %v1555 = vsel %vm312, %v1502, 0
      %v1558 = vsel %vm312, %v1504, 0
      %v1561 = vsel %vm312, %v1505, 0
      %v1564 = vsel %vm312, %v1507, 0
      %v1567 = vsel %vm312, %v1508, 0
      %v1570 = vsel %vm312, %v1510, 0
      %v1573 = vsel %vm312, %v1511, 0
      %v1576 = vsel %vm312, %v1513, 0
      %v1579 = vsel %vm312, %v1514, 0
      %v1582 = vsel %vm312, %v1516, 0
      %v1585 = vsel %vm312, %v1517, 0
      %v1588 = vsel %vm312, %v1519, 0
      %v1591 = vsel %vm312, %v1520, 0
      %v1594 = vsel %vm312, %v1522, 0
      %v1597 = vsel %vm312, %v1523, 0
      %v1600 = vsel %vm312, %v1525, 0
      %v1603 = vsel %vm312, %v1526, 0
      %v1606 = vsel %vm312, %v1528, 0
      %v1609 = vsel %vm312, %v1529, 0
      %v1612 = vsel %vm312, %v1531, 0
      %v1615 = vsel %vm312, %v1532, 0
      %v1618 = vsel %vm312, %v1534, 0
      %v1621 = vsel %vm312, %v1535, 0
      %v1624 = vsel %vm312, %v1537, 0
      %v1627 = vsel %vm312, %v1538, 0
      %v1630 = vsel %vm312, %v1540, 0
      %v1633 = vsel %vm312, %v1541, 0
      %v1636 = vsel %vm312, %v1543, 0
      %v1639 = vsel %vm312, %v1544, 0
      %v1642 = vsel %vm312, %v1546, 0
      %v1645 = vsel %vm312, %v1547, 0
      %v1648 = vsel %vm409, %v1550, 0
      %1650 = vmatprep.subr.mxu0 0.0
      %1651 = vmatpush1.msra.mxu0 0.0
      %1652 = vmatprep.subr.mxu0 0.0
      %1653 = vmatpush1.msra.mxu0 0.0
      %1654 = vmatprep.subr.mxu0 0.0
      %1655 = vmatpush1.msra.mxu0 0.0
      %1656 = vmatprep.subr.mxu0 0.0
      %1657 = vmatpush1.msra.mxu0 0.0
      %1658 = vmatprep.subr.mxu0 0.0
      %1659 = vmatpush1.msra.mxu0 0.0
      %1660 = vmatprep.subr.mxu0 0.0
      %1661 = vmatpush1.msra.mxu0 0.0
      %1662 = vmatprep.subr.mxu0 0.0
      %1663 = vmatpush1.msra.mxu0 0.0
      %1664 = vmatprep.subr.mxu0 0.0
      %1665 = vmatpush1.msra.mxu0 0.0
      %1666 = vmatprep.subr.mxu0 0.0
      %1667 = vmatpush1.msra.mxu0 0.0
      %1668 = vmatprep.subr.mxu0 0.0
      %1669 = vmatpush1.msra.mxu0 0.0
      %1670 = vmatprep.subr.mxu0 0.0
      %1671 = vmatpush1.msra.mxu0 0.0
      %1672 = vmatprep.subr.mxu0 0.0
      %1673 = vmatpush1.msra.mxu0 0.0
      %1674 = vmatprep.subr.mxu0 0.0
      %1675 = vmatpush1.msra.mxu0 0.0
      %1676 = vmatprep.subr.mxu0 0.0
      %1677 = vmatpush1.msra.mxu0 0.0
      %1678 = vmatprep.subr.mxu0 0.0
      %1679 = vmatpush1.msra.mxu0 0.0
      %1680 = vmatprep.subr.mxu0 0.0
      %1681 = vmatpush1.msra.mxu0 %v1648
      %1682 = vmatprep.subr.mxu0 0.0
      %1683 = vmatpush2.msra.mxu0 0.0
      %1684 = vmatprep.subr.mxu0 0.0
      %1685 = vmatpush2.msra.mxu0 0.0
      %1686 = vmatprep.subr.mxu0 0.0
      %1687 = vmatpush2.msra.mxu0 0.0
      %1688 = vmatprep.subr.mxu0 0.0
      %1689 = vmatpush2.msra.mxu0 0.0
      %1690 = vmatprep.subr.mxu0 0.0
      %1691 = vmatpush2.msra.mxu0 0.0
      %1692 = vmatprep.subr.mxu0 0.0
      %1693 = vmatpush2.msra.mxu0 0.0
      %1694 = vmatprep.subr.mxu0 0.0
      %1695 = vmatpush2.msra.mxu0 0.0
      %1696 = vmatprep.subr.mxu0 0.0
      %1697 = vmatpush2.msra.mxu0 0.0
      %1698 = vmatprep.subr.mxu0 0.0
      %1699 = vmatpush2.msra.mxu0 0.0
      %1700 = vmatprep.subr.mxu0 0.0
      %1701 = vmatpush2.msra.mxu0 0.0
      %1702 = vmatprep.subr.mxu0 0.0
      %1703 = vmatpush2.msra.mxu0 0.0
      %1704 = vmatprep.subr.mxu0 0.0
      %1705 = vmatpush2.msra.mxu0 0.0
      %1706 = vmatprep.subr.mxu0 0.0
      %1707 = vmatpush2.msra.mxu0 0.0
      %1708 = vmatprep.subr.mxu0 0.0
      %1709 = vmatpush2.msra.mxu0 0.0
      %1710 = vmatprep.subr.mxu0 0.0
      %1711 = vmatpush2.msra.mxu0 0.0
      %1712 = vmatprep.subr.mxu0 0.0
      %1713 = vmatpush2.msra.mxu0 0.0
      %1714 = vmatprep.mubr.f32.mxu0 0.0
      %1715 = vmatmul.mubr.f32.gmra.mxu0 %v1552
      %v1716 = vpop.f32.mrf.mxu0
      %v1717 = vadd.f32 0.0, %v1716
      %v1718 = vpop.f32.mrf.mxu0
      %1719 = vmatprep.mubr.f32.mxu0 0.0
      %1720 = vmatmul.mubr.f32.gmra.mxu0 %v1555
      %v1721 = vpop.f32.mrf.mxu0
      %v1722 = vadd.f32 0.0, %v1721
      %v1723 = vpop.f32.mrf.mxu0
      %1724 = vmatprep.mubr.f32.mxu0 0.0
      %1725 = vmatmul.mubr.f32.gmra.mxu0 %v1558
      %v1726 = vpop.f32.mrf.mxu0
      %v1727 = vadd.f32 0.0, %v1726
      %v1728 = vpop.f32.mrf.mxu0
      %1729 = vmatprep.mubr.f32.mxu0 0.0
      %1730 = vmatmul.mubr.f32.gmra.mxu0 %v1561
      %v1731 = vpop.f32.mrf.mxu0
      %v1732 = vadd.f32 0.0, %v1731
      %v1733 = vpop.f32.mrf.mxu0
      %1734 = vmatprep.mubr.f32.mxu0 0.0
      %1735 = vmatmul.mubr.f32.gmra.mxu0 %v1564
      %v1736 = vpop.f32.mrf.mxu0
      %v1737 = vadd.f32 0.0, %v1736
      %v1738 = vpop.f32.mrf.mxu0
      %1739 = vmatprep.mubr.f32.mxu0 0.0
      %1740 = vmatmul.mubr.f32.gmra.mxu0 %v1567
      %v1741 = vpop.f32.mrf.mxu0
      %v1742 = vadd.f32 0.0, %v1741
      %v1743 = vpop.f32.mrf.mxu0
      %1744 = vmatprep.mubr.f32.mxu0 0.0
      %1745 = vmatmul.mubr.f32.gmra.mxu0 %v1570
      %v1746 = vpop.f32.mrf.mxu0
      %v1747 = vadd.f32 0.0, %v1746
      %v1748 = vpop.f32.mrf.mxu0
      %1749 = vmatprep.mubr.f32.mxu0 0.0
      %1750 = vmatmul.mubr.f32.gmra.mxu0 %v1573
      %v1751 = vpop.f32.mrf.mxu0
      %v1752 = vadd.f32 0.0, %v1751
      %v1753 = vpop.f32.mrf.mxu0
      %1754 = vmatprep.mubr.f32.mxu0 0.0
      %1755 = vmatmul.mubr.f32.gmra.mxu0 %v1576
      %v1756 = vpop.f32.mrf.mxu0
      %v1757 = vadd.f32 0.0, %v1756
      %v1758 = vpop.f32.mrf.mxu0
      %1759 = vmatprep.mubr.f32.mxu0 0.0
      %1760 = vmatmul.mubr.f32.gmra.mxu0 %v1579
      %v1761 = vpop.f32.mrf.mxu0
      %v1762 = vadd.f32 0.0, %v1761
      %v1763 = vpop.f32.mrf.mxu0
      %1764 = vmatprep.mubr.f32.mxu0 0.0
      %1765 = vmatmul.mubr.f32.gmra.mxu0 %v1582
      %v1766 = vpop.f32.mrf.mxu0
      %v1767 = vadd.f32 0.0, %v1766
      %v1768 = vpop.f32.mrf.mxu0
      %1769 = vmatprep.mubr.f32.mxu0 0.0
      %1770 = vmatmul.mubr.f32.gmra.mxu0 %v1585
      %v1771 = vpop.f32.mrf.mxu0
      %v1772 = vadd.f32 0.0, %v1771
      %v1773 = vpop.f32.mrf.mxu0
      %1774 = vmatprep.mubr.f32.mxu0 0.0
      %1775 = vmatmul.mubr.f32.gmra.mxu0 %v1588
      %v1776 = vpop.f32.mrf.mxu0
      %v1777 = vadd.f32 0.0, %v1776
      %v1778 = vpop.f32.mrf.mxu0
      %1779 = vmatprep.mubr.f32.mxu0 0.0
      %1780 = vmatmul.mubr.f32.gmra.mxu0 %v1591
      %v1781 = vpop.f32.mrf.mxu0
      %v1782 = vadd.f32 0.0, %v1781
      %v1783 = vpop.f32.mrf.mxu0
      %1784 = vmatprep.mubr.f32.mxu0 0.0
      %1785 = vmatmul.mubr.f32.gmra.mxu0 %v1594
      %v1786 = vpop.f32.mrf.mxu0
      %v1787 = vadd.f32 0.0, %v1786
      %v1788 = vpop.f32.mrf.mxu0
      %1789 = vmatprep.mubr.f32.mxu0 0.0
      %1790 = vmatmul.mubr.f32.gmra.mxu0 %v1597
      %v1791 = vpop.f32.mrf.mxu0
      %v1792 = vadd.f32 0.0, %v1791
      %v1793 = vpop.f32.mrf.mxu0
      %1794 = vmatprep.mubr.f32.mxu0 0.0
      %1795 = vmatmul.mubr.f32.gmra.mxu0 %v1600
      %v1796 = vpop.f32.mrf.mxu0
      %v1797 = vadd.f32 0.0, %v1796
      %v1798 = vpop.f32.mrf.mxu0
      %1799 = vmatprep.mubr.f32.mxu0 0.0
      %1800 = vmatmul.mubr.f32.gmra.mxu0 %v1603
      %v1801 = vpop.f32.mrf.mxu0
      %v1802 = vadd.f32 0.0, %v1801
      %v1803 = vpop.f32.mrf.mxu0
      %1804 = vmatprep.mubr.f32.mxu0 0.0
      %1805 = vmatmul.mubr.f32.gmra.mxu0 %v1606
      %v1806 = vpop.f32.mrf.mxu0
      %v1807 = vadd.f32 0.0, %v1806
      %v1808 = vpop.f32.mrf.mxu0
      %1809 = vmatprep.mubr.f32.mxu0 0.0
      %1810 = vmatmul.mubr.f32.gmra.mxu0 %v1609
      %v1811 = vpop.f32.mrf.mxu0
      %v1812 = vadd.f32 0.0, %v1811
      %v1813 = vpop.f32.mrf.mxu0
      %1814 = vmatprep.mubr.f32.mxu0 0.0
      %1815 = vmatmul.mubr.f32.gmra.mxu0 %v1612
      %v1816 = vpop.f32.mrf.mxu0
      %v1817 = vadd.f32 0.0, %v1816
      %v1818 = vpop.f32.mrf.mxu0
      %1819 = vmatprep.mubr.f32.mxu0 0.0
      %1820 = vmatmul.mubr.f32.gmra.mxu0 %v1615
      %v1821 = vpop.f32.mrf.mxu0
      %v1822 = vadd.f32 0.0, %v1821
      %v1823 = vpop.f32.mrf.mxu0
      %1824 = vmatprep.mubr.f32.mxu0 0.0
      %1825 = vmatmul.mubr.f32.gmra.mxu0 %v1618
      %v1826 = vpop.f32.mrf.mxu0
      %v1827 = vadd.f32 0.0, %v1826
      %v1828 = vpop.f32.mrf.mxu0
      %1829 = vmatprep.mubr.f32.mxu0 0.0
      %1830 = vmatmul.mubr.f32.gmra.mxu0 %v1621
      %v1831 = vpop.f32.mrf.mxu0
      %v1832 = vadd.f32 0.0, %v1831
      %v1833 = vpop.f32.mrf.mxu0
      %1834 = vmatprep.mubr.f32.mxu0 0.0
      %1835 = vmatmul.mubr.f32.gmra.mxu0 %v1624
      %v1836 = vpop.f32.mrf.mxu0
      %v1837 = vadd.f32 0.0, %v1836
      %v1838 = vpop.f32.mrf.mxu0
      %1839 = vmatprep.mubr.f32.mxu0 0.0
      %1840 = vmatmul.mubr.f32.gmra.mxu0 %v1627
      %v1841 = vpop.f32.mrf.mxu0
      %v1842 = vadd.f32 0.0, %v1841
      %v1843 = vpop.f32.mrf.mxu0
      %1844 = vmatprep.mubr.f32.mxu0 0.0
      %1845 = vmatmul.mubr.f32.gmra.mxu0 %v1630
      %v1846 = vpop.f32.mrf.mxu0
      %v1847 = vadd.f32 0.0, %v1846
      %v1848 = vpop.f32.mrf.mxu0
      %1849 = vmatprep.mubr.f32.mxu0 0.0
      %1850 = vmatmul.mubr.f32.gmra.mxu0 %v1633
      %v1851 = vpop.f32.mrf.mxu0
      %v1852 = vadd.f32 0.0, %v1851
      %v1853 = vpop.f32.mrf.mxu0
      %1854 = vmatprep.mubr.f32.mxu0 0.0
      %1855 = vmatmul.mubr.f32.gmra.mxu0 %v1636
      %v1856 = vpop.f32.mrf.mxu0
      %v1857 = vadd.f32 0.0, %v1856
      %v1858 = vpop.f32.mrf.mxu0
      %1859 = vmatprep.mubr.f32.mxu0 0.0
      %1860 = vmatmul.mubr.f32.gmra.mxu0 %v1639
      %v1861 = vpop.f32.mrf.mxu0
      %v1862 = vadd.f32 0.0, %v1861
      %v1863 = vpop.f32.mrf.mxu0
      %1864 = vmatprep.mubr.f32.mxu0 0.0
      %1865 = vmatmul.mubr.f32.gmra.mxu0 %v1642
      %v1866 = vpop.f32.mrf.mxu0
      %v1867 = vadd.f32 0.0, %v1866
      %v1868 = vpop.f32.mrf.mxu0
      %1869 = vmatprep.mubr.f32.mxu0 0.0
      %1870 = vmatmul.mubr.f32.gmra.mxu0 %v1645
      %v1871 = vpop.f32.mrf.mxu0
      %v1872 = vadd.f32 0.0, %v1871
      %v1873 = vpop.f32.mrf.mxu0
      %1874 = vdwg.mxu0
      %v1875 = vadd.f32 %v1468, %v1717
      %v1876 = vadd.f32 %v1469, %v1722
      %v1877 = vadd.f32 %v1470, %v1727
      %v1878 = vadd.f32 %v1471, %v1732
      %v1879 = vadd.f32 %v1472, %v1737
      %v1880 = vadd.f32 %v1473, %v1742
      %v1881 = vadd.f32 %v1474, %v1747
      %v1882 = vadd.f32 %v1475, %v1752
      %v1883 = vadd.f32 %v1476, %v1757
      %v1884 = vadd.f32 %v1477, %v1762
      %v1885 = vadd.f32 %v1478, %v1767
      %v1886 = vadd.f32 %v1479, %v1772
      %v1887 = vadd.f32 %v1480, %v1777
      %v1888 = vadd.f32 %v1481, %v1782
      %v1889 = vadd.f32 %v1482, %v1787
      %v1890 = vadd.f32 %v1483, %v1792
      %v1891 = vadd.f32 %v1484, %v1797
      %v1892 = vadd.f32 %v1485, %v1802
      %v1893 = vadd.f32 %v1486, %v1807
      %v1894 = vadd.f32 %v1487, %v1812
      %v1895 = vadd.f32 %v1488, %v1817
      %v1896 = vadd.f32 %v1489, %v1822
      %v1897 = vadd.f32 %v1490, %v1827
      %v1898 = vadd.f32 %v1491, %v1832
      %v1899 = vadd.f32 %v1492, %v1837
      %v1900 = vadd.f32 %v1493, %v1842
      %v1901 = vadd.f32 %v1494, %v1847
      %v1902 = vadd.f32 %v1495, %v1852
      %v1903 = vadd.f32 %v1496, %v1857
      %v1904 = vadd.f32 %v1497, %v1862
      %v1905 = vadd.f32 %v1498, %v1867
      %v1906 = vadd.f32 %v1499, %v1872
      %s1907 = scalar_lea.vmem %s238, 16
      %v1908 = vld [vmem:[%s1907] sm:$0xf]
      %v1925 = vrot.slane %v1501, 1
      %v1926 = vrot.slane %v1502, 1
      %v1927 = vsel %vm688, %v1925, %v1926
      %v1928 = vrot.slane %v1503, 1
      %v1929 = vsel %vm688, %v1926, %v1928
      %v1930 = vrot.slane %v1504, 1
      %v1931 = vrot.slane %v1505, 1
      %v1932 = vsel %vm688, %v1930, %v1931
      %v1933 = vrot.slane %v1506, 1
      %v1934 = vsel %vm688, %v1931, %v1933
      %v1935 = vrot.slane %v1507, 1
      %v1936 = vrot.slane %v1508, 1
      %v1937 = vsel %vm688, %v1935, %v1936
      %v1938 = vrot.slane %v1509, 1
      %v1939 = vsel %vm688, %v1936, %v1938
      %v1940 = vrot.slane %v1510, 1
      %v1941 = vrot.slane %v1511, 1
      %v1942 = vsel %vm688, %v1940, %v1941
      %v1943 = vrot.slane %v1512, 1
      %v1944 = vsel %vm688, %v1941, %v1943
      %v1945 = vrot.slane %v1513, 1
      %v1946 = vrot.slane %v1514, 1
      %v1947 = vsel %vm688, %v1945, %v1946
      %v1948 = vrot.slane %v1515, 1
      %v1949 = vsel %vm688, %v1946, %v1948
      %v1950 = vrot.slane %v1516, 1
      %v1951 = vrot.slane %v1517, 1
      %v1952 = vsel %vm688, %v1950, %v1951
      %v1953 = vrot.slane %v1518, 1
      %v1954 = vsel %vm688, %v1951, %v1953
      %v1955 = vrot.slane %v1519, 1
      %v1956 = vrot.slane %v1520, 1
      %v1957 = vsel %vm688, %v1955, %v1956
      %v1958 = vrot.slane %v1521, 1
      %v1959 = vsel %vm688, %v1956, %v1958
      %v1960 = vrot.slane %v1522, 1
      %v1961 = vrot.slane %v1523, 1
      %v1962 = vsel %vm688, %v1960, %v1961
      %v1963 = vrot.slane %v1524, 1
      %v1964 = vsel %vm688, %v1961, %v1963
      %v1965 = vrot.slane %v1525, 1
      %v1966 = vrot.slane %v1526, 1
      %v1967 = vsel %vm688, %v1965, %v1966
      %v1968 = vrot.slane %v1527, 1
      %v1969 = vsel %vm688, %v1966, %v1968
      %v1970 = vrot.slane %v1528, 1
      %v1971 = vrot.slane %v1529, 1
      %v1972 = vsel %vm688, %v1970, %v1971
      %v1973 = vrot.slane %v1530, 1
      %v1974 = vsel %vm688, %v1971, %v1973
      %v1975 = vrot.slane %v1531, 1
      %v1976 = vrot.slane %v1532, 1
      %v1977 = vsel %vm688, %v1975, %v1976
      %v1978 = vrot.slane %v1533, 1
      %v1979 = vsel %vm688, %v1976, %v1978
      %v1980 = vrot.slane %v1534, 1
      %v1981 = vrot.slane %v1535, 1
      %v1982 = vsel %vm688, %v1980, %v1981
      %v1983 = vrot.slane %v1536, 1
      %v1984 = vsel %vm688, %v1981, %v1983
      %v1985 = vrot.slane %v1537, 1
      %v1986 = vrot.slane %v1538, 1
      %v1987 = vsel %vm688, %v1985, %v1986
      %v1988 = vrot.slane %v1539, 1
      %v1989 = vsel %vm688, %v1986, %v1988
      %v1990 = vrot.slane %v1540, 1
      %v1991 = vrot.slane %v1541, 1
      %v1992 = vsel %vm688, %v1990, %v1991
      %v1993 = vrot.slane %v1542, 1
      %v1994 = vsel %vm688, %v1991, %v1993
      %v1995 = vrot.slane %v1543, 1
      %v1996 = vrot.slane %v1544, 1
      %v1997 = vsel %vm688, %v1995, %v1996
      %v1998 = vrot.slane %v1545, 1
      %v1999 = vsel %vm688, %v1996, %v1998
      %v2000 = vrot.slane %v1546, 1
      %v2001 = vrot.slane %v1547, 1
      %v2002 = vsel %vm688, %v2000, %v2001
      %v2003 = vrot.slane %v1548, 1
      %v2004 = vsel %vm688, %v2001, %v2003
      %v2005 = vsel %vm312, %v1927, 0
      %v2007 = vsel %vm312, %v1929, 0
      %v2009 = vsel %vm312, %v1932, 0
      %v2011 = vsel %vm312, %v1934, 0
      %v2013 = vsel %vm312, %v1937, 0
      %v2015 = vsel %vm312, %v1939, 0
      %v2017 = vsel %vm312, %v1942, 0
      %v2019 = vsel %vm312, %v1944, 0
      %v2021 = vsel %vm312, %v1947, 0
      %v2023 = vsel %vm312, %v1949, 0
      %v2025 = vsel %vm312, %v1952, 0
      %v2027 = vsel %vm312, %v1954, 0
      %v2029 = vsel %vm312, %v1957, 0
      %v2031 = vsel %vm312, %v1959, 0
      %v2033 = vsel %vm312, %v1962, 0
      %v2035 = vsel %vm312, %v1964, 0
      %v2037 = vsel %vm312, %v1967, 0
      %v2039 = vsel %vm312, %v1969, 0
      %v2041 = vsel %vm312, %v1972, 0
      %v2043 = vsel %vm312, %v1974, 0
      %v2045 = vsel %vm312, %v1977, 0
      %v2047 = vsel %vm312, %v1979, 0
      %v2049 = vsel %vm312, %v1982, 0
      %v2051 = vsel %vm312, %v1984, 0
      %v2053 = vsel %vm312, %v1987, 0
      %v2055 = vsel %vm312, %v1989, 0
      %v2057 = vsel %vm312, %v1992, 0
      %v2059 = vsel %vm312, %v1994, 0
      %v2061 = vsel %vm312, %v1997, 0
      %v2063 = vsel %vm312, %v1999, 0
      %v2065 = vsel %vm312, %v2002, 0
      %v2067 = vsel %vm312, %v2004, 0
      %v2070 = vsel %vm409, %v1908, 0
      %2072 = vmatprep.subr.mxu0 0.0
      %2073 = vmatpush1.msra.mxu0 0.0
      %2074 = vmatprep.subr.mxu0 0.0
      %2075 = vmatpush1.msra.mxu0 0.0
      %2076 = vmatprep.subr.mxu0 0.0
      %2077 = vmatpush1.msra.mxu0 0.0
      %2078 = vmatprep.subr.mxu0 0.0
      %2079 = vmatpush1.msra.mxu0 0.0
      %2080 = vmatprep.subr.mxu0 0.0
      %2081 = vmatpush1.msra.mxu0 0.0
      %2082 = vmatprep.subr.mxu0 0.0
      %2083 = vmatpush1.msra.mxu0 0.0
      %2084 = vmatprep.subr.mxu0 0.0
      %2085 = vmatpush1.msra.mxu0 0.0
      %2086 = vmatprep.subr.mxu0 0.0
      %2087 = vmatpush1.msra.mxu0 0.0
      %2088 = vmatprep.subr.mxu0 0.0
      %2089 = vmatpush1.msra.mxu0 0.0
      %2090 = vmatprep.subr.mxu0 0.0
      %2091 = vmatpush1.msra.mxu0 0.0
      %2092 = vmatprep.subr.mxu0 0.0
      %2093 = vmatpush1.msra.mxu0 0.0
      %2094 = vmatprep.subr.mxu0 0.0
      %2095 = vmatpush1.msra.mxu0 0.0
      %2096 = vmatprep.subr.mxu0 0.0
      %2097 = vmatpush1.msra.mxu0 0.0
      %2098 = vmatprep.subr.mxu0 0.0
      %2099 = vmatpush1.msra.mxu0 0.0
      %2100 = vmatprep.subr.mxu0 0.0
      %2101 = vmatpush1.msra.mxu0 0.0
      %2102 = vmatprep.subr.mxu0 0.0
      %2103 = vmatpush1.msra.mxu0 %v2070
      %2104 = vmatprep.subr.mxu0 0.0
      %2105 = vmatpush2.msra.mxu0 0.0
      %2106 = vmatprep.subr.mxu0 0.0
      %2107 = vmatpush2.msra.mxu0 0.0
      %2108 = vmatprep.subr.mxu0 0.0
      %2109 = vmatpush2.msra.mxu0 0.0
      %2110 = vmatprep.subr.mxu0 0.0
      %2111 = vmatpush2.msra.mxu0 0.0
      %2112 = vmatprep.subr.mxu0 0.0
      %2113 = vmatpush2.msra.mxu0 0.0
      %2114 = vmatprep.subr.mxu0 0.0
      %2115 = vmatpush2.msra.mxu0 0.0
      %2116 = vmatprep.subr.mxu0 0.0
      %2117 = vmatpush2.msra.mxu0 0.0
      %2118 = vmatprep.subr.mxu0 0.0
      %2119 = vmatpush2.msra.mxu0 0.0
      %2120 = vmatprep.subr.mxu0 0.0
      %2121 = vmatpush2.msra.mxu0 0.0
      %2122 = vmatprep.subr.mxu0 0.0
      %2123 = vmatpush2.msra.mxu0 0.0
      %2124 = vmatprep.subr.mxu0 0.0
      %2125 = vmatpush2.msra.mxu0 0.0
      %2126 = vmatprep.subr.mxu0 0.0
      %2127 = vmatpush2.msra.mxu0 0.0
      %2128 = vmatprep.subr.mxu0 0.0
      %2129 = vmatpush2.msra.mxu0 0.0
      %2130 = vmatprep.subr.mxu0 0.0
      %2131 = vmatpush2.msra.mxu0 0.0
      %2132 = vmatprep.subr.mxu0 0.0
      %2133 = vmatpush2.msra.mxu0 0.0
      %2134 = vmatprep.subr.mxu0 0.0
      %2135 = vmatpush2.msra.mxu0 0.0
      %2136 = vmatprep.mubr.f32.mxu0 0.0
      %2137 = vmatmul.mubr.f32.gmra.mxu0 %v2005
      %v2138 = vpop.f32.mrf.mxu0
      %v2139 = vadd.f32 0.0, %v2138
      %v2140 = vpop.f32.mrf.mxu0
      %2141 = vmatprep.mubr.f32.mxu0 0.0
      %2142 = vmatmul.mubr.f32.gmra.mxu0 %v2007
      %v2143 = vpop.f32.mrf.mxu0
      %v2144 = vadd.f32 0.0, %v2143
      %v2145 = vpop.f32.mrf.mxu0
      %2146 = vmatprep.mubr.f32.mxu0 0.0
      %2147 = vmatmul.mubr.f32.gmra.mxu0 %v2009
      %v2148 = vpop.f32.mrf.mxu0
      %v2149 = vadd.f32 0.0, %v2148
      %v2150 = vpop.f32.mrf.mxu0
      %2151 = vmatprep.mubr.f32.mxu0 0.0
      %2152 = vmatmul.mubr.f32.gmra.mxu0 %v2011
      %v2153 = vpop.f32.mrf.mxu0
      %v2154 = vadd.f32 0.0, %v2153
      %v2155 = vpop.f32.mrf.mxu0
      %2156 = vmatprep.mubr.f32.mxu0 0.0
      %2157 = vmatmul.mubr.f32.gmra.mxu0 %v2013
      %v2158 = vpop.f32.mrf.mxu0
      %v2159 = vadd.f32 0.0, %v2158
      %v2160 = vpop.f32.mrf.mxu0
      %2161 = vmatprep.mubr.f32.mxu0 0.0
      %2162 = vmatmul.mubr.f32.gmra.mxu0 %v2015
      %v2163 = vpop.f32.mrf.mxu0
      %v2164 = vadd.f32 0.0, %v2163
      %v2165 = vpop.f32.mrf.mxu0
      %2166 = vmatprep.mubr.f32.mxu0 0.0
      %2167 = vmatmul.mubr.f32.gmra.mxu0 %v2017
      %v2168 = vpop.f32.mrf.mxu0
      %v2169 = vadd.f32 0.0, %v2168
      %v2170 = vpop.f32.mrf.mxu0
      %2171 = vmatprep.mubr.f32.mxu0 0.0
      %2172 = vmatmul.mubr.f32.gmra.mxu0 %v2019
      %v2173 = vpop.f32.mrf.mxu0
      %v2174 = vadd.f32 0.0, %v2173
      %v2175 = vpop.f32.mrf.mxu0
      %2176 = vmatprep.mubr.f32.mxu0 0.0
      %2177 = vmatmul.mubr.f32.gmra.mxu0 %v2021
      %v2178 = vpop.f32.mrf.mxu0
      %v2179 = vadd.f32 0.0, %v2178
      %v2180 = vpop.f32.mrf.mxu0
      %2181 = vmatprep.mubr.f32.mxu0 0.0
      %2182 = vmatmul.mubr.f32.gmra.mxu0 %v2023
      %v2183 = vpop.f32.mrf.mxu0
      %v2184 = vadd.f32 0.0, %v2183
      %v2185 = vpop.f32.mrf.mxu0
      %2186 = vmatprep.mubr.f32.mxu0 0.0
      %2187 = vmatmul.mubr.f32.gmra.mxu0 %v2025
      %v2188 = vpop.f32.mrf.mxu0
      %v2189 = vadd.f32 0.0, %v2188
      %v2190 = vpop.f32.mrf.mxu0
      %2191 = vmatprep.mubr.f32.mxu0 0.0
      %2192 = vmatmul.mubr.f32.gmra.mxu0 %v2027
      %v2193 = vpop.f32.mrf.mxu0
      %v2194 = vadd.f32 0.0, %v2193
      %v2195 = vpop.f32.mrf.mxu0
      %2196 = vmatprep.mubr.f32.mxu0 0.0
      %2197 = vmatmul.mubr.f32.gmra.mxu0 %v2029
      %v2198 = vpop.f32.mrf.mxu0
      %v2199 = vadd.f32 0.0, %v2198
      %v2200 = vpop.f32.mrf.mxu0
      %2201 = vmatprep.mubr.f32.mxu0 0.0
      %2202 = vmatmul.mubr.f32.gmra.mxu0 %v2031
      %v2203 = vpop.f32.mrf.mxu0
      %v2204 = vadd.f32 0.0, %v2203
      %v2205 = vpop.f32.mrf.mxu0
      %2206 = vmatprep.mubr.f32.mxu0 0.0
      %2207 = vmatmul.mubr.f32.gmra.mxu0 %v2033
      %v2208 = vpop.f32.mrf.mxu0
      %v2209 = vadd.f32 0.0, %v2208
      %v2210 = vpop.f32.mrf.mxu0
      %2211 = vmatprep.mubr.f32.mxu0 0.0
      %2212 = vmatmul.mubr.f32.gmra.mxu0 %v2035
      %v2213 = vpop.f32.mrf.mxu0
      %v2214 = vadd.f32 0.0, %v2213
      %v2215 = vpop.f32.mrf.mxu0
      %2216 = vmatprep.mubr.f32.mxu0 0.0
      %2217 = vmatmul.mubr.f32.gmra.mxu0 %v2037
      %v2218 = vpop.f32.mrf.mxu0
      %v2219 = vadd.f32 0.0, %v2218
      %v2220 = vpop.f32.mrf.mxu0
      %2221 = vmatprep.mubr.f32.mxu0 0.0
      %2222 = vmatmul.mubr.f32.gmra.mxu0 %v2039
      %v2223 = vpop.f32.mrf.mxu0
      %v2224 = vadd.f32 0.0, %v2223
      %v2225 = vpop.f32.mrf.mxu0
      %2226 = vmatprep.mubr.f32.mxu0 0.0
      %2227 = vmatmul.mubr.f32.gmra.mxu0 %v2041
      %v2228 = vpop.f32.mrf.mxu0
      %v2229 = vadd.f32 0.0, %v2228
      %v2230 = vpop.f32.mrf.mxu0
      %2231 = vmatprep.mubr.f32.mxu0 0.0
      %2232 = vmatmul.mubr.f32.gmra.mxu0 %v2043
      %v2233 = vpop.f32.mrf.mxu0
      %v2234 = vadd.f32 0.0, %v2233
      %v2235 = vpop.f32.mrf.mxu0
      %2236 = vmatprep.mubr.f32.mxu0 0.0
      %2237 = vmatmul.mubr.f32.gmra.mxu0 %v2045
      %v2238 = vpop.f32.mrf.mxu0
      %v2239 = vadd.f32 0.0, %v2238
      %v2240 = vpop.f32.mrf.mxu0
      %2241 = vmatprep.mubr.f32.mxu0 0.0
      %2242 = vmatmul.mubr.f32.gmra.mxu0 %v2047
      %v2243 = vpop.f32.mrf.mxu0
      %v2244 = vadd.f32 0.0, %v2243
      %v2245 = vpop.f32.mrf.mxu0
      %2246 = vmatprep.mubr.f32.mxu0 0.0
      %2247 = vmatmul.mubr.f32.gmra.mxu0 %v2049
      %v2248 = vpop.f32.mrf.mxu0
      %v2249 = vadd.f32 0.0, %v2248
      %v2250 = vpop.f32.mrf.mxu0
      %2251 = vmatprep.mubr.f32.mxu0 0.0
      %2252 = vmatmul.mubr.f32.gmra.mxu0 %v2051
      %v2253 = vpop.f32.mrf.mxu0
      %v2254 = vadd.f32 0.0, %v2253
      %v2255 = vpop.f32.mrf.mxu0
      %2256 = vmatprep.mubr.f32.mxu0 0.0
      %2257 = vmatmul.mubr.f32.gmra.mxu0 %v2053
      %v2258 = vpop.f32.mrf.mxu0
      %v2259 = vadd.f32 0.0, %v2258
      %v2260 = vpop.f32.mrf.mxu0
      %2261 = vmatprep.mubr.f32.mxu0 0.0
      %2262 = vmatmul.mubr.f32.gmra.mxu0 %v2055
      %v2263 = vpop.f32.mrf.mxu0
      %v2264 = vadd.f32 0.0, %v2263
      %v2265 = vpop.f32.mrf.mxu0
      %2266 = vmatprep.mubr.f32.mxu0 0.0
      %2267 = vmatmul.mubr.f32.gmra.mxu0 %v2057
      %v2268 = vpop.f32.mrf.mxu0
      %v2269 = vadd.f32 0.0, %v2268
      %v2270 = vpop.f32.mrf.mxu0
      %2271 = vmatprep.mubr.f32.mxu0 0.0
      %2272 = vmatmul.mubr.f32.gmra.mxu0 %v2059
      %v2273 = vpop.f32.mrf.mxu0
      %v2274 = vadd.f32 0.0, %v2273
      %v2275 = vpop.f32.mrf.mxu0
      %2276 = vmatprep.mubr.f32.mxu0 0.0
      %2277 = vmatmul.mubr.f32.gmra.mxu0 %v2061
      %v2278 = vpop.f32.mrf.mxu0
      %v2279 = vadd.f32 0.0, %v2278
      %v2280 = vpop.f32.mrf.mxu0
      %2281 = vmatprep.mubr.f32.mxu0 0.0
      %2282 = vmatmul.mubr.f32.gmra.mxu0 %v2063
      %v2283 = vpop.f32.mrf.mxu0
      %v2284 = vadd.f32 0.0, %v2283
      %v2285 = vpop.f32.mrf.mxu0
      %2286 = vmatprep.mubr.f32.mxu0 0.0
      %2287 = vmatmul.mubr.f32.gmra.mxu0 %v2065
      %v2288 = vpop.f32.mrf.mxu0
      %v2289 = vadd.f32 0.0, %v2288
      %v2290 = vpop.f32.mrf.mxu0
      %2291 = vmatprep.mubr.f32.mxu0 0.0
      %2292 = vmatmul.mubr.f32.gmra.mxu0 %v2067
      %v2293 = vpop.f32.mrf.mxu0
      %v2294 = vadd.f32 0.0, %v2293
      %v2295 = vpop.f32.mrf.mxu0
      %2296 = vdwg.mxu0
      %v2297 = vadd.f32 %v1875, %v2139
      %v2298 = vadd.f32 %v1876, %v2144
      %v2299 = vadd.f32 %v1877, %v2149
      %v2300 = vadd.f32 %v1878, %v2154
      %v2301 = vadd.f32 %v1879, %v2159
      %v2302 = vadd.f32 %v1880, %v2164
      %v2303 = vadd.f32 %v1881, %v2169
      %v2304 = vadd.f32 %v1882, %v2174
      %v2305 = vadd.f32 %v1883, %v2179
      %v2306 = vadd.f32 %v1884, %v2184
      %v2307 = vadd.f32 %v1885, %v2189
      %v2308 = vadd.f32 %v1886, %v2194
      %v2309 = vadd.f32 %v1887, %v2199
      %v2310 = vadd.f32 %v1888, %v2204
      %v2311 = vadd.f32 %v1889, %v2209
      %v2312 = vadd.f32 %v1890, %v2214
      %v2313 = vadd.f32 %v1891, %v2219
      %v2314 = vadd.f32 %v1892, %v2224
      %v2315 = vadd.f32 %v1893, %v2229
      %v2316 = vadd.f32 %v1894, %v2234
      %v2317 = vadd.f32 %v1895, %v2239
      %v2318 = vadd.f32 %v1896, %v2244
      %v2319 = vadd.f32 %v1897, %v2249
      %v2320 = vadd.f32 %v1898, %v2254
      %v2321 = vadd.f32 %v1899, %v2259
      %v2322 = vadd.f32 %v1900, %v2264
      %v2323 = vadd.f32 %v1901, %v2269
      %v2324 = vadd.f32 %v1902, %v2274
      %v2325 = vadd.f32 %v1903, %v2279
      %v2326 = vadd.f32 %v1904, %v2284
      %v2327 = vadd.f32 %v1905, %v2289
      %v2328 = vadd.f32 %v1906, %v2294
      %s2329 = scalar_lea.vmem %s238, 20
      %v2330 = vld [vmem:[%s2329] sm:$0xf]
      %v2331 = vrot.slane %v1501, 2
      %v2332 = vrot.slane %v1502, 2
      %v2333 = vsel %vm1095, %v2331, %v2332
      %v2334 = vrot.slane %v1503, 2
      %v2335 = vsel %vm1095, %v2332, %v2334
      %v2336 = vrot.slane %v1504, 2
      %v2337 = vrot.slane %v1505, 2
      %v2338 = vsel %vm1095, %v2336, %v2337
      %v2339 = vrot.slane %v1506, 2
      %v2340 = vsel %vm1095, %v2337, %v2339
      %v2341 = vrot.slane %v1507, 2
      %v2342 = vrot.slane %v1508, 2
      %v2343 = vsel %vm1095, %v2341, %v2342
      %v2344 = vrot.slane %v1509, 2
      %v2345 = vsel %vm1095, %v2342, %v2344
      %v2346 = vrot.slane %v1510, 2
      %v2347 = vrot.slane %v1511, 2
      %v2348 = vsel %vm1095, %v2346, %v2347
      %v2349 = vrot.slane %v1512, 2
      %v2350 = vsel %vm1095, %v2347, %v2349
      %v2351 = vrot.slane %v1513, 2
      %v2352 = vrot.slane %v1514, 2
      %v2353 = vsel %vm1095, %v2351, %v2352
      %v2354 = vrot.slane %v1515, 2
      %v2355 = vsel %vm1095, %v2352, %v2354
      %v2356 = vrot.slane %v1516, 2
      %v2357 = vrot.slane %v1517, 2
      %v2358 = vsel %vm1095, %v2356, %v2357
      %v2359 = vrot.slane %v1518, 2
      %v2360 = vsel %vm1095, %v2357, %v2359
      %v2361 = vrot.slane %v1519, 2
      %v2362 = vrot.slane %v1520, 2
      %v2363 = vsel %vm1095, %v2361, %v2362
      %v2364 = vrot.slane %v1521, 2
      %v2365 = vsel %vm1095, %v2362, %v2364
      %v2366 = vrot.slane %v1522, 2
      %v2367 = vrot.slane %v1523, 2
      %v2368 = vsel %vm1095, %v2366, %v2367
      %v2369 = vrot.slane %v1524, 2
      %v2370 = vsel %vm1095, %v2367, %v2369
      %v2371 = vrot.slane %v1525, 2
      %v2372 = vrot.slane %v1526, 2
      %v2373 = vsel %vm1095, %v2371, %v2372
      %v2374 = vrot.slane %v1527, 2
      %v2375 = vsel %vm1095, %v2372, %v2374
      %v2376 = vrot.slane %v1528, 2
      %v2377 = vrot.slane %v1529, 2
      %v2378 = vsel %vm1095, %v2376, %v2377
      %v2379 = vrot.slane %v1530, 2
      %v2380 = vsel %vm1095, %v2377, %v2379
      %v2381 = vrot.slane %v1531, 2
      %v2382 = vrot.slane %v1532, 2
      %v2383 = vsel %vm1095, %v2381, %v2382
      %v2384 = vrot.slane %v1533, 2
      %v2385 = vsel %vm1095, %v2382, %v2384
      %v2386 = vrot.slane %v1534, 2
      %v2387 = vrot.slane %v1535, 2
      %v2388 = vsel %vm1095, %v2386, %v2387
      %v2389 = vrot.slane %v1536, 2
      %v2390 = vsel %vm1095, %v2387, %v2389
      %v2391 = vrot.slane %v1537, 2
      %v2392 = vrot.slane %v1538, 2
      %v2393 = vsel %vm1095, %v2391, %v2392
      %v2394 = vrot.slane %v1539, 2
      %v2395 = vsel %vm1095, %v2392, %v2394
      %v2396 = vrot.slane %v1540, 2
      %v2397 = vrot.slane %v1541, 2
      %v2398 = vsel %vm1095, %v2396, %v2397
      %v2399 = vrot.slane %v1542, 2
      %v2400 = vsel %vm1095, %v2397, %v2399
      %v2401 = vrot.slane %v1543, 2
      %v2402 = vrot.slane %v1544, 2
      %v2403 = vsel %vm1095, %v2401, %v2402
      %v2404 = vrot.slane %v1545, 2
      %v2405 = vsel %vm1095, %v2402, %v2404
      %v2406 = vrot.slane %v1546, 2
      %v2407 = vrot.slane %v1547, 2
      %v2408 = vsel %vm1095, %v2406, %v2407
      %v2409 = vrot.slane %v1548, 2
      %v2410 = vsel %vm1095, %v2407, %v2409
      %v2411 = vsel %vm312, %v2333, 0
      %v2413 = vsel %vm312, %v2335, 0
      %v2415 = vsel %vm312, %v2338, 0
      %v2417 = vsel %vm312, %v2340, 0
      %v2419 = vsel %vm312, %v2343, 0
      %v2421 = vsel %vm312, %v2345, 0
      %v2423 = vsel %vm312, %v2348, 0
      %v2425 = vsel %vm312, %v2350, 0
      %v2427 = vsel %vm312, %v2353, 0
      %v2429 = vsel %vm312, %v2355, 0
      %v2431 = vsel %vm312, %v2358, 0
      %v2433 = vsel %vm312, %v2360, 0
      %v2435 = vsel %vm312, %v2363, 0
      %v2437 = vsel %vm312, %v2365, 0
      %v2439 = vsel %vm312, %v2368, 0
      %v2441 = vsel %vm312, %v2370, 0
      %v2443 = vsel %vm312, %v2373, 0
      %v2445 = vsel %vm312, %v2375, 0
      %v2447 = vsel %vm312, %v2378, 0
      %v2449 = vsel %vm312, %v2380, 0
      %v2451 = vsel %vm312, %v2383, 0
      %v2453 = vsel %vm312, %v2385, 0
      %v2455 = vsel %vm312, %v2388, 0
      %v2457 = vsel %vm312, %v2390, 0
      %v2459 = vsel %vm312, %v2393, 0
      %v2461 = vsel %vm312, %v2395, 0
      %v2463 = vsel %vm312, %v2398, 0
      %v2465 = vsel %vm312, %v2400, 0
      %v2467 = vsel %vm312, %v2403, 0
      %v2469 = vsel %vm312, %v2405, 0
      %v2471 = vsel %vm312, %v2408, 0
      %v2473 = vsel %vm312, %v2410, 0
      %v2476 = vsel %vm409, %v2330, 0
      %2478 = vmatprep.subr.mxu0 0.0
      %2479 = vmatpush1.msra.mxu0 0.0
      %2480 = vmatprep.subr.mxu0 0.0
      %2481 = vmatpush1.msra.mxu0 0.0
      %2482 = vmatprep.subr.mxu0 0.0
      %2483 = vmatpush1.msra.mxu0 0.0
      %2484 = vmatprep.subr.mxu0 0.0
      %2485 = vmatpush1.msra.mxu0 0.0
      %2486 = vmatprep.subr.mxu0 0.0
      %2487 = vmatpush1.msra.mxu0 0.0
      %2488 = vmatprep.subr.mxu0 0.0
      %2489 = vmatpush1.msra.mxu0 0.0
      %2490 = vmatprep.subr.mxu0 0.0
      %2491 = vmatpush1.msra.mxu0 0.0
      %2492 = vmatprep.subr.mxu0 0.0
      %2493 = vmatpush1.msra.mxu0 0.0
      %2494 = vmatprep.subr.mxu0 0.0
      %2495 = vmatpush1.msra.mxu0 0.0
      %2496 = vmatprep.subr.mxu0 0.0
      %2497 = vmatpush1.msra.mxu0 0.0
      %2498 = vmatprep.subr.mxu0 0.0
      %2499 = vmatpush1.msra.mxu0 0.0
      %2500 = vmatprep.subr.mxu0 0.0
      %2501 = vmatpush1.msra.mxu0 0.0
      %2502 = vmatprep.subr.mxu0 0.0
      %2503 = vmatpush1.msra.mxu0 0.0
      %2504 = vmatprep.subr.mxu0 0.0
      %2505 = vmatpush1.msra.mxu0 0.0
      %2506 = vmatprep.subr.mxu0 0.0
      %2507 = vmatpush1.msra.mxu0 0.0
      %2508 = vmatprep.subr.mxu0 0.0
      %2509 = vmatpush1.msra.mxu0 %v2476
      %2510 = vmatprep.subr.mxu0 0.0
      %2511 = vmatpush2.msra.mxu0 0.0
      %2512 = vmatprep.subr.mxu0 0.0
      %2513 = vmatpush2.msra.mxu0 0.0
      %2514 = vmatprep.subr.mxu0 0.0
      %2515 = vmatpush2.msra.mxu0 0.0
      %2516 = vmatprep.subr.mxu0 0.0
      %2517 = vmatpush2.msra.mxu0 0.0
      %2518 = vmatprep.subr.mxu0 0.0
      %2519 = vmatpush2.msra.mxu0 0.0
      %2520 = vmatprep.subr.mxu0 0.0
      %2521 = vmatpush2.msra.mxu0 0.0
      %2522 = vmatprep.subr.mxu0 0.0
      %2523 = vmatpush2.msra.mxu0 0.0
      %2524 = vmatprep.subr.mxu0 0.0
      %2525 = vmatpush2.msra.mxu0 0.0
      %2526 = vmatprep.subr.mxu0 0.0
      %2527 = vmatpush2.msra.mxu0 0.0
      %2528 = vmatprep.subr.mxu0 0.0
      %2529 = vmatpush2.msra.mxu0 0.0
      %2530 = vmatprep.subr.mxu0 0.0
      %2531 = vmatpush2.msra.mxu0 0.0
      %2532 = vmatprep.subr.mxu0 0.0
      %2533 = vmatpush2.msra.mxu0 0.0
      %2534 = vmatprep.subr.mxu0 0.0
      %2535 = vmatpush2.msra.mxu0 0.0
      %2536 = vmatprep.subr.mxu0 0.0
      %2537 = vmatpush2.msra.mxu0 0.0
      %2538 = vmatprep.subr.mxu0 0.0
      %2539 = vmatpush2.msra.mxu0 0.0
      %2540 = vmatprep.subr.mxu0 0.0
      %2541 = vmatpush2.msra.mxu0 0.0
      %2542 = vmatprep.mubr.f32.mxu0 0.0
      %2543 = vmatmul.mubr.f32.gmra.mxu0 %v2411
      %v2544 = vpop.f32.mrf.mxu0
      %v2545 = vadd.f32 0.0, %v2544
      %v2546 = vpop.f32.mrf.mxu0
      %2547 = vmatprep.mubr.f32.mxu0 0.0
      %2548 = vmatmul.mubr.f32.gmra.mxu0 %v2413
      %v2549 = vpop.f32.mrf.mxu0
      %v2550 = vadd.f32 0.0, %v2549
      %v2551 = vpop.f32.mrf.mxu0
      %2552 = vmatprep.mubr.f32.mxu0 0.0
      %2553 = vmatmul.mubr.f32.gmra.mxu0 %v2415
      %v2554 = vpop.f32.mrf.mxu0
      %v2555 = vadd.f32 0.0, %v2554
      %v2556 = vpop.f32.mrf.mxu0
      %2557 = vmatprep.mubr.f32.mxu0 0.0
      %2558 = vmatmul.mubr.f32.gmra.mxu0 %v2417
      %v2559 = vpop.f32.mrf.mxu0
      %v2560 = vadd.f32 0.0, %v2559
      %v2561 = vpop.f32.mrf.mxu0
      %2562 = vmatprep.mubr.f32.mxu0 0.0
      %2563 = vmatmul.mubr.f32.gmra.mxu0 %v2419
      %v2564 = vpop.f32.mrf.mxu0
      %v2565 = vadd.f32 0.0, %v2564
      %v2566 = vpop.f32.mrf.mxu0
      %2567 = vmatprep.mubr.f32.mxu0 0.0
      %2568 = vmatmul.mubr.f32.gmra.mxu0 %v2421
      %v2569 = vpop.f32.mrf.mxu0
      %v2570 = vadd.f32 0.0, %v2569
      %v2571 = vpop.f32.mrf.mxu0
      %2572 = vmatprep.mubr.f32.mxu0 0.0
      %2573 = vmatmul.mubr.f32.gmra.mxu0 %v2423
      %v2574 = vpop.f32.mrf.mxu0
      %v2575 = vadd.f32 0.0, %v2574
      %v2576 = vpop.f32.mrf.mxu0
      %2577 = vmatprep.mubr.f32.mxu0 0.0
      %2578 = vmatmul.mubr.f32.gmra.mxu0 %v2425
      %v2579 = vpop.f32.mrf.mxu0
      %v2580 = vadd.f32 0.0, %v2579
      %v2581 = vpop.f32.mrf.mxu0
      %2582 = vmatprep.mubr.f32.mxu0 0.0
      %2583 = vmatmul.mubr.f32.gmra.mxu0 %v2427
      %v2584 = vpop.f32.mrf.mxu0
      %v2585 = vadd.f32 0.0, %v2584
      %v2586 = vpop.f32.mrf.mxu0
      %2587 = vmatprep.mubr.f32.mxu0 0.0
      %2588 = vmatmul.mubr.f32.gmra.mxu0 %v2429
      %v2589 = vpop.f32.mrf.mxu0
      %v2590 = vadd.f32 0.0, %v2589
      %v2591 = vpop.f32.mrf.mxu0
      %2592 = vmatprep.mubr.f32.mxu0 0.0
      %2593 = vmatmul.mubr.f32.gmra.mxu0 %v2431
      %v2594 = vpop.f32.mrf.mxu0
      %v2595 = vadd.f32 0.0, %v2594
      %v2596 = vpop.f32.mrf.mxu0
      %2597 = vmatprep.mubr.f32.mxu0 0.0
      %2598 = vmatmul.mubr.f32.gmra.mxu0 %v2433
      %v2599 = vpop.f32.mrf.mxu0
      %v2600 = vadd.f32 0.0, %v2599
      %v2601 = vpop.f32.mrf.mxu0
      %2602 = vmatprep.mubr.f32.mxu0 0.0
      %2603 = vmatmul.mubr.f32.gmra.mxu0 %v2435
      %v2604 = vpop.f32.mrf.mxu0
      %v2605 = vadd.f32 0.0, %v2604
      %v2606 = vpop.f32.mrf.mxu0
      %2607 = vmatprep.mubr.f32.mxu0 0.0
      %2608 = vmatmul.mubr.f32.gmra.mxu0 %v2437
      %v2609 = vpop.f32.mrf.mxu0
      %v2610 = vadd.f32 0.0, %v2609
      %v2611 = vpop.f32.mrf.mxu0
      %2612 = vmatprep.mubr.f32.mxu0 0.0
      %2613 = vmatmul.mubr.f32.gmra.mxu0 %v2439
      %v2614 = vpop.f32.mrf.mxu0
      %v2615 = vadd.f32 0.0, %v2614
      %v2616 = vpop.f32.mrf.mxu0
      %2617 = vmatprep.mubr.f32.mxu0 0.0
      %2618 = vmatmul.mubr.f32.gmra.mxu0 %v2441
      %v2619 = vpop.f32.mrf.mxu0
      %v2620 = vadd.f32 0.0, %v2619
      %v2621 = vpop.f32.mrf.mxu0
      %2622 = vmatprep.mubr.f32.mxu0 0.0
      %2623 = vmatmul.mubr.f32.gmra.mxu0 %v2443
      %v2624 = vpop.f32.mrf.mxu0
      %v2625 = vadd.f32 0.0, %v2624
      %v2626 = vpop.f32.mrf.mxu0
      %2627 = vmatprep.mubr.f32.mxu0 0.0
      %2628 = vmatmul.mubr.f32.gmra.mxu0 %v2445
      %v2629 = vpop.f32.mrf.mxu0
      %v2630 = vadd.f32 0.0, %v2629
      %v2631 = vpop.f32.mrf.mxu0
      %2632 = vmatprep.mubr.f32.mxu0 0.0
      %2633 = vmatmul.mubr.f32.gmra.mxu0 %v2447
      %v2634 = vpop.f32.mrf.mxu0
      %v2635 = vadd.f32 0.0, %v2634
      %v2636 = vpop.f32.mrf.mxu0
      %2637 = vmatprep.mubr.f32.mxu0 0.0
      %2638 = vmatmul.mubr.f32.gmra.mxu0 %v2449
      %v2639 = vpop.f32.mrf.mxu0
      %v2640 = vadd.f32 0.0, %v2639
      %v2641 = vpop.f32.mrf.mxu0
      %2642 = vmatprep.mubr.f32.mxu0 0.0
      %2643 = vmatmul.mubr.f32.gmra.mxu0 %v2451
      %v2644 = vpop.f32.mrf.mxu0
      %v2645 = vadd.f32 0.0, %v2644
      %v2646 = vpop.f32.mrf.mxu0
      %2647 = vmatprep.mubr.f32.mxu0 0.0
      %2648 = vmatmul.mubr.f32.gmra.mxu0 %v2453
      %v2649 = vpop.f32.mrf.mxu0
      %v2650 = vadd.f32 0.0, %v2649
      %v2651 = vpop.f32.mrf.mxu0
      %2652 = vmatprep.mubr.f32.mxu0 0.0
      %2653 = vmatmul.mubr.f32.gmra.mxu0 %v2455
      %v2654 = vpop.f32.mrf.mxu0
      %v2655 = vadd.f32 0.0, %v2654
      %v2656 = vpop.f32.mrf.mxu0
      %2657 = vmatprep.mubr.f32.mxu0 0.0
      %2658 = vmatmul.mubr.f32.gmra.mxu0 %v2457
      %v2659 = vpop.f32.mrf.mxu0
      %v2660 = vadd.f32 0.0, %v2659
      %v2661 = vpop.f32.mrf.mxu0
      %2662 = vmatprep.mubr.f32.mxu0 0.0
      %2663 = vmatmul.mubr.f32.gmra.mxu0 %v2459
      %v2664 = vpop.f32.mrf.mxu0
      %v2665 = vadd.f32 0.0, %v2664
      %v2666 = vpop.f32.mrf.mxu0
      %2667 = vmatprep.mubr.f32.mxu0 0.0
      %2668 = vmatmul.mubr.f32.gmra.mxu0 %v2461
      %v2669 = vpop.f32.mrf.mxu0
      %v2670 = vadd.f32 0.0, %v2669
      %v2671 = vpop.f32.mrf.mxu0
      %2672 = vmatprep.mubr.f32.mxu0 0.0
      %2673 = vmatmul.mubr.f32.gmra.mxu0 %v2463
      %v2674 = vpop.f32.mrf.mxu0
      %v2675 = vadd.f32 0.0, %v2674
      %v2676 = vpop.f32.mrf.mxu0
      %2677 = vmatprep.mubr.f32.mxu0 0.0
      %2678 = vmatmul.mubr.f32.gmra.mxu0 %v2465
      %v2679 = vpop.f32.mrf.mxu0
      %v2680 = vadd.f32 0.0, %v2679
      %v2681 = vpop.f32.mrf.mxu0
      %2682 = vmatprep.mubr.f32.mxu0 0.0
      %2683 = vmatmul.mubr.f32.gmra.mxu0 %v2467
      %v2684 = vpop.f32.mrf.mxu0
      %v2685 = vadd.f32 0.0, %v2684
      %v2686 = vpop.f32.mrf.mxu0
      %2687 = vmatprep.mubr.f32.mxu0 0.0
      %2688 = vmatmul.mubr.f32.gmra.mxu0 %v2469
      %v2689 = vpop.f32.mrf.mxu0
      %v2690 = vadd.f32 0.0, %v2689
      %v2691 = vpop.f32.mrf.mxu0
      %2692 = vmatprep.mubr.f32.mxu0 0.0
      %2693 = vmatmul.mubr.f32.gmra.mxu0 %v2471
      %v2694 = vpop.f32.mrf.mxu0
      %v2695 = vadd.f32 0.0, %v2694
      %v2696 = vpop.f32.mrf.mxu0
      %2697 = vmatprep.mubr.f32.mxu0 0.0
      %2698 = vmatmul.mubr.f32.gmra.mxu0 %v2473
      %v2699 = vpop.f32.mrf.mxu0
      %v2700 = vadd.f32 0.0, %v2699
      %v2701 = vpop.f32.mrf.mxu0
      %2702 = vdwg.mxu0
      %v2703 = vadd.f32 %v2297, %v2545
      %v2704 = vadd.f32 %v2298, %v2550
      %v2705 = vadd.f32 %v2299, %v2555
      %v2706 = vadd.f32 %v2300, %v2560
      %v2707 = vadd.f32 %v2301, %v2565
      %v2708 = vadd.f32 %v2302, %v2570
      %v2709 = vadd.f32 %v2303, %v2575
      %v2710 = vadd.f32 %v2304, %v2580
      %v2711 = vadd.f32 %v2305, %v2585
      %v2712 = vadd.f32 %v2306, %v2590
      %v2713 = vadd.f32 %v2307, %v2595
      %v2714 = vadd.f32 %v2308, %v2600
      %v2715 = vadd.f32 %v2309, %v2605
      %v2716 = vadd.f32 %v2310, %v2610
      %v2717 = vadd.f32 %v2311, %v2615
      %v2718 = vadd.f32 %v2312, %v2620
      %v2719 = vadd.f32 %v2313, %v2625
      %v2720 = vadd.f32 %v2314, %v2630
      %v2721 = vadd.f32 %v2315, %v2635
      %v2722 = vadd.f32 %v2316, %v2640
      %v2723 = vadd.f32 %v2317, %v2645
      %v2724 = vadd.f32 %v2318, %v2650
      %v2725 = vadd.f32 %v2319, %v2655
      %v2726 = vadd.f32 %v2320, %v2660
      %v2727 = vadd.f32 %v2321, %v2665
      %v2728 = vadd.f32 %v2322, %v2670
      %v2729 = vadd.f32 %v2323, %v2675
      %v2730 = vadd.f32 %v2324, %v2680
      %v2731 = vadd.f32 %v2325, %v2685
      %v2732 = vadd.f32 %v2326, %v2690
      %v2733 = vadd.f32 %v2327, %v2695
      %v2734 = vadd.f32 %v2328, %v2700
      %s2735 = scalar_lea.vmem %s234, 48
      %v2736 = vld [vmem:[%s2735] sm:$0xff]
      %v2737 = vld [vmem:[%s2735 + $0x8] sm:$0xff]
      %v2738 = vld [vmem:[%s2735 + $0x10] sm:$0x3]
      %v2739 = vld [vmem:[%s2735 + $0x18] sm:$0xff]
      %v2740 = vld [vmem:[%s2735 + $0x20] sm:$0xff]
      %v2741 = vld [vmem:[%s2735 + $0x28] sm:$0x3]
      %v2742 = vld [vmem:[%s2735 + $0x30] sm:$0xff]
      %v2743 = vld [vmem:[%s2735 + $0x38] sm:$0xff]
      %v2744 = vld [vmem:[%s2735 + $0x40] sm:$0x3]
      %v2745 = vld [vmem:[%s2735 + $0x48] sm:$0xff]
      %v2746 = vld [vmem:[%s2735 + $0x50] sm:$0xff]
      %v2747 = vld [vmem:[%s2735 + $0x58] sm:$0x3]
      %v2748 = vld [vmem:[%s2735 + $0x60] sm:$0xff]
      %v2749 = vld [vmem:[%s2735 + $0x68] sm:$0xff]
      %v2750 = vld [vmem:[%s2735 + $0x70] sm:$0x3]
      %v2751 = vld [vmem:[%s2735 + $0x78] sm:$0xff]
      %v2752 = vld [vmem:[%s2735 + $0x80] sm:$0xff]
      %v2753 = vld [vmem:[%s2735 + $0x88] sm:$0x3]
      %v2754 = vld [vmem:[%s2735 + $0x90] sm:$0xff]
      %v2755 = vld [vmem:[%s2735 + $0x98] sm:$0xff]
      %v2756 = vld [vmem:[%s2735 + $0xa0] sm:$0x3]
      %v2757 = vld [vmem:[%s2735 + $0xa8] sm:$0xff]
      %v2758 = vld [vmem:[%s2735 + $0xb0] sm:$0xff]
      %v2759 = vld [vmem:[%s2735 + $0xb8] sm:$0x3]
      %v2760 = vld [vmem:[%s2735 + $0xc0] sm:$0xff]
      %v2761 = vld [vmem:[%s2735 + $0xc8] sm:$0xff]
      %v2762 = vld [vmem:[%s2735 + $0xd0] sm:$0x3]
      %v2763 = vld [vmem:[%s2735 + $0xd8] sm:$0xff]
      %v2764 = vld [vmem:[%s2735 + $0xe0] sm:$0xff]
      %v2765 = vld [vmem:[%s2735 + $0xe8] sm:$0x3]
      %v2766 = vld [vmem:[%s2735 + $0xf0] sm:$0xff]
      %v2767 = vld [vmem:[%s2735 + $0xf8] sm:$0xff]
      %v2768 = vld [vmem:[%s2735 + $0x100] sm:$0x3]
      %v2769 = vld [vmem:[%s2735 + $0x108] sm:$0xff]
      %v2770 = vld [vmem:[%s2735 + $0x110] sm:$0xff]
      %v2771 = vld [vmem:[%s2735 + $0x118] sm:$0x3]
      %v2772 = vld [vmem:[%s2735 + $0x120] sm:$0xff]
      %v2773 = vld [vmem:[%s2735 + $0x128] sm:$0xff]
      %v2774 = vld [vmem:[%s2735 + $0x130] sm:$0x3]
      %v2775 = vld [vmem:[%s2735 + $0x138] sm:$0xff]
      %v2776 = vld [vmem:[%s2735 + $0x140] sm:$0xff]
      %v2777 = vld [vmem:[%s2735 + $0x148] sm:$0x3]
      %v2778 = vld [vmem:[%s2735 + $0x150] sm:$0xff]
      %v2779 = vld [vmem:[%s2735 + $0x158] sm:$0xff]
      %v2780 = vld [vmem:[%s2735 + $0x160] sm:$0x3]
      %v2781 = vld [vmem:[%s2735 + $0x168] sm:$0xff]
      %v2782 = vld [vmem:[%s2735 + $0x170] sm:$0xff]
      %v2783 = vld [vmem:[%s2735 + $0x178] sm:$0x3]
      %s2784 = scalar_lea.vmem %s238, 24
      %v2785 = vld [vmem:[%s2784] sm:$0xf]
      %v2787 = vsel %vm312, %v2736, 0
      %v2790 = vsel %vm312, %v2737, 0
      %v2793 = vsel %vm312, %v2739, 0
      %v2796 = vsel %vm312, %v2740, 0
      %v2799 = vsel %vm312, %v2742, 0
      %v2802 = vsel %vm312, %v2743, 0
      %v2805 = vsel %vm312, %v2745, 0
      %v2808 = vsel %vm312, %v2746, 0
      %v2811 = vsel %vm312, %v2748, 0
      %v2814 = vsel %vm312, %v2749, 0
      %v2817 = vsel %vm312, %v2751, 0
      %v2820 = vsel %vm312, %v2752, 0
      %v2823 = vsel %vm312, %v2754, 0
      %v2826 = vsel %vm312, %v2755, 0
      %v2829 = vsel %vm312, %v2757, 0
      %v2832 = vsel %vm312, %v2758, 0
      %v2835 = vsel %vm312, %v2760, 0
      %v2838 = vsel %vm312, %v2761, 0
      %v2841 = vsel %vm312, %v2763, 0
      %v2844 = vsel %vm312, %v2764, 0
      %v2847 = vsel %vm312, %v2766, 0
      %v2850 = vsel %vm312, %v2767, 0
      %v2853 = vsel %vm312, %v2769, 0
      %v2856 = vsel %vm312, %v2770, 0
      %v2859 = vsel %vm312, %v2772, 0
      %v2862 = vsel %vm312, %v2773, 0
      %v2865 = vsel %vm312, %v2775, 0
      %v2868 = vsel %vm312, %v2776, 0
      %v2871 = vsel %vm312, %v2778, 0
      %v2874 = vsel %vm312, %v2779, 0
      %v2877 = vsel %vm312, %v2781, 0
      %v2880 = vsel %vm312, %v2782, 0
      %v2883 = vsel %vm409, %v2785, 0
      %2885 = vmatprep.subr.mxu0 0.0
      %2886 = vmatpush1.msra.mxu0 0.0
      %2887 = vmatprep.subr.mxu0 0.0
      %2888 = vmatpush1.msra.mxu0 0.0
      %2889 = vmatprep.subr.mxu0 0.0
      %2890 = vmatpush1.msra.mxu0 0.0
      %2891 = vmatprep.subr.mxu0 0.0
      %2892 = vmatpush1.msra.mxu0 0.0
      %2893 = vmatprep.subr.mxu0 0.0
      %2894 = vmatpush1.msra.mxu0 0.0
      %2895 = vmatprep.subr.mxu0 0.0
      %2896 = vmatpush1.msra.mxu0 0.0
      %2897 = vmatprep.subr.mxu0 0.0
      %2898 = vmatpush1.msra.mxu0 0.0
      %2899 = vmatprep.subr.mxu0 0.0
      %2900 = vmatpush1.msra.mxu0 0.0
      %2901 = vmatprep.subr.mxu0 0.0
      %2902 = vmatpush1.msra.mxu0 0.0
      %2903 = vmatprep.subr.mxu0 0.0
      %2904 = vmatpush1.msra.mxu0 0.0
      %2905 = vmatprep.subr.mxu0 0.0
      %2906 = vmatpush1.msra.mxu0 0.0
      %2907 = vmatprep.subr.mxu0 0.0
      %2908 = vmatpush1.msra.mxu0 0.0
      %2909 = vmatprep.subr.mxu0 0.0
      %2910 = vmatpush1.msra.mxu0 0.0
      %2911 = vmatprep.subr.mxu0 0.0
      %2912 = vmatpush1.msra.mxu0 0.0
      %2913 = vmatprep.subr.mxu0 0.0
      %2914 = vmatpush1.msra.mxu0 0.0
      %2915 = vmatprep.subr.mxu0 0.0
      %2916 = vmatpush1.msra.mxu0 %v2883
      %2917 = vmatprep.subr.mxu0 0.0
      %2918 = vmatpush2.msra.mxu0 0.0
      %2919 = vmatprep.subr.mxu0 0.0
      %2920 = vmatpush2.msra.mxu0 0.0
      %2921 = vmatprep.subr.mxu0 0.0
      %2922 = vmatpush2.msra.mxu0 0.0
      %2923 = vmatprep.subr.mxu0 0.0
      %2924 = vmatpush2.msra.mxu0 0.0
      %2925 = vmatprep.subr.mxu0 0.0
      %2926 = vmatpush2.msra.mxu0 0.0
      %2927 = vmatprep.subr.mxu0 0.0
      %2928 = vmatpush2.msra.mxu0 0.0
      %2929 = vmatprep.subr.mxu0 0.0
      %2930 = vmatpush2.msra.mxu0 0.0
      %2931 = vmatprep.subr.mxu0 0.0
      %2932 = vmatpush2.msra.mxu0 0.0
      %2933 = vmatprep.subr.mxu0 0.0
      %2934 = vmatpush2.msra.mxu0 0.0
      %2935 = vmatprep.subr.mxu0 0.0
      %2936 = vmatpush2.msra.mxu0 0.0
      %2937 = vmatprep.subr.mxu0 0.0
      %2938 = vmatpush2.msra.mxu0 0.0
      %2939 = vmatprep.subr.mxu0 0.0
      %2940 = vmatpush2.msra.mxu0 0.0
      %2941 = vmatprep.subr.mxu0 0.0
      %2942 = vmatpush2.msra.mxu0 0.0
      %2943 = vmatprep.subr.mxu0 0.0
      %2944 = vmatpush2.msra.mxu0 0.0
      %2945 = vmatprep.subr.mxu0 0.0
      %2946 = vmatpush2.msra.mxu0 0.0
      %2947 = vmatprep.subr.mxu0 0.0
      %2948 = vmatpush2.msra.mxu0 0.0
      %2949 = vmatprep.mubr.f32.mxu0 0.0
      %2950 = vmatmul.mubr.f32.gmra.mxu0 %v2787
      %v2951 = vpop.f32.mrf.mxu0
      %v2952 = vadd.f32 0.0, %v2951
      %v2953 = vpop.f32.mrf.mxu0
      %2954 = vmatprep.mubr.f32.mxu0 0.0
      %2955 = vmatmul.mubr.f32.gmra.mxu0 %v2790
      %v2956 = vpop.f32.mrf.mxu0
      %v2957 = vadd.f32 0.0, %v2956
      %v2958 = vpop.f32.mrf.mxu0
      %2959 = vmatprep.mubr.f32.mxu0 0.0
      %2960 = vmatmul.mubr.f32.gmra.mxu0 %v2793
      %v2961 = vpop.f32.mrf.mxu0
      %v2962 = vadd.f32 0.0, %v2961
      %v2963 = vpop.f32.mrf.mxu0
      %2964 = vmatprep.mubr.f32.mxu0 0.0
      %2965 = vmatmul.mubr.f32.gmra.mxu0 %v2796
      %v2966 = vpop.f32.mrf.mxu0
      %v2967 = vadd.f32 0.0, %v2966
      %v2968 = vpop.f32.mrf.mxu0
      %2969 = vmatprep.mubr.f32.mxu0 0.0
      %2970 = vmatmul.mubr.f32.gmra.mxu0 %v2799
      %v2971 = vpop.f32.mrf.mxu0
      %v2972 = vadd.f32 0.0, %v2971
      %v2973 = vpop.f32.mrf.mxu0
      %2974 = vmatprep.mubr.f32.mxu0 0.0
      %2975 = vmatmul.mubr.f32.gmra.mxu0 %v2802
      %v2976 = vpop.f32.mrf.mxu0
      %v2977 = vadd.f32 0.0, %v2976
      %v2978 = vpop.f32.mrf.mxu0
      %2979 = vmatprep.mubr.f32.mxu0 0.0
      %2980 = vmatmul.mubr.f32.gmra.mxu0 %v2805
      %v2981 = vpop.f32.mrf.mxu0
      %v2982 = vadd.f32 0.0, %v2981
      %v2983 = vpop.f32.mrf.mxu0
      %2984 = vmatprep.mubr.f32.mxu0 0.0
      %2985 = vmatmul.mubr.f32.gmra.mxu0 %v2808
      %v2986 = vpop.f32.mrf.mxu0
      %v2987 = vadd.f32 0.0, %v2986
      %v2988 = vpop.f32.mrf.mxu0
      %2989 = vmatprep.mubr.f32.mxu0 0.0
      %2990 = vmatmul.mubr.f32.gmra.mxu0 %v2811
      %v2991 = vpop.f32.mrf.mxu0
      %v2992 = vadd.f32 0.0, %v2991
      %v2993 = vpop.f32.mrf.mxu0
      %2994 = vmatprep.mubr.f32.mxu0 0.0
      %2995 = vmatmul.mubr.f32.gmra.mxu0 %v2814
      %v2996 = vpop.f32.mrf.mxu0
      %v2997 = vadd.f32 0.0, %v2996
      %v2998 = vpop.f32.mrf.mxu0
      %2999 = vmatprep.mubr.f32.mxu0 0.0
      %3000 = vmatmul.mubr.f32.gmra.mxu0 %v2817
      %v3001 = vpop.f32.mrf.mxu0
      %v3002 = vadd.f32 0.0, %v3001
      %v3003 = vpop.f32.mrf.mxu0
      %3004 = vmatprep.mubr.f32.mxu0 0.0
      %3005 = vmatmul.mubr.f32.gmra.mxu0 %v2820
      %v3006 = vpop.f32.mrf.mxu0
      %v3007 = vadd.f32 0.0, %v3006
      %v3008 = vpop.f32.mrf.mxu0
      %3009 = vmatprep.mubr.f32.mxu0 0.0
      %3010 = vmatmul.mubr.f32.gmra.mxu0 %v2823
      %v3011 = vpop.f32.mrf.mxu0
      %v3012 = vadd.f32 0.0, %v3011
      %v3013 = vpop.f32.mrf.mxu0
      %3014 = vmatprep.mubr.f32.mxu0 0.0
      %3015 = vmatmul.mubr.f32.gmra.mxu0 %v2826
      %v3016 = vpop.f32.mrf.mxu0
      %v3017 = vadd.f32 0.0, %v3016
      %v3018 = vpop.f32.mrf.mxu0
      %3019 = vmatprep.mubr.f32.mxu0 0.0
      %3020 = vmatmul.mubr.f32.gmra.mxu0 %v2829
      %v3021 = vpop.f32.mrf.mxu0
      %v3022 = vadd.f32 0.0, %v3021
      %v3023 = vpop.f32.mrf.mxu0
      %3024 = vmatprep.mubr.f32.mxu0 0.0
      %3025 = vmatmul.mubr.f32.gmra.mxu0 %v2832
      %v3026 = vpop.f32.mrf.mxu0
      %v3027 = vadd.f32 0.0, %v3026
      %v3028 = vpop.f32.mrf.mxu0
      %3029 = vmatprep.mubr.f32.mxu0 0.0
      %3030 = vmatmul.mubr.f32.gmra.mxu0 %v2835
      %v3031 = vpop.f32.mrf.mxu0
      %v3032 = vadd.f32 0.0, %v3031
      %v3033 = vpop.f32.mrf.mxu0
      %3034 = vmatprep.mubr.f32.mxu0 0.0
      %3035 = vmatmul.mubr.f32.gmra.mxu0 %v2838
      %v3036 = vpop.f32.mrf.mxu0
      %v3037 = vadd.f32 0.0, %v3036
      %v3038 = vpop.f32.mrf.mxu0
      %3039 = vmatprep.mubr.f32.mxu0 0.0
      %3040 = vmatmul.mubr.f32.gmra.mxu0 %v2841
      %v3041 = vpop.f32.mrf.mxu0
      %v3042 = vadd.f32 0.0, %v3041
      %v3043 = vpop.f32.mrf.mxu0
      %3044 = vmatprep.mubr.f32.mxu0 0.0
      %3045 = vmatmul.mubr.f32.gmra.mxu0 %v2844
      %v3046 = vpop.f32.mrf.mxu0
      %v3047 = vadd.f32 0.0, %v3046
      %v3048 = vpop.f32.mrf.mxu0
      %3049 = vmatprep.mubr.f32.mxu0 0.0
      %3050 = vmatmul.mubr.f32.gmra.mxu0 %v2847
      %v3051 = vpop.f32.mrf.mxu0
      %v3052 = vadd.f32 0.0, %v3051
      %v3053 = vpop.f32.mrf.mxu0
      %3054 = vmatprep.mubr.f32.mxu0 0.0
      %3055 = vmatmul.mubr.f32.gmra.mxu0 %v2850
      %v3056 = vpop.f32.mrf.mxu0
      %v3057 = vadd.f32 0.0, %v3056
      %v3058 = vpop.f32.mrf.mxu0
      %3059 = vmatprep.mubr.f32.mxu0 0.0
      %3060 = vmatmul.mubr.f32.gmra.mxu0 %v2853
      %v3061 = vpop.f32.mrf.mxu0
      %v3062 = vadd.f32 0.0, %v3061
      %v3063 = vpop.f32.mrf.mxu0
      %3064 = vmatprep.mubr.f32.mxu0 0.0
      %3065 = vmatmul.mubr.f32.gmra.mxu0 %v2856
      %v3066 = vpop.f32.mrf.mxu0
      %v3067 = vadd.f32 0.0, %v3066
      %v3068 = vpop.f32.mrf.mxu0
      %3069 = vmatprep.mubr.f32.mxu0 0.0
      %3070 = vmatmul.mubr.f32.gmra.mxu0 %v2859
      %v3071 = vpop.f32.mrf.mxu0
      %v3072 = vadd.f32 0.0, %v3071
      %v3073 = vpop.f32.mrf.mxu0
      %3074 = vmatprep.mubr.f32.mxu0 0.0
      %3075 = vmatmul.mubr.f32.gmra.mxu0 %v2862
      %v3076 = vpop.f32.mrf.mxu0
      %v3077 = vadd.f32 0.0, %v3076
      %v3078 = vpop.f32.mrf.mxu0
      %3079 = vmatprep.mubr.f32.mxu0 0.0
      %3080 = vmatmul.mubr.f32.gmra.mxu0 %v2865
      %v3081 = vpop.f32.mrf.mxu0
      %v3082 = vadd.f32 0.0, %v3081
      %v3083 = vpop.f32.mrf.mxu0
      %3084 = vmatprep.mubr.f32.mxu0 0.0
      %3085 = vmatmul.mubr.f32.gmra.mxu0 %v2868
      %v3086 = vpop.f32.mrf.mxu0
      %v3087 = vadd.f32 0.0, %v3086
      %v3088 = vpop.f32.mrf.mxu0
      %3089 = vmatprep.mubr.f32.mxu0 0.0
      %3090 = vmatmul.mubr.f32.gmra.mxu0 %v2871
      %v3091 = vpop.f32.mrf.mxu0
      %v3092 = vadd.f32 0.0, %v3091
      %v3093 = vpop.f32.mrf.mxu0
      %3094 = vmatprep.mubr.f32.mxu0 0.0
      %3095 = vmatmul.mubr.f32.gmra.mxu0 %v2874
      %v3096 = vpop.f32.mrf.mxu0
      %v3097 = vadd.f32 0.0, %v3096
      %v3098 = vpop.f32.mrf.mxu0
      %3099 = vmatprep.mubr.f32.mxu0 0.0
      %3100 = vmatmul.mubr.f32.gmra.mxu0 %v2877
      %v3101 = vpop.f32.mrf.mxu0
      %v3102 = vadd.f32 0.0, %v3101
      %v3103 = vpop.f32.mrf.mxu0
      %3104 = vmatprep.mubr.f32.mxu0 0.0
      %3105 = vmatmul.mubr.f32.gmra.mxu0 %v2880
      %v3106 = vpop.f32.mrf.mxu0
      %v3107 = vadd.f32 0.0, %v3106
      %v3108 = vpop.f32.mrf.mxu0
      %3109 = vdwg.mxu0
      %v3110 = vadd.f32 %v2703, %v2952
      %v3111 = vadd.f32 %v2704, %v2957
      %v3112 = vadd.f32 %v2705, %v2962
      %v3113 = vadd.f32 %v2706, %v2967
      %v3114 = vadd.f32 %v2707, %v2972
      %v3115 = vadd.f32 %v2708, %v2977
      %v3116 = vadd.f32 %v2709, %v2982
      %v3117 = vadd.f32 %v2710, %v2987
      %v3118 = vadd.f32 %v2711, %v2992
      %v3119 = vadd.f32 %v2712, %v2997
      %v3120 = vadd.f32 %v2713, %v3002
      %v3121 = vadd.f32 %v2714, %v3007
      %v3122 = vadd.f32 %v2715, %v3012
      %v3123 = vadd.f32 %v2716, %v3017
      %v3124 = vadd.f32 %v2717, %v3022
      %v3125 = vadd.f32 %v2718, %v3027
      %v3126 = vadd.f32 %v2719, %v3032
      %v3127 = vadd.f32 %v2720, %v3037
      %v3128 = vadd.f32 %v2721, %v3042
      %v3129 = vadd.f32 %v2722, %v3047
      %v3130 = vadd.f32 %v2723, %v3052
      %v3131 = vadd.f32 %v2724, %v3057
      %v3132 = vadd.f32 %v2725, %v3062
      %v3133 = vadd.f32 %v2726, %v3067
      %v3134 = vadd.f32 %v2727, %v3072
      %v3135 = vadd.f32 %v2728, %v3077
      %v3136 = vadd.f32 %v2729, %v3082
      %v3137 = vadd.f32 %v2730, %v3087
      %v3138 = vadd.f32 %v2731, %v3092
      %v3139 = vadd.f32 %v2732, %v3097
      %v3140 = vadd.f32 %v2733, %v3102
      %v3141 = vadd.f32 %v2734, %v3107
      %s3142 = scalar_lea.vmem %s238, 28
      %v3143 = vld [vmem:[%s3142] sm:$0xf]
      %v3160 = vrot.slane %v2736, 1
      %v3161 = vrot.slane %v2737, 1
      %v3162 = vsel %vm688, %v3160, %v3161
      %v3163 = vrot.slane %v2738, 1
      %v3164 = vsel %vm688, %v3161, %v3163
      %v3165 = vrot.slane %v2739, 1
      %v3166 = vrot.slane %v2740, 1
      %v3167 = vsel %vm688, %v3165, %v3166
      %v3168 = vrot.slane %v2741, 1
      %v3169 = vsel %vm688, %v3166, %v3168
      %v3170 = vrot.slane %v2742, 1
      %v3171 = vrot.slane %v2743, 1
      %v3172 = vsel %vm688, %v3170, %v3171
      %v3173 = vrot.slane %v2744, 1
      %v3174 = vsel %vm688, %v3171, %v3173
      %v3175 = vrot.slane %v2745, 1
      %v3176 = vrot.slane %v2746, 1
      %v3177 = vsel %vm688, %v3175, %v3176
      %v3178 = vrot.slane %v2747, 1
      %v3179 = vsel %vm688, %v3176, %v3178
      %v3180 = vrot.slane %v2748, 1
      %v3181 = vrot.slane %v2749, 1
      %v3182 = vsel %vm688, %v3180, %v3181
      %v3183 = vrot.slane %v2750, 1
      %v3184 = vsel %vm688, %v3181, %v3183
      %v3185 = vrot.slane %v2751, 1
      %v3186 = vrot.slane %v2752, 1
      %v3187 = vsel %vm688, %v3185, %v3186
      %v3188 = vrot.slane %v2753, 1
      %v3189 = vsel %vm688, %v3186, %v3188
      %v3190 = vrot.slane %v2754, 1
      %v3191 = vrot.slane %v2755, 1
      %v3192 = vsel %vm688, %v3190, %v3191
      %v3193 = vrot.slane %v2756, 1
      %v3194 = vsel %vm688, %v3191, %v3193
      %v3195 = vrot.slane %v2757, 1
      %v3196 = vrot.slane %v2758, 1
      %v3197 = vsel %vm688, %v3195, %v3196
      %v3198 = vrot.slane %v2759, 1
      %v3199 = vsel %vm688, %v3196, %v3198
      %v3200 = vrot.slane %v2760, 1
      %v3201 = vrot.slane %v2761, 1
      %v3202 = vsel %vm688, %v3200, %v3201
      %v3203 = vrot.slane %v2762, 1
      %v3204 = vsel %vm688, %v3201, %v3203
      %v3205 = vrot.slane %v2763, 1
      %v3206 = vrot.slane %v2764, 1
      %v3207 = vsel %vm688, %v3205, %v3206
      %v3208 = vrot.slane %v2765, 1
      %v3209 = vsel %vm688, %v3206, %v3208
      %v3210 = vrot.slane %v2766, 1
      %v3211 = vrot.slane %v2767, 1
      %v3212 = vsel %vm688, %v3210, %v3211
      %v3213 = vrot.slane %v2768, 1
      %v3214 = vsel %vm688, %v3211, %v3213
      %v3215 = vrot.slane %v2769, 1
      %v3216 = vrot.slane %v2770, 1
      %v3217 = vsel %vm688, %v3215, %v3216
      %v3218 = vrot.slane %v2771, 1
      %v3219 = vsel %vm688, %v3216, %v3218
      %v3220 = vrot.slane %v2772, 1
      %v3221 = vrot.slane %v2773, 1
      %v3222 = vsel %vm688, %v3220, %v3221
      %v3223 = vrot.slane %v2774, 1
      %v3224 = vsel %vm688, %v3221, %v3223
      %v3225 = vrot.slane %v2775, 1
      %v3226 = vrot.slane %v2776, 1
      %v3227 = vsel %vm688, %v3225, %v3226
      %v3228 = vrot.slane %v2777, 1
      %v3229 = vsel %vm688, %v3226, %v3228
      %v3230 = vrot.slane %v2778, 1
      %v3231 = vrot.slane %v2779, 1
      %v3232 = vsel %vm688, %v3230, %v3231
      %v3233 = vrot.slane %v2780, 1
      %v3234 = vsel %vm688, %v3231, %v3233
      %v3235 = vrot.slane %v2781, 1
      %v3236 = vrot.slane %v2782, 1
      %v3237 = vsel %vm688, %v3235, %v3236
      %v3238 = vrot.slane %v2783, 1
      %v3239 = vsel %vm688, %v3236, %v3238
      %v3240 = vsel %vm312, %v3162, 0
      %v3242 = vsel %vm312, %v3164, 0
      %v3244 = vsel %vm312, %v3167, 0
      %v3246 = vsel %vm312, %v3169, 0
      %v3248 = vsel %vm312, %v3172, 0
      %v3250 = vsel %vm312, %v3174, 0
      %v3252 = vsel %vm312, %v3177, 0
      %v3254 = vsel %vm312, %v3179, 0
      %v3256 = vsel %vm312, %v3182, 0
      %v3258 = vsel %vm312, %v3184, 0
      %v3260 = vsel %vm312, %v3187, 0
      %v3262 = vsel %vm312, %v3189, 0
      %v3264 = vsel %vm312, %v3192, 0
      %v3266 = vsel %vm312, %v3194, 0
      %v3268 = vsel %vm312, %v3197, 0
      %v3270 = vsel %vm312, %v3199, 0
      %v3272 = vsel %vm312, %v3202, 0
      %v3274 = vsel %vm312, %v3204, 0
      %v3276 = vsel %vm312, %v3207, 0
      %v3278 = vsel %vm312, %v3209, 0
      %v3280 = vsel %vm312, %v3212, 0
      %v3282 = vsel %vm312, %v3214, 0
      %v3284 = vsel %vm312, %v3217, 0
      %v3286 = vsel %vm312, %v3219, 0
      %v3288 = vsel %vm312, %v3222, 0
      %v3290 = vsel %vm312, %v3224, 0
      %v3292 = vsel %vm312, %v3227, 0
      %v3294 = vsel %vm312, %v3229, 0
      %v3296 = vsel %vm312, %v3232, 0
      %v3298 = vsel %vm312, %v3234, 0
      %v3300 = vsel %vm312, %v3237, 0
      %v3302 = vsel %vm312, %v3239, 0
      %v3305 = vsel %vm409, %v3143, 0
      %3307 = vmatprep.subr.mxu0 0.0
      %3308 = vmatpush1.msra.mxu0 0.0
      %3309 = vmatprep.subr.mxu0 0.0
      %3310 = vmatpush1.msra.mxu0 0.0
      %3311 = vmatprep.subr.mxu0 0.0
      %3312 = vmatpush1.msra.mxu0 0.0
      %3313 = vmatprep.subr.mxu0 0.0
      %3314 = vmatpush1.msra.mxu0 0.0
      %3315 = vmatprep.subr.mxu0 0.0
      %3316 = vmatpush1.msra.mxu0 0.0
      %3317 = vmatprep.subr.mxu0 0.0
      %3318 = vmatpush1.msra.mxu0 0.0
      %3319 = vmatprep.subr.mxu0 0.0
      %3320 = vmatpush1.msra.mxu0 0.0
      %3321 = vmatprep.subr.mxu0 0.0
      %3322 = vmatpush1.msra.mxu0 0.0
      %3323 = vmatprep.subr.mxu0 0.0
      %3324 = vmatpush1.msra.mxu0 0.0
      %3325 = vmatprep.subr.mxu0 0.0
      %3326 = vmatpush1.msra.mxu0 0.0
      %3327 = vmatprep.subr.mxu0 0.0
      %3328 = vmatpush1.msra.mxu0 0.0
      %3329 = vmatprep.subr.mxu0 0.0
      %3330 = vmatpush1.msra.mxu0 0.0
      %3331 = vmatprep.subr.mxu0 0.0
      %3332 = vmatpush1.msra.mxu0 0.0
      %3333 = vmatprep.subr.mxu0 0.0
      %3334 = vmatpush1.msra.mxu0 0.0
      %3335 = vmatprep.subr.mxu0 0.0
      %3336 = vmatpush1.msra.mxu0 0.0
      %3337 = vmatprep.subr.mxu0 0.0
      %3338 = vmatpush1.msra.mxu0 %v3305
      %3339 = vmatprep.subr.mxu0 0.0
      %3340 = vmatpush2.msra.mxu0 0.0
      %3341 = vmatprep.subr.mxu0 0.0
      %3342 = vmatpush2.msra.mxu0 0.0
      %3343 = vmatprep.subr.mxu0 0.0
      %3344 = vmatpush2.msra.mxu0 0.0
      %3345 = vmatprep.subr.mxu0 0.0
      %3346 = vmatpush2.msra.mxu0 0.0
      %3347 = vmatprep.subr.mxu0 0.0
      %3348 = vmatpush2.msra.mxu0 0.0
      %3349 = vmatprep.subr.mxu0 0.0
      %3350 = vmatpush2.msra.mxu0 0.0
      %3351 = vmatprep.subr.mxu0 0.0
      %3352 = vmatpush2.msra.mxu0 0.0
      %3353 = vmatprep.subr.mxu0 0.0
      %3354 = vmatpush2.msra.mxu0 0.0
      %3355 = vmatprep.subr.mxu0 0.0
      %3356 = vmatpush2.msra.mxu0 0.0
      %3357 = vmatprep.subr.mxu0 0.0
      %3358 = vmatpush2.msra.mxu0 0.0
      %3359 = vmatprep.subr.mxu0 0.0
      %3360 = vmatpush2.msra.mxu0 0.0
      %3361 = vmatprep.subr.mxu0 0.0
      %3362 = vmatpush2.msra.mxu0 0.0
      %3363 = vmatprep.subr.mxu0 0.0
      %3364 = vmatpush2.msra.mxu0 0.0
      %3365 = vmatprep.subr.mxu0 0.0
      %3366 = vmatpush2.msra.mxu0 0.0
      %3367 = vmatprep.subr.mxu0 0.0
      %3368 = vmatpush2.msra.mxu0 0.0
      %3369 = vmatprep.subr.mxu0 0.0
      %3370 = vmatpush2.msra.mxu0 0.0
      %3371 = vmatprep.mubr.f32.mxu0 0.0
      %3372 = vmatmul.mubr.f32.gmra.mxu0 %v3240
      %v3373 = vpop.f32.mrf.mxu0
      %v3374 = vadd.f32 0.0, %v3373
      %v3375 = vpop.f32.mrf.mxu0
      %3376 = vmatprep.mubr.f32.mxu0 0.0
      %3377 = vmatmul.mubr.f32.gmra.mxu0 %v3242
      %v3378 = vpop.f32.mrf.mxu0
      %v3379 = vadd.f32 0.0, %v3378
      %v3380 = vpop.f32.mrf.mxu0
      %3381 = vmatprep.mubr.f32.mxu0 0.0
      %3382 = vmatmul.mubr.f32.gmra.mxu0 %v3244
      %v3383 = vpop.f32.mrf.mxu0
      %v3384 = vadd.f32 0.0, %v3383
      %v3385 = vpop.f32.mrf.mxu0
      %3386 = vmatprep.mubr.f32.mxu0 0.0
      %3387 = vmatmul.mubr.f32.gmra.mxu0 %v3246
      %v3388 = vpop.f32.mrf.mxu0
      %v3389 = vadd.f32 0.0, %v3388
      %v3390 = vpop.f32.mrf.mxu0
      %3391 = vmatprep.mubr.f32.mxu0 0.0
      %3392 = vmatmul.mubr.f32.gmra.mxu0 %v3248
      %v3393 = vpop.f32.mrf.mxu0
      %v3394 = vadd.f32 0.0, %v3393
      %v3395 = vpop.f32.mrf.mxu0
      %3396 = vmatprep.mubr.f32.mxu0 0.0
      %3397 = vmatmul.mubr.f32.gmra.mxu0 %v3250
      %v3398 = vpop.f32.mrf.mxu0
      %v3399 = vadd.f32 0.0, %v3398
      %v3400 = vpop.f32.mrf.mxu0
      %3401 = vmatprep.mubr.f32.mxu0 0.0
      %3402 = vmatmul.mubr.f32.gmra.mxu0 %v3252
      %v3403 = vpop.f32.mrf.mxu0
      %v3404 = vadd.f32 0.0, %v3403
      %v3405 = vpop.f32.mrf.mxu0
      %3406 = vmatprep.mubr.f32.mxu0 0.0
      %3407 = vmatmul.mubr.f32.gmra.mxu0 %v3254
      %v3408 = vpop.f32.mrf.mxu0
      %v3409 = vadd.f32 0.0, %v3408
      %v3410 = vpop.f32.mrf.mxu0
      %3411 = vmatprep.mubr.f32.mxu0 0.0
      %3412 = vmatmul.mubr.f32.gmra.mxu0 %v3256
      %v3413 = vpop.f32.mrf.mxu0
      %v3414 = vadd.f32 0.0, %v3413
      %v3415 = vpop.f32.mrf.mxu0
      %3416 = vmatprep.mubr.f32.mxu0 0.0
      %3417 = vmatmul.mubr.f32.gmra.mxu0 %v3258
      %v3418 = vpop.f32.mrf.mxu0
      %v3419 = vadd.f32 0.0, %v3418
      %v3420 = vpop.f32.mrf.mxu0
      %3421 = vmatprep.mubr.f32.mxu0 0.0
      %3422 = vmatmul.mubr.f32.gmra.mxu0 %v3260
      %v3423 = vpop.f32.mrf.mxu0
      %v3424 = vadd.f32 0.0, %v3423
      %v3425 = vpop.f32.mrf.mxu0
      %3426 = vmatprep.mubr.f32.mxu0 0.0
      %3427 = vmatmul.mubr.f32.gmra.mxu0 %v3262
      %v3428 = vpop.f32.mrf.mxu0
      %v3429 = vadd.f32 0.0, %v3428
      %v3430 = vpop.f32.mrf.mxu0
      %3431 = vmatprep.mubr.f32.mxu0 0.0
      %3432 = vmatmul.mubr.f32.gmra.mxu0 %v3264
      %v3433 = vpop.f32.mrf.mxu0
      %v3434 = vadd.f32 0.0, %v3433
      %v3435 = vpop.f32.mrf.mxu0
      %3436 = vmatprep.mubr.f32.mxu0 0.0
      %3437 = vmatmul.mubr.f32.gmra.mxu0 %v3266
      %v3438 = vpop.f32.mrf.mxu0
      %v3439 = vadd.f32 0.0, %v3438
      %v3440 = vpop.f32.mrf.mxu0
      %3441 = vmatprep.mubr.f32.mxu0 0.0
      %3442 = vmatmul.mubr.f32.gmra.mxu0 %v3268
      %v3443 = vpop.f32.mrf.mxu0
      %v3444 = vadd.f32 0.0, %v3443
      %v3445 = vpop.f32.mrf.mxu0
      %3446 = vmatprep.mubr.f32.mxu0 0.0
      %3447 = vmatmul.mubr.f32.gmra.mxu0 %v3270
      %v3448 = vpop.f32.mrf.mxu0
      %v3449 = vadd.f32 0.0, %v3448
      %v3450 = vpop.f32.mrf.mxu0
      %3451 = vmatprep.mubr.f32.mxu0 0.0
      %3452 = vmatmul.mubr.f32.gmra.mxu0 %v3272
      %v3453 = vpop.f32.mrf.mxu0
      %v3454 = vadd.f32 0.0, %v3453
      %v3455 = vpop.f32.mrf.mxu0
      %3456 = vmatprep.mubr.f32.mxu0 0.0
      %3457 = vmatmul.mubr.f32.gmra.mxu0 %v3274
      %v3458 = vpop.f32.mrf.mxu0
      %v3459 = vadd.f32 0.0, %v3458
      %v3460 = vpop.f32.mrf.mxu0
      %3461 = vmatprep.mubr.f32.mxu0 0.0
      %3462 = vmatmul.mubr.f32.gmra.mxu0 %v3276
      %v3463 = vpop.f32.mrf.mxu0
      %v3464 = vadd.f32 0.0, %v3463
      %v3465 = vpop.f32.mrf.mxu0
      %3466 = vmatprep.mubr.f32.mxu0 0.0
      %3467 = vmatmul.mubr.f32.gmra.mxu0 %v3278
      %v3468 = vpop.f32.mrf.mxu0
      %v3469 = vadd.f32 0.0, %v3468
      %v3470 = vpop.f32.mrf.mxu0
      %3471 = vmatprep.mubr.f32.mxu0 0.0
      %3472 = vmatmul.mubr.f32.gmra.mxu0 %v3280
      %v3473 = vpop.f32.mrf.mxu0
      %v3474 = vadd.f32 0.0, %v3473
      %v3475 = vpop.f32.mrf.mxu0
      %3476 = vmatprep.mubr.f32.mxu0 0.0
      %3477 = vmatmul.mubr.f32.gmra.mxu0 %v3282
      %v3478 = vpop.f32.mrf.mxu0
      %v3479 = vadd.f32 0.0, %v3478
      %v3480 = vpop.f32.mrf.mxu0
      %3481 = vmatprep.mubr.f32.mxu0 0.0
      %3482 = vmatmul.mubr.f32.gmra.mxu0 %v3284
      %v3483 = vpop.f32.mrf.mxu0
      %v3484 = vadd.f32 0.0, %v3483
      %v3485 = vpop.f32.mrf.mxu0
      %3486 = vmatprep.mubr.f32.mxu0 0.0
      %3487 = vmatmul.mubr.f32.gmra.mxu0 %v3286
      %v3488 = vpop.f32.mrf.mxu0
      %v3489 = vadd.f32 0.0, %v3488
      %v3490 = vpop.f32.mrf.mxu0
      %3491 = vmatprep.mubr.f32.mxu0 0.0
      %3492 = vmatmul.mubr.f32.gmra.mxu0 %v3288
      %v3493 = vpop.f32.mrf.mxu0
      %v3494 = vadd.f32 0.0, %v3493
      %v3495 = vpop.f32.mrf.mxu0
      %3496 = vmatprep.mubr.f32.mxu0 0.0
      %3497 = vmatmul.mubr.f32.gmra.mxu0 %v3290
      %v3498 = vpop.f32.mrf.mxu0
      %v3499 = vadd.f32 0.0, %v3498
      %v3500 = vpop.f32.mrf.mxu0
      %3501 = vmatprep.mubr.f32.mxu0 0.0
      %3502 = vmatmul.mubr.f32.gmra.mxu0 %v3292
      %v3503 = vpop.f32.mrf.mxu0
      %v3504 = vadd.f32 0.0, %v3503
      %v3505 = vpop.f32.mrf.mxu0
      %3506 = vmatprep.mubr.f32.mxu0 0.0
      %3507 = vmatmul.mubr.f32.gmra.mxu0 %v3294
      %v3508 = vpop.f32.mrf.mxu0
      %v3509 = vadd.f32 0.0, %v3508
      %v3510 = vpop.f32.mrf.mxu0
      %3511 = vmatprep.mubr.f32.mxu0 0.0
      %3512 = vmatmul.mubr.f32.gmra.mxu0 %v3296
      %v3513 = vpop.f32.mrf.mxu0
      %v3514 = vadd.f32 0.0, %v3513
      %v3515 = vpop.f32.mrf.mxu0
      %3516 = vmatprep.mubr.f32.mxu0 0.0
      %3517 = vmatmul.mubr.f32.gmra.mxu0 %v3298
      %v3518 = vpop.f32.mrf.mxu0
      %v3519 = vadd.f32 0.0, %v3518
      %v3520 = vpop.f32.mrf.mxu0
      %3521 = vmatprep.mubr.f32.mxu0 0.0
      %3522 = vmatmul.mubr.f32.gmra.mxu0 %v3300
      %v3523 = vpop.f32.mrf.mxu0
      %v3524 = vadd.f32 0.0, %v3523
      %v3525 = vpop.f32.mrf.mxu0
      %3526 = vmatprep.mubr.f32.mxu0 0.0
      %3527 = vmatmul.mubr.f32.gmra.mxu0 %v3302
      %v3528 = vpop.f32.mrf.mxu0
      %v3529 = vadd.f32 0.0, %v3528
      %v3530 = vpop.f32.mrf.mxu0
      %3531 = vdwg.mxu0
      %v3532 = vadd.f32 %v3110, %v3374
      %v3533 = vadd.f32 %v3111, %v3379
      %v3534 = vadd.f32 %v3112, %v3384
      %v3535 = vadd.f32 %v3113, %v3389
      %v3536 = vadd.f32 %v3114, %v3394
      %v3537 = vadd.f32 %v3115, %v3399
      %v3538 = vadd.f32 %v3116, %v3404
      %v3539 = vadd.f32 %v3117, %v3409
      %v3540 = vadd.f32 %v3118, %v3414
      %v3541 = vadd.f32 %v3119, %v3419
      %v3542 = vadd.f32 %v3120, %v3424
      %v3543 = vadd.f32 %v3121, %v3429
      %v3544 = vadd.f32 %v3122, %v3434
      %v3545 = vadd.f32 %v3123, %v3439
      %v3546 = vadd.f32 %v3124, %v3444
      %v3547 = vadd.f32 %v3125, %v3449
      %v3548 = vadd.f32 %v3126, %v3454
      %v3549 = vadd.f32 %v3127, %v3459
      %v3550 = vadd.f32 %v3128, %v3464
      %v3551 = vadd.f32 %v3129, %v3469
      %v3552 = vadd.f32 %v3130, %v3474
      %v3553 = vadd.f32 %v3131, %v3479
      %v3554 = vadd.f32 %v3132, %v3484
      %v3555 = vadd.f32 %v3133, %v3489
      %v3556 = vadd.f32 %v3134, %v3494
      %v3557 = vadd.f32 %v3135, %v3499
      %v3558 = vadd.f32 %v3136, %v3504
      %v3559 = vadd.f32 %v3137, %v3509
      %v3560 = vadd.f32 %v3138, %v3514
      %v3561 = vadd.f32 %v3139, %v3519
      %v3562 = vadd.f32 %v3140, %v3524
      %v3563 = vadd.f32 %v3141, %v3529
      %s3564 = scalar_lea.vmem %s238, 32
      %v3565 = vld [vmem:[%s3564] sm:$0xf]
      %v3566 = vrot.slane %v2736, 2
      %v3567 = vrot.slane %v2737, 2
      %v3568 = vsel %vm1095, %v3566, %v3567
      %v3569 = vrot.slane %v2738, 2
      %v3570 = vsel %vm1095, %v3567, %v3569
      %v3571 = vrot.slane %v2739, 2
      %v3572 = vrot.slane %v2740, 2
      %v3573 = vsel %vm1095, %v3571, %v3572
      %v3574 = vrot.slane %v2741, 2
      %v3575 = vsel %vm1095, %v3572, %v3574
      %v3576 = vrot.slane %v2742, 2
      %v3577 = vrot.slane %v2743, 2
      %v3578 = vsel %vm1095, %v3576, %v3577
      %v3579 = vrot.slane %v2744, 2
      %v3580 = vsel %vm1095, %v3577, %v3579
      %v3581 = vrot.slane %v2745, 2
      %v3582 = vrot.slane %v2746, 2
      %v3583 = vsel %vm1095, %v3581, %v3582
      %v3584 = vrot.slane %v2747, 2
      %v3585 = vsel %vm1095, %v3582, %v3584
      %v3586 = vrot.slane %v2748, 2
      %v3587 = vrot.slane %v2749, 2
      %v3588 = vsel %vm1095, %v3586, %v3587
      %v3589 = vrot.slane %v2750, 2
      %v3590 = vsel %vm1095, %v3587, %v3589
      %v3591 = vrot.slane %v2751, 2
      %v3592 = vrot.slane %v2752, 2
      %v3593 = vsel %vm1095, %v3591, %v3592
      %v3594 = vrot.slane %v2753, 2
      %v3595 = vsel %vm1095, %v3592, %v3594
      %v3596 = vrot.slane %v2754, 2
      %v3597 = vrot.slane %v2755, 2
      %v3598 = vsel %vm1095, %v3596, %v3597
      %v3599 = vrot.slane %v2756, 2
      %v3600 = vsel %vm1095, %v3597, %v3599
      %v3601 = vrot.slane %v2757, 2
      %v3602 = vrot.slane %v2758, 2
      %v3603 = vsel %vm1095, %v3601, %v3602
      %v3604 = vrot.slane %v2759, 2
      %v3605 = vsel %vm1095, %v3602, %v3604
      %v3606 = vrot.slane %v2760, 2
      %v3607 = vrot.slane %v2761, 2
      %v3608 = vsel %vm1095, %v3606, %v3607
      %v3609 = vrot.slane %v2762, 2
      %v3610 = vsel %vm1095, %v3607, %v3609
      %v3611 = vrot.slane %v2763, 2
      %v3612 = vrot.slane %v2764, 2
      %v3613 = vsel %vm1095, %v3611, %v3612
      %v3614 = vrot.slane %v2765, 2
      %v3615 = vsel %vm1095, %v3612, %v3614
      %v3616 = vrot.slane %v2766, 2
      %v3617 = vrot.slane %v2767, 2
      %v3618 = vsel %vm1095, %v3616, %v3617
      %v3619 = vrot.slane %v2768, 2
      %v3620 = vsel %vm1095, %v3617, %v3619
      %v3621 = vrot.slane %v2769, 2
      %v3622 = vrot.slane %v2770, 2
      %v3623 = vsel %vm1095, %v3621, %v3622
      %v3624 = vrot.slane %v2771, 2
      %v3625 = vsel %vm1095, %v3622, %v3624
      %v3626 = vrot.slane %v2772, 2
      %v3627 = vrot.slane %v2773, 2
      %v3628 = vsel %vm1095, %v3626, %v3627
      %v3629 = vrot.slane %v2774, 2
      %v3630 = vsel %vm1095, %v3627, %v3629
      %v3631 = vrot.slane %v2775, 2
      %v3632 = vrot.slane %v2776, 2
      %v3633 = vsel %vm1095, %v3631, %v3632
      %v3634 = vrot.slane %v2777, 2
      %v3635 = vsel %vm1095, %v3632, %v3634
      %v3636 = vrot.slane %v2778, 2
      %v3637 = vrot.slane %v2779, 2
      %v3638 = vsel %vm1095, %v3636, %v3637
      %v3639 = vrot.slane %v2780, 2
      %v3640 = vsel %vm1095, %v3637, %v3639
      %v3641 = vrot.slane %v2781, 2
      %v3642 = vrot.slane %v2782, 2
      %v3643 = vsel %vm1095, %v3641, %v3642
      %v3644 = vrot.slane %v2783, 2
      %v3645 = vsel %vm1095, %v3642, %v3644
      %v3646 = vsel %vm312, %v3568, 0
      %v3648 = vsel %vm312, %v3570, 0
      %v3650 = vsel %vm312, %v3573, 0
      %v3652 = vsel %vm312, %v3575, 0
      %v3654 = vsel %vm312, %v3578, 0
      %v3656 = vsel %vm312, %v3580, 0
      %v3658 = vsel %vm312, %v3583, 0
      %v3660 = vsel %vm312, %v3585, 0
      %v3662 = vsel %vm312, %v3588, 0
      %v3664 = vsel %vm312, %v3590, 0
      %v3666 = vsel %vm312, %v3593, 0
      %v3668 = vsel %vm312, %v3595, 0
      %v3670 = vsel %vm312, %v3598, 0
      %v3672 = vsel %vm312, %v3600, 0
      %v3674 = vsel %vm312, %v3603, 0
      %v3676 = vsel %vm312, %v3605, 0
      %v3678 = vsel %vm312, %v3608, 0
      %v3680 = vsel %vm312, %v3610, 0
      %v3682 = vsel %vm312, %v3613, 0
      %v3684 = vsel %vm312, %v3615, 0
      %v3686 = vsel %vm312, %v3618, 0
      %v3688 = vsel %vm312, %v3620, 0
      %v3690 = vsel %vm312, %v3623, 0
      %v3692 = vsel %vm312, %v3625, 0
      %v3694 = vsel %vm312, %v3628, 0
      %v3696 = vsel %vm312, %v3630, 0
      %v3698 = vsel %vm312, %v3633, 0
      %v3700 = vsel %vm312, %v3635, 0
      %v3702 = vsel %vm312, %v3638, 0
      %v3704 = vsel %vm312, %v3640, 0
      %v3706 = vsel %vm312, %v3643, 0
      %v3708 = vsel %vm312, %v3645, 0
      %v3711 = vsel %vm409, %v3565, 0
      %3713 = vmatprep.subr.mxu0 0.0
      %3714 = vmatpush1.msra.mxu0 0.0
      %3715 = vmatprep.subr.mxu0 0.0
      %3716 = vmatpush1.msra.mxu0 0.0
      %3717 = vmatprep.subr.mxu0 0.0
      %3718 = vmatpush1.msra.mxu0 0.0
      %3719 = vmatprep.subr.mxu0 0.0
      %3720 = vmatpush1.msra.mxu0 0.0
      %3721 = vmatprep.subr.mxu0 0.0
      %3722 = vmatpush1.msra.mxu0 0.0
      %3723 = vmatprep.subr.mxu0 0.0
      %3724 = vmatpush1.msra.mxu0 0.0
      %3725 = vmatprep.subr.mxu0 0.0
      %3726 = vmatpush1.msra.mxu0 0.0
      %3727 = vmatprep.subr.mxu0 0.0
      %3728 = vmatpush1.msra.mxu0 0.0
      %3729 = vmatprep.subr.mxu0 0.0
      %3730 = vmatpush1.msra.mxu0 0.0
      %3731 = vmatprep.subr.mxu0 0.0
      %3732 = vmatpush1.msra.mxu0 0.0
      %3733 = vmatprep.subr.mxu0 0.0
      %3734 = vmatpush1.msra.mxu0 0.0
      %3735 = vmatprep.subr.mxu0 0.0
      %3736 = vmatpush1.msra.mxu0 0.0
      %3737 = vmatprep.subr.mxu0 0.0
      %3738 = vmatpush1.msra.mxu0 0.0
      %3739 = vmatprep.subr.mxu0 0.0
      %3740 = vmatpush1.msra.mxu0 0.0
      %3741 = vmatprep.subr.mxu0 0.0
      %3742 = vmatpush1.msra.mxu0 0.0
      %3743 = vmatprep.subr.mxu0 0.0
      %3744 = vmatpush1.msra.mxu0 %v3711
      %3745 = vmatprep.subr.mxu0 0.0
      %3746 = vmatpush2.msra.mxu0 0.0
      %3747 = vmatprep.subr.mxu0 0.0
      %3748 = vmatpush2.msra.mxu0 0.0
      %3749 = vmatprep.subr.mxu0 0.0
      %3750 = vmatpush2.msra.mxu0 0.0
      %3751 = vmatprep.subr.mxu0 0.0
      %3752 = vmatpush2.msra.mxu0 0.0
      %3753 = vmatprep.subr.mxu0 0.0
      %3754 = vmatpush2.msra.mxu0 0.0
      %3755 = vmatprep.subr.mxu0 0.0
      %3756 = vmatpush2.msra.mxu0 0.0
      %3757 = vmatprep.subr.mxu0 0.0
      %3758 = vmatpush2.msra.mxu0 0.0
      %3759 = vmatprep.subr.mxu0 0.0
      %3760 = vmatpush2.msra.mxu0 0.0
      %3761 = vmatprep.subr.mxu0 0.0
      %3762 = vmatpush2.msra.mxu0 0.0
      %3763 = vmatprep.subr.mxu0 0.0
      %3764 = vmatpush2.msra.mxu0 0.0
      %3765 = vmatprep.subr.mxu0 0.0
      %3766 = vmatpush2.msra.mxu0 0.0
      %3767 = vmatprep.subr.mxu0 0.0
      %3768 = vmatpush2.msra.mxu0 0.0
      %3769 = vmatprep.subr.mxu0 0.0
      %3770 = vmatpush2.msra.mxu0 0.0
      %3771 = vmatprep.subr.mxu0 0.0
      %3772 = vmatpush2.msra.mxu0 0.0
      %3773 = vmatprep.subr.mxu0 0.0
      %3774 = vmatpush2.msra.mxu0 0.0
      %3775 = vmatprep.subr.mxu0 0.0
      %3776 = vmatpush2.msra.mxu0 0.0
      %3777 = vmatprep.mubr.f32.mxu0 0.0
      %3778 = vmatmul.mubr.f32.gmra.mxu0 %v3646
      %v3779 = vpop.f32.mrf.mxu0
      %v3780 = vadd.f32 0.0, %v3779
      %v3781 = vpop.f32.mrf.mxu0
      %3782 = vmatprep.mubr.f32.mxu0 0.0
      %3783 = vmatmul.mubr.f32.gmra.mxu0 %v3648
      %v3784 = vpop.f32.mrf.mxu0
      %v3785 = vadd.f32 0.0, %v3784
      %v3786 = vpop.f32.mrf.mxu0
      %3787 = vmatprep.mubr.f32.mxu0 0.0
      %3788 = vmatmul.mubr.f32.gmra.mxu0 %v3650
      %v3789 = vpop.f32.mrf.mxu0
      %v3790 = vadd.f32 0.0, %v3789
      %v3791 = vpop.f32.mrf.mxu0
      %3792 = vmatprep.mubr.f32.mxu0 0.0
      %3793 = vmatmul.mubr.f32.gmra.mxu0 %v3652
      %v3794 = vpop.f32.mrf.mxu0
      %v3795 = vadd.f32 0.0, %v3794
      %v3796 = vpop.f32.mrf.mxu0
      %3797 = vmatprep.mubr.f32.mxu0 0.0
      %3798 = vmatmul.mubr.f32.gmra.mxu0 %v3654
      %v3799 = vpop.f32.mrf.mxu0
      %v3800 = vadd.f32 0.0, %v3799
      %v3801 = vpop.f32.mrf.mxu0
      %3802 = vmatprep.mubr.f32.mxu0 0.0
      %3803 = vmatmul.mubr.f32.gmra.mxu0 %v3656
      %v3804 = vpop.f32.mrf.mxu0
      %v3805 = vadd.f32 0.0, %v3804
      %v3806 = vpop.f32.mrf.mxu0
      %3807 = vmatprep.mubr.f32.mxu0 0.0
      %3808 = vmatmul.mubr.f32.gmra.mxu0 %v3658
      %v3809 = vpop.f32.mrf.mxu0
      %v3810 = vadd.f32 0.0, %v3809
      %v3811 = vpop.f32.mrf.mxu0
      %3812 = vmatprep.mubr.f32.mxu0 0.0
      %3813 = vmatmul.mubr.f32.gmra.mxu0 %v3660
      %v3814 = vpop.f32.mrf.mxu0
      %v3815 = vadd.f32 0.0, %v3814
      %v3816 = vpop.f32.mrf.mxu0
      %3817 = vmatprep.mubr.f32.mxu0 0.0
      %3818 = vmatmul.mubr.f32.gmra.mxu0 %v3662
      %v3819 = vpop.f32.mrf.mxu0
      %v3820 = vadd.f32 0.0, %v3819
      %v3821 = vpop.f32.mrf.mxu0
      %3822 = vmatprep.mubr.f32.mxu0 0.0
      %3823 = vmatmul.mubr.f32.gmra.mxu0 %v3664
      %v3824 = vpop.f32.mrf.mxu0
      %v3825 = vadd.f32 0.0, %v3824
      %v3826 = vpop.f32.mrf.mxu0
      %3827 = vmatprep.mubr.f32.mxu0 0.0
      %3828 = vmatmul.mubr.f32.gmra.mxu0 %v3666
      %v3829 = vpop.f32.mrf.mxu0
      %v3830 = vadd.f32 0.0, %v3829
      %v3831 = vpop.f32.mrf.mxu0
      %3832 = vmatprep.mubr.f32.mxu0 0.0
      %3833 = vmatmul.mubr.f32.gmra.mxu0 %v3668
      %v3834 = vpop.f32.mrf.mxu0
      %v3835 = vadd.f32 0.0, %v3834
      %v3836 = vpop.f32.mrf.mxu0
      %3837 = vmatprep.mubr.f32.mxu0 0.0
      %3838 = vmatmul.mubr.f32.gmra.mxu0 %v3670
      %v3839 = vpop.f32.mrf.mxu0
      %v3840 = vadd.f32 0.0, %v3839
      %v3841 = vpop.f32.mrf.mxu0
      %3842 = vmatprep.mubr.f32.mxu0 0.0
      %3843 = vmatmul.mubr.f32.gmra.mxu0 %v3672
      %v3844 = vpop.f32.mrf.mxu0
      %v3845 = vadd.f32 0.0, %v3844
      %v3846 = vpop.f32.mrf.mxu0
      %3847 = vmatprep.mubr.f32.mxu0 0.0
      %3848 = vmatmul.mubr.f32.gmra.mxu0 %v3674
      %v3849 = vpop.f32.mrf.mxu0
      %v3850 = vadd.f32 0.0, %v3849
      %v3851 = vpop.f32.mrf.mxu0
      %3852 = vmatprep.mubr.f32.mxu0 0.0
      %3853 = vmatmul.mubr.f32.gmra.mxu0 %v3676
      %v3854 = vpop.f32.mrf.mxu0
      %v3855 = vadd.f32 0.0, %v3854
      %v3856 = vpop.f32.mrf.mxu0
      %3857 = vmatprep.mubr.f32.mxu0 0.0
      %3858 = vmatmul.mubr.f32.gmra.mxu0 %v3678
      %v3859 = vpop.f32.mrf.mxu0
      %v3860 = vadd.f32 0.0, %v3859
      %v3861 = vpop.f32.mrf.mxu0
      %3862 = vmatprep.mubr.f32.mxu0 0.0
      %3863 = vmatmul.mubr.f32.gmra.mxu0 %v3680
      %v3864 = vpop.f32.mrf.mxu0
      %v3865 = vadd.f32 0.0, %v3864
      %v3866 = vpop.f32.mrf.mxu0
      %3867 = vmatprep.mubr.f32.mxu0 0.0
      %3868 = vmatmul.mubr.f32.gmra.mxu0 %v3682
      %v3869 = vpop.f32.mrf.mxu0
      %v3870 = vadd.f32 0.0, %v3869
      %v3871 = vpop.f32.mrf.mxu0
      %3872 = vmatprep.mubr.f32.mxu0 0.0
      %3873 = vmatmul.mubr.f32.gmra.mxu0 %v3684
      %v3874 = vpop.f32.mrf.mxu0
      %v3875 = vadd.f32 0.0, %v3874
      %v3876 = vpop.f32.mrf.mxu0
      %3877 = vmatprep.mubr.f32.mxu0 0.0
      %3878 = vmatmul.mubr.f32.gmra.mxu0 %v3686
      %v3879 = vpop.f32.mrf.mxu0
      %v3880 = vadd.f32 0.0, %v3879
      %v3881 = vpop.f32.mrf.mxu0
      %3882 = vmatprep.mubr.f32.mxu0 0.0
      %3883 = vmatmul.mubr.f32.gmra.mxu0 %v3688
      %v3884 = vpop.f32.mrf.mxu0
      %v3885 = vadd.f32 0.0, %v3884
      %v3886 = vpop.f32.mrf.mxu0
      %3887 = vmatprep.mubr.f32.mxu0 0.0
      %3888 = vmatmul.mubr.f32.gmra.mxu0 %v3690
      %v3889 = vpop.f32.mrf.mxu0
      %v3890 = vadd.f32 0.0, %v3889
      %v3891 = vpop.f32.mrf.mxu0
      %3892 = vmatprep.mubr.f32.mxu0 0.0
      %3893 = vmatmul.mubr.f32.gmra.mxu0 %v3692
      %v3894 = vpop.f32.mrf.mxu0
      %v3895 = vadd.f32 0.0, %v3894
      %v3896 = vpop.f32.mrf.mxu0
      %3897 = vmatprep.mubr.f32.mxu0 0.0
      %3898 = vmatmul.mubr.f32.gmra.mxu0 %v3694
      %v3899 = vpop.f32.mrf.mxu0
      %v3900 = vadd.f32 0.0, %v3899
      %v3901 = vpop.f32.mrf.mxu0
      %3902 = vmatprep.mubr.f32.mxu0 0.0
      %3903 = vmatmul.mubr.f32.gmra.mxu0 %v3696
      %v3904 = vpop.f32.mrf.mxu0
      %v3905 = vadd.f32 0.0, %v3904
      %v3906 = vpop.f32.mrf.mxu0
      %3907 = vmatprep.mubr.f32.mxu0 0.0
      %3908 = vmatmul.mubr.f32.gmra.mxu0 %v3698
      %v3909 = vpop.f32.mrf.mxu0
      %v3910 = vadd.f32 0.0, %v3909
      %v3911 = vpop.f32.mrf.mxu0
      %3912 = vmatprep.mubr.f32.mxu0 0.0
      %3913 = vmatmul.mubr.f32.gmra.mxu0 %v3700
      %v3914 = vpop.f32.mrf.mxu0
      %v3915 = vadd.f32 0.0, %v3914
      %v3916 = vpop.f32.mrf.mxu0
      %3917 = vmatprep.mubr.f32.mxu0 0.0
      %3918 = vmatmul.mubr.f32.gmra.mxu0 %v3702
      %v3919 = vpop.f32.mrf.mxu0
      %v3920 = vadd.f32 0.0, %v3919
      %v3921 = vpop.f32.mrf.mxu0
      %3922 = vmatprep.mubr.f32.mxu0 0.0
      %3923 = vmatmul.mubr.f32.gmra.mxu0 %v3704
      %v3924 = vpop.f32.mrf.mxu0
      %v3925 = vadd.f32 0.0, %v3924
      %v3926 = vpop.f32.mrf.mxu0
      %3927 = vmatprep.mubr.f32.mxu0 0.0
      %3928 = vmatmul.mubr.f32.gmra.mxu0 %v3706
      %v3929 = vpop.f32.mrf.mxu0
      %v3930 = vadd.f32 0.0, %v3929
      %v3931 = vpop.f32.mrf.mxu0
      %3932 = vmatprep.mubr.f32.mxu0 0.0
      %3933 = vmatmul.mubr.f32.gmra.mxu0 %v3708
      %v3934 = vpop.f32.mrf.mxu0
      %v3935 = vadd.f32 0.0, %v3934
      %v3936 = vpop.f32.mrf.mxu0
      %3937 = vdwg.mxu0
      %v3938 = vadd.f32 %v3532, %v3780
      %v3939 = vadd.f32 %v3533, %v3785
      %v3940 = vadd.f32 %v3534, %v3790
      %v3941 = vadd.f32 %v3535, %v3795
      %v3942 = vadd.f32 %v3536, %v3800
      %v3943 = vadd.f32 %v3537, %v3805
      %v3944 = vadd.f32 %v3538, %v3810
      %v3945 = vadd.f32 %v3539, %v3815
      %v3946 = vadd.f32 %v3540, %v3820
      %v3947 = vadd.f32 %v3541, %v3825
      %v3948 = vadd.f32 %v3542, %v3830
      %v3949 = vadd.f32 %v3543, %v3835
      %v3950 = vadd.f32 %v3544, %v3840
      %v3951 = vadd.f32 %v3545, %v3845
      %v3952 = vadd.f32 %v3546, %v3850
      %v3953 = vadd.f32 %v3547, %v3855
      %v3954 = vadd.f32 %v3548, %v3860
      %v3955 = vadd.f32 %v3549, %v3865
      %v3956 = vadd.f32 %v3550, %v3870
      %v3957 = vadd.f32 %v3551, %v3875
      %v3958 = vadd.f32 %v3552, %v3880
      %v3959 = vadd.f32 %v3553, %v3885
      %v3960 = vadd.f32 %v3554, %v3890
      %v3961 = vadd.f32 %v3555, %v3895
      %v3962 = vadd.f32 %v3556, %v3900
      %v3963 = vadd.f32 %v3557, %v3905
      %v3964 = vadd.f32 %v3558, %v3910
      %v3965 = vadd.f32 %v3559, %v3915
      %v3966 = vadd.f32 %v3560, %v3920
      %v3967 = vadd.f32 %v3561, %v3925
      %v3968 = vadd.f32 %v3562, %v3930
      %v3969 = vadd.f32 %v3563, %v3935
      %3970 = vst [vmem:[%s254] sm:$0xff] %v3938
      %3971 = vst [vmem:[%s254 + $0x8] sm:$0xff] %v3939
      %3972 = vst [vmem:[%s254 + $0x10] sm:$0xff] %v3940
      %3973 = vst [vmem:[%s254 + $0x18] sm:$0xff] %v3941
      %3974 = vst [vmem:[%s254 + $0x20] sm:$0xff] %v3942
      %3975 = vst [vmem:[%s254 + $0x28] sm:$0xff] %v3943
      %3976 = vst [vmem:[%s254 + $0x30] sm:$0xff] %v3944
      %3977 = vst [vmem:[%s254 + $0x38] sm:$0xff] %v3945
      %3978 = vst [vmem:[%s254 + $0x40] sm:$0xff] %v3946
      %3979 = vst [vmem:[%s254 + $0x48] sm:$0xff] %v3947
      %3980 = vst [vmem:[%s254 + $0x50] sm:$0xff] %v3948
      %3981 = vst [vmem:[%s254 + $0x58] sm:$0xff] %v3949
      %3982 = vst [vmem:[%s254 + $0x60] sm:$0xff] %v3950
      %3983 = vst [vmem:[%s254 + $0x68] sm:$0xff] %v3951
      %3984 = vst [vmem:[%s254 + $0x70] sm:$0xff] %v3952
      %3985 = vst [vmem:[%s254 + $0x78] sm:$0xff] %v3953
      %3986 = vst [vmem:[%s254 + $0x80] sm:$0xff] %v3954
      %3987 = vst [vmem:[%s254 + $0x88] sm:$0xff] %v3955
      %3988 = vst [vmem:[%s254 + $0x90] sm:$0xff] %v3956
      %3989 = vst [vmem:[%s254 + $0x98] sm:$0xff] %v3957
      %3990 = vst [vmem:[%s254 + $0xa0] sm:$0xff] %v3958
      %3991 = vst [vmem:[%s254 + $0xa8] sm:$0xff] %v3959
      %3992 = vst [vmem:[%s254 + $0xb0] sm:$0xff] %v3960
      %3993 = vst [vmem:[%s254 + $0xb8] sm:$0xff] %v3961
      %3994 = vst [vmem:[%s254 + $0xc0] sm:$0xff] %v3962
      %3995 = vst [vmem:[%s254 + $0xc8] sm:$0xff] %v3963
      %3996 = vst [vmem:[%s254 + $0xd0] sm:$0xff] %v3964
      %3997 = vst [vmem:[%s254 + $0xd8] sm:$0xff] %v3965
      %3998 = vst [vmem:[%s254 + $0xe0] sm:$0xff] %v3966
      %3999 = vst [vmem:[%s254 + $0xe8] sm:$0xff] %v3967
      %4000 = vst [vmem:[%s254 + $0xf0] sm:$0xff] %v3968
      %4001 = vst [vmem:[%s254 + $0xf8] sm:$0xff] %v3969
      %s4002 = smul.u32 16, %s20
      %p4003 = scmp.lt.s32.totalorder %s19, 1
      %s4004 = scalar_select %p4003, %s19, 1
      %p4005 = scmp.lt.s32.totalorder %s4002, 15
      %s4006 = scalar_select %p4005, %s4002, 15
      %p4007 = scmp.lt.s32.totalorder %s21, 0
      %s4008 = scalar_select %p4007, %s21, 0
      %s4009 = smul.addr %s4006, 2
      %s4010 = sadd.s32 %s4008, %s4009
      %s4011 = smul.addr %s4004, 32
      %s4012 = sadd.s32 %s4010, %s4011
      %s4013 = smul.addr %s4012, 8
      %s4014 = scalar_lea.vmem %s3, %s4013
      // Predicated region
      $region33: #{conv_forward.1} parent=31 // pred_check
        %p4015 = pneg %p135
      $region34: #{conv_forward.1} parent=31 // pred_check_branch
        %4017 = sbr.rel (%p4015) target = $region36
      $region35: #{conv_forward.1} parent=31 // pred_region
        %s4018 = smul.u32 16, %s20
      $region36: #{conv_forward.1} parent=31 // pred_fallthru
        _
    $region32: #{conv_forward.1} parent=5 // pred_fallthru
      _
    %p4019 = scmp.le.s32.totalorder 2, %s9
    // Predicated region
    $region37: #{conv_forward.1} parent=5 // pred_check
      %p4020 = pneg %p4019
    $region38: #{conv_forward.1} parent=5 // pred_check_branch
      %4022 = sbr.rel (%p4020) target = $region40
    $region39: #{conv_forward.1} parent=5 // pred_region
      %s4023 = ssub.s32 %s9, 2
      // Predicated region
      $region41: #{conv_forward.1} parent=39 // pred_check
        %p4024 = pneg %p141
      $region42: #{conv_forward.1} parent=39 // pred_check_branch
        %4026 = sbr.rel (%p4024) target = $region44
      $region43: #{conv_forward.1} parent=39 // pred_region
        %s4027 = smul.u32 16, %s23
        %p4028 = scmp.lt.s32.totalorder %s22, 1
        %s4029 = scalar_select %p4028, %s22, 1
        %p4030 = scmp.lt.s32.totalorder %s4027, 15
        %s4031 = scalar_select %p4030, %s4027, 15
        %p4032 = scmp.lt.s32.totalorder %s24, 0
        %s4033 = scalar_select %p4032, %s24, 0
        %s4034 = smul.addr %s4031, 2
        %s4035 = sadd.s32 %s4033, %s4034
        %s4036 = smul.addr %s4029, 32
        %s4037 = sadd.s32 %s4035, %s4036
        %s4038 = smul.addr %s4037, 8
        %s4039 = scalar_lea.vmem %s3, %s4038
      $region44: #{conv_forward.1} parent=39 // pred_fallthru
        _
    $region40: #{conv_forward.1} parent=5 // pred_fallthru
      _
  $region6: #{conv_forward.1} parent=0 // loop_footer
    %s13 = sadd.s32 1, %s9
  $region7: #{conv_forward.1} parent=0 // loop_footer_branch
    %8 = sbr.rel target = $region3
  $region8: #{conv_forward.1} parent=0 // loop_exit
    _

</llo_original>
